<compile_context>
chip_gen: v7x
topology: tpu7x:2x2x1
jax: 0.10.0
libtpu: 0.0.40
codegen_flags: <defaults>
</compile_context>

<pallas_src>
import functools

import jax
import jax.numpy as jnp
from jax.experimental import pallas as pl
from jax.experimental.pallas import tpu as pltpu


def _ceil_to(x, m):
    return ((x + m - 1) // m) * m


# ---------------------------------------------------------------------------
# Fused kernel: conv1(3x3,pad1)+ReLU -> conv2(3x3,pad1)+ReLU -> GAP -> FC
# One grid step == `B` batch elements (independent -> "parallel").
# ---------------------------------------------------------------------------
def _fused_forward_kernel(p1_ref, w1_ref, b1_ref, w2_ref, b2_ref,
                          wfc_ref, bfc_ref,
                          feat1_ref, feat2_ref, logits_ref,
                          f1pad_ref, patch2_ref, *, B, H, W):
    # p1_ref    : (B, H*W, K1p)   host-packed conv1 im2col patches, bf16
    # w1_ref    : (K1p, C1s)      bf16 ;  b1_ref: (1, C1s) f32
    # w2_ref    : (K2p, C2s)      bf16 ;  b2_ref: (1, C2s) f32
    # wfc_ref   : (C2s, NC)       bf16 ;  bfc_ref: (1, NC) f32
    # feat1_ref : (B, H*W, C1s)   hooked "conv1" output (real channels only)
    # feat2_ref : (B, H*W, C2s)   hooked "conv2" output
    # logits_ref: (B, 1, NC)
    # f1pad_ref : VMEM (B, H+2, W+2, C1s) bf16   conv1->conv2 halo scratch
    # patch2_ref: VMEM (B*H*W, K2p) bf16         conv2 im2col patch buffer
    HW = H * W
    C1s = w1_ref.shape[1]
    C2s = w2_ref.shape[1]
    K2 = 9 * C1s
    K2p = patch2_ref.shape[1]
    bf16 = jnp.bfloat16

    # Re-zero ONLY the 1-px halo border of the handoff scratch and the K-pad
    # columns of the patch buffer (~2 KiB) — not the whole scratch.  Done every
    # step (not pl.when(program_id==0)): with a "parallel" grid, v7x may split
    # steps across its two TensorCores and only one core ever sees step 0.
    zrow = jnp.zeros((B, 1, W + 2, C1s), bf16)
    zcol = jnp.zeros((B, H + 2, 1, C1s), bf16)
    f1pad_ref[:, 0:1, :, :] = zrow
    f1pad_ref[:, H + 1:H + 2, :, :] = zrow
    f1pad_ref[:, :, 0:1, :] = zcol
    f1pad_ref[:, :, W + 1:W + 2, :] = zcol
    if K2p > K2:
        patch2_ref[:, K2:] = jnp.zeros((B * HW, K2p - K2), bf16)

    # ---- conv1 + ReLU: ONE bf16 MXU dot over host-packed im2col patches ----
    p1 = p1_ref[...].reshape(B * HW, p1_ref.shape[-1])          # (B*HW, K1p)
    a1 = jnp.dot(p1, w1_ref[...], preferred_element_type=jnp.float32)
    a1 = jnp.maximum(a1 + b1_ref[...], 0.0)                     # (B*HW, C1s) f32

    # hooked "conv1" feature: only real (sublane-padded) channels go to HBM
    feat1_ref[...] = a1.reshape(B, HW, C1s).astype(feat1_ref.dtype)

    # conv1 -> conv2 handoff stays in VMEM; bf16 = next MXU operand precision
    f1pad_ref[:, 1:H + 1, 1:W + 1, :] = a1.reshape(B, H, W, C1s).astype(bf16)

    # ---- conv2 + ReLU: pack 9 taps x C1s channels into one K, one MXU dot ----
    for k in range(9):
        i, j = divmod(k, 3)
        tap = f1pad_ref[:, i:i + H, j:j + W, :].reshape(B * HW, C1s)
        patch2_ref[:, k * C1s:(k + 1) * C1s] = tap
    a2 = jnp.dot(patch2_ref[...], w2_ref[...],
                 preferred_element_type=jnp.float32)
    a2 = jnp.maximum(a2 + b2_ref[...], 0.0)                     # (B*HW, C2s) f32

    feat2_ref[...] = a2.reshape(B, HW, C2s).astype(feat2_ref.dtype)

    # ---- global-average-pool + FC head.  Linearity: apply FC per-pixel with
    # one lane-dense dot, then average with a sublane reduce per image.
    z = jnp.dot(a2.astype(bf16), wfc_ref[...],
                preferred_element_type=jnp.float32)             # (B*HW, NC)
    inv_hw = 1.0 / HW
    for b in range(B):
        lb = jnp.sum(z[b * HW:(b + 1) * HW, :], axis=0, keepdims=True) * inv_hw
        logits_ref[b] = (lb + bfc_ref[...]).astype(logits_ref.dtype)


# ---------------------------------------------------------------------------
# Parameters for the synthetic wrapped model
# ---------------------------------------------------------------------------
def init_params(key, c_in=4, c1=8, c2=16, num_classes=10):
    k1, k2, k3, k4, k5, k6 = jax.random.split(key, 6)
    return {
        "conv1_w": 0.1 * jax.random.normal(k1, (c1, c_in, 3, 3), jnp.float32),
        "conv1_b": 0.1 * jax.random.normal(k2, (c1,), jnp.float32),
        "conv2_w": 0.1 * jax.random.normal(k3, (c2, c1, 3, 3), jnp.float32),
        "conv2_b": 0.1 * jax.random.normal(k4, (c2,), jnp.float32),
        "fc_w":    0.1 * jax.random.normal(k5, (num_classes, c2), jnp.float32),
        "fc_b":    0.1 * jax.random.normal(k6, (num_classes,), jnp.float32),
    }


# ---------------------------------------------------------------------------
# Forward = FeatureExtractor.forward: returns (logits, features_dict)
# ---------------------------------------------------------------------------
def feature_extractor_forward(x_nchw, params, block_n=None):
    N, Cin, H, W = x_nchw.shape
    C1 = params["conv1_w"].shape[0]
    C2 = params["conv2_w"].shape[0]
    NC = params["fc_w"].shape[0]
    HW = H * W
    C1s = _ceil_to(C1, 8)
    C2s = _ceil_to(C2, 8)
    K1 = 9 * Cin
    K1p = _ceil_to(K1, 128)
    K2 = 9 * C1s
    K2p = _ceil_to(K2, 128)

    if block_n is None:
        # keep >= 2 grid steps when possible so v7x's 2 TensorCores both get
        # work; cap the per-step batch at 8 images (M = 8*HW rows per dot).
        block_n = max(1, min(8, (N + 1) // 2))
    B = block_n
    Npad = _ceil_to(N, B)
    G = Npad // B

    # Host-side prep: NCHW -> NHWC, 1-px halo, im2col packing of conv1's 9 taps
    # into one K (9*Cin -> 128) so the kernel's conv1 is a single lane-dense
    # bf16 MXU dot with zero in-kernel relayout.
    x_nhwc = jnp.transpose(x_nchw, (0, 2, 3, 1))
    xpad = jnp.pad(x_nhwc, ((0, Npad - N), (1, 1), (1, 1), (0, 0)))
    taps = [xpad[:, i:i + H, j:j + W, :] for i in range(3) for j in range(3)]
    p1 = jnp.concatenate(taps, axis=-1).reshape(Npad, HW, K1)
    p1 = jnp.pad(p1, ((0, 0), (0, 0), (0, K1p - K1))).astype(jnp.bfloat16)

    # Weights as bf16 MXU operands (biases stay f32; accumulation stays f32).
    w1 = jnp.transpose(params["conv1_w"], (2, 3, 1, 0)).reshape(K1, C1)
    w1 = jnp.pad(w1, ((0, K1p - K1), (0, C1s - C1))).astype(jnp.bfloat16)
    b1 = jnp.pad(params["conv1_b"], (0, C1s - C1)).reshape(1, C1s)

    w2 = jnp.transpose(params["conv2_w"], (2, 3, 1, 0))            # (3,3,C1,C2)
    w2 = jnp.pad(w2, ((0, 0), (0, 0), (0, C1s - C1), (0, C2s - C2)))
    w2 = w2.reshape(K2, C2s)
    w2 = jnp.pad(w2, ((0, K2p - K2), (0, 0))).astype(jnp.bfloat16)
    b2 = jnp.pad(params["conv2_b"], (0, C2s - C2)).reshape(1, C2s)

    wfc = jnp.pad(params["fc_w"].T, ((0, C2s - C2), (0, 0))).astype(jnp.bfloat16)
    bfc = params["fc_b"].reshape(1, NC)

    kernel = functools.partial(_fused_forward_kernel, B=B, H=H, W=W)
    feat1p, feat2p, logitsp = pl.pallas_call(
        kernel,
        out_shape=(
            jax.ShapeDtypeStruct((Npad, HW, C1s), jnp.float32),
            jax.ShapeDtypeStruct((Npad, HW, C2s), jnp.float32),
            jax.ShapeDtypeStruct((Npad, 1, NC), jnp.float32),
        ),
        grid=(G,),
        in_specs=[
            pl.BlockSpec((B, HW, K1p), lambda n: (n, 0, 0)),
            # weights / biases: constant index_map -> DMAed once, kept in VMEM
            pl.BlockSpec((K1p, C1s), lambda n: (0, 0)),
            pl.BlockSpec((1, C1s), lambda n: (0, 0)),
            pl.BlockSpec((K2p, C2s), lambda n: (0, 0)),
            pl.BlockSpec((1, C2s), lambda n: (0, 0)),
            pl.BlockSpec((C2s, NC), lambda n: (0, 0)),
            pl.BlockSpec((1, NC), lambda n: (0, 0)),
        ],
        out_specs=(
            pl.BlockSpec((B, HW, C1s), lambda n: (n, 0, 0)),
            pl.BlockSpec((B, HW, C2s), lambda n: (n, 0, 0)),
            pl.BlockSpec((B, 1, NC), lambda n: (n, 0, 0)),
        ),
        scratch_shapes=[
            pltpu.VMEM((B, H + 2, W + 2, C1s), jnp.bfloat16),
            pltpu.VMEM((B * HW, K2p), jnp.bfloat16),
        ],
        compiler_params=pltpu.CompilerParams(
            dimension_semantics=("parallel",)),
    )(p1, w1, b1, w2, b2, wfc, bfc)

    # Hook captures: drop the tiny sublane/batch padding and convert the
    # real-sized data to NCHW once, outside the kernel.
    feat1 = jnp.transpose(feat1p[:N, :, :C1], (0, 2, 1)).reshape(N, C1, H, W)
    feat2 = jnp.transpose(feat2p[:N, :, :C2], (0, 2, 1)).reshape(N, C2, H, W)
    logits = logitsp[:N, 0, :]
    return logits, {"conv1": feat1, "conv2": feat2}


# ---------------------------------------------------------------------------
# Plain-XLA reference (correctness sanity check)
# ---------------------------------------------------------------------------
def _reference_forward(x, params):
    dn = ("NCHW", "OIHW", "NCHW")
    f1 = jax.nn.relu(
        jax.lax.conv_general_dilated(x, params["conv1_w"], (1, 1),
                                     ((1, 1), (1, 1)), dimension_numbers=dn)
        + params["conv1_b"][None, :, None, None])
    f2 = jax.nn.relu(
        jax.lax.conv_general_dilated(f1, params["conv2_w"], (1, 1),
                                     ((1, 1), (1, 1)), dimension_numbers=dn)
        + params["conv2_b"][None, :, None, None])
    pooled = f2.mean(axis=(2, 3))
    logits = pooled @ params["fc_w"].T + params["fc_b"]
    return logits, {"conv1": f1, "conv2": f2}


def _check(x, params, out, feats, tol):
    ref_out, ref_feats = _reference_forward(x, params)
    assert jnp.allclose(out, ref_out, atol=tol, rtol=tol)
    assert jnp.allclose(feats["conv1"], ref_feats["conv1"], atol=tol, rtol=tol)
    assert jnp.allclose(feats["conv2"], ref_feats["conv2"], atol=tol, rtol=tol)


# ---------------------------------------------------------------------------
if __name__ == "__main__":
    key = jax.random.PRNGKey(0)
    kx, kp, kx2 = jax.random.split(key, 3)

    N, C, H, W = 2, 4, 16, 16
    x = jax.random.normal(kx, (N, C, H, W), jnp.float32)
    params = init_params(kp, c_in=C, c1=8, c2=16, num_classes=10)

    fwd = jax.jit(feature_extractor_forward)
    out, feats = fwd(x, params)
    out = jax.block_until_ready(out)
    feats = jax.tree_util.tree_map(jax.block_until_ready, feats)

    assert out.shape == (N, 10)
    assert feats["conv1"].shape == (N, 8, H, W)
    assert feats["conv2"].shape == (N, 16, H, W)

    # bf16 MXU operands with f32 accumulation -> slightly loosened tolerance.
    _check(x, params, out, feats, tol=3e-2)

    # Second config exercises batched grid steps (B=3) and batch padding (5->6).
    x2 = jax.random.normal(kx2, (5, C, H, W), jnp.float32)
    out2, feats2 = fwd(x2, params)
    out2 = jax.block_until_ready(out2)
    feats2 = jax.tree_util.tree_map(jax.block_until_ready, feats2)
    assert out2.shape == (5, 10)
    _check(x2, params, out2, feats2, tol=3e-2)

    print("KERNEL_OK")
</pallas_src>

<mosaic_0001>
module attributes {stable_mosaic.version = 11 : i64} {
  func.func @_fused_forward_kernel(%arg0: i32, %arg1: memref<1x256x128xbf16, #tpu.memory_space<vmem>>, %arg2: memref<128x8xbf16, #tpu.memory_space<vmem>>, %arg3: memref<1x8xf32, #tpu.memory_space<vmem>>, %arg4: memref<128x16xbf16, #tpu.memory_space<vmem>>, %arg5: memref<1x16xf32, #tpu.memory_space<vmem>>, %arg6: memref<16x10xbf16, #tpu.memory_space<vmem>>, %arg7: memref<1x10xf32, #tpu.memory_space<vmem>>, %arg8: memref<1x256x8xf32, #tpu.memory_space<vmem>>, %arg9: memref<1x256x16xf32, #tpu.memory_space<vmem>>, %arg10: memref<1x1x10xf32, #tpu.memory_space<vmem>>, %arg11: memref<1x18x18x8xbf16, #tpu.memory_space<vmem>>, %arg12: memref<256x128xbf16, #tpu.memory_space<vmem>>) attributes {dimension_semantics = [#tpu.dimension_semantics<parallel>], iteration_bounds = array<i64: 2>, scalar_prefetch = 0 : i64, scratch_operands = 2 : i64, tpu.core_type = #tpu.core_type<tc>, window_params = [{transform_indices = @transform_0, window_bounds = array<i64: 1, 256, 128>}, {pipeline_mode = #tpu.pipeline_mode<synchronous>, transform_indices = @transform_1, window_bounds = array<i64: 128, 8>}, {pipeline_mode = #tpu.pipeline_mode<synchronous>, transform_indices = @transform_2, window_bounds = array<i64: 1, 8>}, {pipeline_mode = #tpu.pipeline_mode<synchronous>, transform_indices = @transform_3, window_bounds = array<i64: 128, 16>}, {pipeline_mode = #tpu.pipeline_mode<synchronous>, transform_indices = @transform_4, window_bounds = array<i64: 1, 16>}, {pipeline_mode = #tpu.pipeline_mode<synchronous>, transform_indices = @transform_5, window_bounds = array<i64: 16, 10>}, {pipeline_mode = #tpu.pipeline_mode<synchronous>, transform_indices = @transform_6, window_bounds = array<i64: 1, 10>}, {transform_indices = @transform_7, window_bounds = array<i64: 1, 256, 8>}, {transform_indices = @transform_8, window_bounds = array<i64: 1, 256, 16>}, {transform_indices = @transform_9, window_bounds = array<i64: 1, 1, 10>}]} {
    %cst = arith.constant 0.000000e+00 : bf16
    %0 = vector.broadcast %cst : bf16 to vector<1x1x18x8xbf16>
    %cst_0 = arith.constant 0.000000e+00 : bf16
    %1 = vector.broadcast %cst_0 : bf16 to vector<1x18x1x8xbf16>
    %c0 = arith.constant 0 : index
    %c0_1 = arith.constant 0 : index
    %c0_2 = arith.constant 0 : index
    %c0_3 = arith.constant 0 : index
    %2 = vector.load %arg11[%c0, %c0_1, %c0_2, %c0_3] : memref<1x18x18x8xbf16, #tpu.memory_space<vmem>>, vector<1x1x18x8xbf16>
    tpu.vector_store %arg11[%c0, %c0_1, %c0_2, %c0_3], %0 {strides = array<i32>} : memref<1x18x18x8xbf16, #tpu.memory_space<vmem>>, vector<1x1x18x8xbf16>,
    %c0_4 = arith.constant 0 : index
    %c17 = arith.constant 17 : index
    %c0_5 = arith.constant 0 : index
    %c0_6 = arith.constant 0 : index
    %3 = vector.load %arg11[%c0_4, %c17, %c0_5, %c0_6] : memref<1x18x18x8xbf16, #tpu.memory_space<vmem>>, vector<1x1x18x8xbf16>
    tpu.vector_store %arg11[%c0_4, %c17, %c0_5, %c0_6], %0 {strides = array<i32>} : memref<1x18x18x8xbf16, #tpu.memory_space<vmem>>, vector<1x1x18x8xbf16>,
    %c0_7 = arith.constant 0 : index
    %c0_8 = arith.constant 0 : index
    %c0_9 = arith.constant 0 : index
    %c0_10 = arith.constant 0 : index
    %4 = vector.load %arg11[%c0_7, %c0_8, %c0_9, %c0_10] : memref<1x18x18x8xbf16, #tpu.memory_space<vmem>>, vector<1x18x1x8xbf16>
    tpu.vector_store %arg11[%c0_7, %c0_8, %c0_9, %c0_10], %1 {strides = array<i32>} : memref<1x18x18x8xbf16, #tpu.memory_space<vmem>>, vector<1x18x1x8xbf16>,
    %c0_11 = arith.constant 0 : index
    %c0_12 = arith.constant 0 : index
    %c17_13 = arith.constant 17 : index
    %c0_14 = arith.constant 0 : index
    %5 = vector.load %arg11[%c0_11, %c0_12, %c17_13, %c0_14] : memref<1x18x18x8xbf16, #tpu.memory_space<vmem>>, vector<1x18x1x8xbf16>
    tpu.vector_store %arg11[%c0_11, %c0_12, %c17_13, %c0_14], %1 {strides = array<i32>} : memref<1x18x18x8xbf16, #tpu.memory_space<vmem>>, vector<1x18x1x8xbf16>,
    %cst_15 = arith.constant 0.000000e+00 : bf16
    %6 = vector.broadcast %cst_15 : bf16 to vector<256x56xbf16>
    %c0_16 = arith.constant 0 : index
    %c72 = arith.constant 72 : index
    %7 = vector.load %arg12[%c0_16, %c72] : memref<256x128xbf16, #tpu.memory_space<vmem>>, vector<256x56xbf16>
    tpu.vector_store %arg12[%c0_16, %c72], %6 {strides = array<i32>} : memref<256x128xbf16, #tpu.memory_space<vmem>>, vector<256x56xbf16>,
    %c0_17 = arith.constant 0 : index
    %c0_18 = arith.constant 0 : index
    %c0_19 = arith.constant 0 : index
    %8 = vector.load %arg1[%c0_17, %c0_18, %c0_19] : memref<1x256x128xbf16, #tpu.memory_space<vmem>>, vector<1x256x128xbf16>
    %9 = vector.shape_cast %8 : vector<1x256x128xbf16> to vector<256x128xbf16>
    %c0_20 = arith.constant 0 : index
    %c0_21 = arith.constant 0 : index
    %10 = vector.load %arg2[%c0_20, %c0_21] : memref<128x8xbf16, #tpu.memory_space<vmem>>, vector<128x8xbf16>
    %cst_22 = arith.constant dense<0.000000e+00> : vector<256x8xf32>
    %11 = tpu.matmul %9, %10, %cst_22 {dimension_numbers = #tpu.dot_dimension_numbers<[1], [0], [0], [1], [0, 0, 1, 1], [], []>} : vector<256x128xbf16>, vector<128x8xbf16>, vector<256x8xf32> -> vector<256x8xf32>
    %c0_23 = arith.constant 0 : index
    %c0_24 = arith.constant 0 : index
    %12 = vector.load %arg3[%c0_23, %c0_24] : memref<1x8xf32, #tpu.memory_space<vmem>>, vector<1x8xf32>
    %13 = vector.broadcast %12 : vector<1x8xf32> to vector<256x8xf32>
    %14 = arith.addf %11, %13 : vector<256x8xf32>
    %cst_25 = arith.constant 0.000000e+00 : f32
    %15 = vector.broadcast %cst_25 : f32 to vector<256x8xf32>
    %16 = arith.maximumf %14, %15 : vector<256x8xf32>
    %17 = vector.shape_cast %16 : vector<256x8xf32> to vector<1x256x8xf32>
    %c0_26 = arith.constant 0 : index
    %c0_27 = arith.constant 0 : index
    %c0_28 = arith.constant 0 : index
    %18 = vector.load %arg8[%c0_26, %c0_27, %c0_28] : memref<1x256x8xf32, #tpu.memory_space<vmem>>, vector<1x256x8xf32>
    tpu.vector_store %arg8[%c0_26, %c0_27, %c0_28], %17 {strides = array<i32>} : memref<1x256x8xf32, #tpu.memory_space<vmem>>, vector<1x256x8xf32>,
    %19 = vector.shape_cast %16 : vector<256x8xf32> to vector<1x16x16x8xf32>
    %20 = arith.truncf %19 : vector<1x16x16x8xf32> to vector<1x16x16x8xbf16>
    %c0_29 = arith.constant 0 : index
    %c1 = arith.constant 1 : index
    %c1_30 = arith.constant 1 : index
    %c0_31 = arith.constant 0 : index
    %21 = vector.load %arg11[%c0_29, %c1, %c1_30, %c0_31] : memref<1x18x18x8xbf16, #tpu.memory_space<vmem>>, vector<1x16x16x8xbf16>
    tpu.vector_store %arg11[%c0_29, %c1, %c1_30, %c0_31], %20 {strides = array<i32>} : memref<1x18x18x8xbf16, #tpu.memory_space<vmem>>, vector<1x16x16x8xbf16>,
    %c0_32 = arith.constant 0 : index
    %c0_33 = arith.constant 0 : index
    %c0_34 = arith.constant 0 : index
    %c0_35 = arith.constant 0 : index
    %22 = vector.load %arg11[%c0_32, %c0_33, %c0_34, %c0_35] : memref<1x18x18x8xbf16, #tpu.memory_space<vmem>>, vector<1x16x16x8xbf16>
    %23 = vector.shape_cast %22 : vector<1x16x16x8xbf16> to vector<256x8xbf16>
    %c0_36 = arith.constant 0 : index
    %c0_37 = arith.constant 0 : index
    %24 = vector.load %arg12[%c0_36, %c0_37] : memref<256x128xbf16, #tpu.memory_space<vmem>>, vector<256x8xbf16>
    tpu.vector_store %arg12[%c0_36, %c0_37], %23 {strides = array<i32>} : memref<256x128xbf16, #tpu.memory_space<vmem>>, vector<256x8xbf16>,
    %c0_38 = arith.constant 0 : index
    %c0_39 = arith.constant 0 : index
    %c1_40 = arith.constant 1 : index
    %c0_41 = arith.constant 0 : index
    %25 = vector.load %arg11[%c0_38, %c0_39, %c1_40, %c0_41] : memref<1x18x18x8xbf16, #tpu.memory_space<vmem>>, vector<1x16x16x8xbf16>
    %26 = vector.shape_cast %25 : vector<1x16x16x8xbf16> to vector<256x8xbf16>
    %c0_42 = arith.constant 0 : index
    %c8 = arith.constant 8 : index
    %27 = vector.load %arg12[%c0_42, %c8] : memref<256x128xbf16, #tpu.memory_space<vmem>>, vector<256x8xbf16>
    tpu.vector_store %arg12[%c0_42, %c8], %26 {strides = array<i32>} : memref<256x128xbf16, #tpu.memory_space<vmem>>, vector<256x8xbf16>,
    %c0_43 = arith.constant 0 : index
    %c0_44 = arith.constant 0 : index
    %c2 = arith.constant 2 : index
    %c0_45 = arith.constant 0 : index
    %28 = vector.load %arg11[%c0_43, %c0_44, %c2, %c0_45] : memref<1x18x18x8xbf16, #tpu.memory_space<vmem>>, vector<1x16x16x8xbf16>
    %29 = vector.shape_cast %28 : vector<1x16x16x8xbf16> to vector<256x8xbf16>
    %c0_46 = arith.constant 0 : index
    %c16 = arith.constant 16 : index
    %30 = vector.load %arg12[%c0_46, %c16] : memref<256x128xbf16, #tpu.memory_space<vmem>>, vector<256x8xbf16>
    tpu.vector_store %arg12[%c0_46, %c16], %29 {strides = array<i32>} : memref<256x128xbf16, #tpu.memory_space<vmem>>, vector<256x8xbf16>,
    %c0_47 = arith.constant 0 : index
    %c1_48 = arith.constant 1 : index
    %c0_49 = arith.constant 0 : index
    %c0_50 = arith.constant 0 : index
    %31 = vector.load %arg11[%c0_47, %c1_48, %c0_49, %c0_50] : memref<1x18x18x8xbf16, #tpu.memory_space<vmem>>, vector<1x16x16x8xbf16>
    %32 = vector.shape_cast %31 : vector<1x16x16x8xbf16> to vector<256x8xbf16>
    %c0_51 = arith.constant 0 : index
    %c24 = arith.constant 24 : index
    %33 = vector.load %arg12[%c0_51, %c24] : memref<256x128xbf16, #tpu.memory_space<vmem>>, vector<256x8xbf16>
    tpu.vector_store %arg12[%c0_51, %c24], %32 {strides = array<i32>} : memref<256x128xbf16, #tpu.memory_space<vmem>>, vector<256x8xbf16>,
    %c0_52 = arith.constant 0 : index
    %c1_53 = arith.constant 1 : index
    %c1_54 = arith.constant 1 : index
    %c0_55 = arith.constant 0 : index
    %34 = vector.load %arg11[%c0_52, %c1_53, %c1_54, %c0_55] : memref<1x18x18x8xbf16, #tpu.memory_space<vmem>>, vector<1x16x16x8xbf16>
    %35 = vector.shape_cast %34 : vector<1x16x16x8xbf16> to vector<256x8xbf16>
    %c0_56 = arith.constant 0 : index
    %c32 = arith.constant 32 : index
    %36 = vector.load %arg12[%c0_56, %c32] : memref<256x128xbf16, #tpu.memory_space<vmem>>, vector<256x8xbf16>
    tpu.vector_store %arg12[%c0_56, %c32], %35 {strides = array<i32>} : memref<256x128xbf16, #tpu.memory_space<vmem>>, vector<256x8xbf16>,
    %c0_57 = arith.constant 0 : index
    %c1_58 = arith.constant 1 : index
    %c2_59 = arith.constant 2 : index
    %c0_60 = arith.constant 0 : index
    %37 = vector.load %arg11[%c0_57, %c1_58, %c2_59, %c0_60] : memref<1x18x18x8xbf16, #tpu.memory_space<vmem>>, vector<1x16x16x8xbf16>
    %38 = vector.shape_cast %37 : vector<1x16x16x8xbf16> to vector<256x8xbf16>
    %c0_61 = arith.constant 0 : index
    %c40 = arith.constant 40 : index
    %39 = vector.load %arg12[%c0_61, %c40] : memref<256x128xbf16, #tpu.memory_space<vmem>>, vector<256x8xbf16>
    tpu.vector_store %arg12[%c0_61, %c40], %38 {strides = array<i32>} : memref<256x128xbf16, #tpu.memory_space<vmem>>, vector<256x8xbf16>,
    %c0_62 = arith.constant 0 : index
    %c2_63 = arith.constant 2 : index
    %c0_64 = arith.constant 0 : index
    %c0_65 = arith.constant 0 : index
    %40 = vector.load %arg11[%c0_62, %c2_63, %c0_64, %c0_65] : memref<1x18x18x8xbf16, #tpu.memory_space<vmem>>, vector<1x16x16x8xbf16>
    %41 = vector.shape_cast %40 : vector<1x16x16x8xbf16> to vector<256x8xbf16>
    %c0_66 = arith.constant 0 : index
    %c48 = arith.constant 48 : index
    %42 = vector.load %arg12[%c0_66, %c48] : memref<256x128xbf16, #tpu.memory_space<vmem>>, vector<256x8xbf16>
    tpu.vector_store %arg12[%c0_66, %c48], %41 {strides = array<i32>} : memref<256x128xbf16, #tpu.memory_space<vmem>>, vector<256x8xbf16>,
    %c0_67 = arith.constant 0 : index
    %c2_68 = arith.constant 2 : index
    %c1_69 = arith.constant 1 : index
    %c0_70 = arith.constant 0 : index
    %43 = vector.load %arg11[%c0_67, %c2_68, %c1_69, %c0_70] : memref<1x18x18x8xbf16, #tpu.memory_space<vmem>>, vector<1x16x16x8xbf16>
    %44 = vector.shape_cast %43 : vector<1x16x16x8xbf16> to vector<256x8xbf16>
    %c0_71 = arith.constant 0 : index
    %c56 = arith.constant 56 : index
    %45 = vector.load %arg12[%c0_71, %c56] : memref<256x128xbf16, #tpu.memory_space<vmem>>, vector<256x8xbf16>
    tpu.vector_store %arg12[%c0_71, %c56], %44 {strides = array<i32>} : memref<256x128xbf16, #tpu.memory_space<vmem>>, vector<256x8xbf16>,
    %c0_72 = arith.constant 0 : index
    %c2_73 = arith.constant 2 : index
    %c2_74 = arith.constant 2 : index
    %c0_75 = arith.constant 0 : index
    %46 = vector.load %arg11[%c0_72, %c2_73, %c2_74, %c0_75] : memref<1x18x18x8xbf16, #tpu.memory_space<vmem>>, vector<1x16x16x8xbf16>
    %47 = vector.shape_cast %46 : vector<1x16x16x8xbf16> to vector<256x8xbf16>
    %c0_76 = arith.constant 0 : index
    %c64 = arith.constant 64 : index
    %48 = vector.load %arg12[%c0_76, %c64] : memref<256x128xbf16, #tpu.memory_space<vmem>>, vector<256x8xbf16>
    tpu.vector_store %arg12[%c0_76, %c64], %47 {strides = array<i32>} : memref<256x128xbf16, #tpu.memory_space<vmem>>, vector<256x8xbf16>,
    %c0_77 = arith.constant 0 : index
    %c0_78 = arith.constant 0 : index
    %49 = vector.load %arg12[%c0_77, %c0_78] : memref<256x128xbf16, #tpu.memory_space<vmem>>, vector<256x128xbf16>
    %c0_79 = arith.constant 0 : index
    %c0_80 = arith.constant 0 : index
    %50 = vector.load %arg4[%c0_79, %c0_80] : memref<128x16xbf16, #tpu.memory_space<vmem>>, vector<128x16xbf16>
    %cst_81 = arith.constant dense<0.000000e+00> : vector<256x16xf32>
    %51 = tpu.matmul %49, %50, %cst_81 {dimension_numbers = #tpu.dot_dimension_numbers<[1], [0], [0], [1], [0, 0, 1, 1], [], []>} : vector<256x128xbf16>, vector<128x16xbf16>, vector<256x16xf32> -> vector<256x16xf32>
    %c0_82 = arith.constant 0 : index
    %c0_83 = arith.constant 0 : index
    %52 = vector.load %arg5[%c0_82, %c0_83] : memref<1x16xf32, #tpu.memory_space<vmem>>, vector<1x16xf32>
    %53 = vector.broadcast %52 : vector<1x16xf32> to vector<256x16xf32>
    %54 = arith.addf %51, %53 : vector<256x16xf32>
    %cst_84 = arith.constant 0.000000e+00 : f32
    %55 = vector.broadcast %cst_84 : f32 to vector<256x16xf32>
    %56 = arith.maximumf %54, %55 : vector<256x16xf32>
    %57 = vector.shape_cast %56 : vector<256x16xf32> to vector<1x256x16xf32>
    %c0_85 = arith.constant 0 : index
    %c0_86 = arith.constant 0 : index
    %c0_87 = arith.constant 0 : index
    %58 = vector.load %arg9[%c0_85, %c0_86, %c0_87] : memref<1x256x16xf32, #tpu.memory_space<vmem>>, vector<1x256x16xf32>
    tpu.vector_store %arg9[%c0_85, %c0_86, %c0_87], %57 {strides = array<i32>} : memref<1x256x16xf32, #tpu.memory_space<vmem>>, vector<1x256x16xf32>,
    %59 = arith.truncf %56 : vector<256x16xf32> to vector<256x16xbf16>
    %c0_88 = arith.constant 0 : index
    %c0_89 = arith.constant 0 : index
    %60 = vector.load %arg6[%c0_88, %c0_89] : memref<16x10xbf16, #tpu.memory_space<vmem>>, vector<16x10xbf16>
    %cst_90 = arith.constant dense<0.000000e+00> : vector<256x10xf32>
    %61 = tpu.matmul %59, %60, %cst_90 {dimension_numbers = #tpu.dot_dimension_numbers<[1], [0], [0], [1], [0, 0, 1, 1], [], []>} : vector<256x16xbf16>, vector<16x10xbf16>, vector<256x10xf32> -> vector<256x10xf32>
    %cst_91 = arith.constant dense<0.000000e+00> : vector<10xf32>
    %62 = vector.multi_reduction <add>, %61, %cst_91 [0] : vector<256x10xf32> to vector<10xf32>
    %63 = vector.shape_cast %62 : vector<10xf32> to vector<1x10xf32>
    %cst_92 = arith.constant 3.906250e-03 : f32
    %64 = vector.broadcast %cst_92 : f32 to vector<1x10xf32>
    %65 = arith.mulf %63, %64 : vector<1x10xf32>
    %c0_93 = arith.constant 0 : index
    %c0_94 = arith.constant 0 : index
    %66 = vector.load %arg7[%c0_93, %c0_94] : memref<1x10xf32, #tpu.memory_space<vmem>>, vector<1x10xf32>
    %67 = arith.addf %65, %66 : vector<1x10xf32>
    %c0_95 = arith.constant 0 : index
    %c0_96 = arith.constant 0 : index
    %c0_97 = arith.constant 0 : index
    %68 = vector.load %arg10[%c0_95, %c0_96, %c0_97] : memref<1x1x10xf32, #tpu.memory_space<vmem>>, vector<1x1x10xf32>
    %69 = vector.shape_cast %68 : vector<1x1x10xf32> to vector<1x10xf32>
    %70 = vector.shape_cast %67 : vector<1x10xf32> to vector<1x1x10xf32>
    tpu.vector_store %arg10[%c0_95, %c0_96, %c0_97], %70 {strides = array<i32>} : memref<1x1x10xf32, #tpu.memory_space<vmem>>, vector<1x1x10xf32>,
    return
  }
  func.func @transform_0(%arg0: i32) -> (i32, i32, i32) {
    %c0_i32 = arith.constant 0 : i32
    %c0_i32_0 = arith.constant 0 : i32
    %c0_i32_1 = arith.constant 0 : i32
    return %arg0, %c0_i32, %c0_i32_0 : i32, i32, i32
  }
  func.func @transform_1(%arg0: i32) -> (i32, i32) {
    %c0_i32 = arith.constant 0 : i32
    %c0_i32_0 = arith.constant 0 : i32
    %c0_i32_1 = arith.constant 0 : i32
    return %c0_i32, %c0_i32_0 : i32, i32
  }
  func.func @transform_2(%arg0: i32) -> (i32, i32) {
    %c0_i32 = arith.constant 0 : i32
    %c0_i32_0 = arith.constant 0 : i32
    %c0_i32_1 = arith.constant 0 : i32
    return %c0_i32, %c0_i32_0 : i32, i32
  }
  func.func @transform_3(%arg0: i32) -> (i32, i32) {
    %c0_i32 = arith.constant 0 : i32
    %c0_i32_0 = arith.constant 0 : i32
    %c0_i32_1 = arith.constant 0 : i32
    return %c0_i32, %c0_i32_0 : i32, i32
  }
  func.func @transform_4(%arg0: i32) -> (i32, i32) {
    %c0_i32 = arith.constant 0 : i32
    %c0_i32_0 = arith.constant 0 : i32
    %c0_i32_1 = arith.constant 0 : i32
    return %c0_i32, %c0_i32_0 : i32, i32
  }
  func.func @transform_5(%arg0: i32) -> (i32, i32) {
    %c0_i32 = arith.constant 0 : i32
    %c0_i32_0 = arith.constant 0 : i32
    %c0_i32_1 = arith.constant 0 : i32
    return %c0_i32, %c0_i32_0 : i32, i32
  }
  func.func @transform_6(%arg0: i32) -> (i32, i32) {
    %c0_i32 = arith.constant 0 : i32
    %c0_i32_0 = arith.constant 0 : i32
    %c0_i32_1 = arith.constant 0 : i32
    return %c0_i32, %c0_i32_0 : i32, i32
  }
  func.func @transform_7(%arg0: i32) -> (i32, i32, i32) {
    %c0_i32 = arith.constant 0 : i32
    %c0_i32_0 = arith.constant 0 : i32
    %c0_i32_1 = arith.constant 0 : i32
    return %arg0, %c0_i32, %c0_i32_0 : i32, i32, i32
  }
  func.func @transform_8(%arg0: i32) -> (i32, i32, i32) {
    %c0_i32 = arith.constant 0 : i32
    %c0_i32_0 = arith.constant 0 : i32
    %c0_i32_1 = arith.constant 0 : i32
    return %arg0, %c0_i32, %c0_i32_0 : i32, i32, i32
  }
  func.func @transform_9(%arg0: i32) -> (i32, i32, i32) {
    %c0_i32 = arith.constant 0 : i32
    %c0_i32_0 = arith.constant 0 : i32
    %c0_i32_1 = arith.constant 0 : i32
    return %arg0, %c0_i32, %c0_i32_0 : i32, i32, i32
  }
}

</mosaic_0001>

<llo_original>
// kernel: feature_extractor_forward.1
$region0: #{feature_extractor_forward.1}
  #allocation0 [shape = 'u32[]', space=smem, size = 0x4, offset = 0x4, fixed_abs, tag = 'smem constant byte address 0x4 - core index']
  #allocation1 [shape = 'u32[144,128]{1,0:T(1,128)}', space=vmem, size = 0x12000, scoped, tag = 'internal scratch']
  #allocation2 [shape = 'bf16[1,18,18,8]{3,2,1,0:T(8,128)(2,1)}', space=vmem, size = 0x1b000, scoped, tag = 'scratch operand']
  #allocation3 [shape = 'bf16[256,128]{1,0:T(16,128)(2,1)}', space=vmem, size = 0x10000, scoped, tag = 'scratch operand']
  %s0 = inlined_call_operand.vmem [shape: bf16[2,256,128], index: 0, kind: input, shape index: {}]
  %s1 = inlined_call_operand.vmem [shape: bf16[128,8], index: 1, kind: input, shape index: {}]
  %s2 = inlined_call_operand.vmem [shape: f32[1,8], index: 2, kind: input, shape index: {}]
  %s3 = inlined_call_operand.vmem [shape: bf16[128,16], index: 3, kind: input, shape index: {}]
  %s4 = inlined_call_operand.vmem [shape: f32[1,16], index: 4, kind: input, shape index: {}]
  %s5 = inlined_call_operand.vmem [shape: bf16[16,10], index: 5, kind: input, shape index: {}]
  %s6 = inlined_call_operand.vmem [shape: f32[1,10], index: 6, kind: input, shape index: {}]
  %s7 = inlined_call_operand.vmem [shape: f32[2,256,8], index: 7, kind: output, shape index: {0}]
  %s8 = inlined_call_operand.vmem [shape: f32[2,256,16], index: 8, kind: output, shape index: {1}]
  %s9 = inlined_call_operand.hbm [shape: f32[2,1,10], index: 9, kind: output, shape index: {2}]
  %10 = xla_tuple %s7, %s8, %s9
  %s11 = sld [smem:[#allocation0]]
  $region77: #{feature_extractor_forward.1} parent=0
    _
  %s13 = ssub.s32 1, %s11
  %s14 = scalar_select 0, %s13, %s11
  $region1: #{feature_extractor_forward.1} parent=0
    #allocation4 [shape = 'u8[1024]{0}', space=vmem, size = 0x400, scoped, tag = 'output window, operand 2']
    #allocation5 [shape = 's32[2]{0}', space=sflag, size = 0x8, scoped, tag = 'scoped memory for feature_extractor_forward.1']
    %15 = vsyncpa [#allocation5], 0
    %s16 = scalar_lea.sflag [#allocation5], 1
    %17 = vsyncpa %s16, 0
    loop: start=0, step=1, limit=4
    $region2: #{feature_extractor_forward.1} parent=1 // loop_pre_header
      _
    $region3: #{feature_extractor_forward.1} parent=1 // loop_header
      %s19 = sphi 0, %s23
      %p20 = scmp.ge.s32.totalorder %s19, 4
      %s29 = sphi 0, %s31
      %s32 = sphi 0, %s29
      %s33 = sphi 0, %s32
      %s49 = sphi 0, %s33
      %s53 = sphi 0, %s53
      %s55 = sphi 0, %s53
      %s56 = sphi 0, %s55
      %s70 = sphi 0, %s56
      %s74 = sphi 0, %s74
      %s76 = sphi 0, %s74
      %s77 = sphi 0, %s76
      %s91 = sphi 0, %s77
      %s95 = sphi 0, %s95
      %s97 = sphi 0, %s95
      %s98 = sphi 0, %s97
      %s112 = sphi 0, %s98
      %s116 = sphi 0, %s116
      %s118 = sphi 0, %s116
      %s119 = sphi 0, %s118
      %s133 = sphi 0, %s119
      %s137 = sphi 0, %s137
      %s139 = sphi 0, %s137
      %s140 = sphi 0, %s139
      %s154 = sphi 0, %s140
      %s158 = sphi 0, %s158
      %s160 = sphi 0, %s158
      %s161 = sphi 0, %s160
      %s175 = sphi 0, %s161
      %s181 = sphi 0, %s183
      %s184 = sphi 0, %s181
      %s185 = sphi 0, %s184
      %s201 = sphi 0, %s185
      %s207 = sphi 0, %s209
      %s210 = sphi 0, %s207
      %s211 = sphi 0, %s210
      %s227 = sphi 0, %s211
      %s233 = sphi 0, %s235
      %s236 = sphi 0, %s233
      %s237 = sphi 0, %s236
      %s253 = sphi 0, %s237
    $region4: #{feature_extractor_forward.1} parent=1 // loop_header_branch
      %22 = sbr.rel (%p20) target = $region8
    $region5: #{feature_extractor_forward.1} parent=1 // loop_body
      %s24 = ssub.s32 %s19, 1
      %s25 = ssub.s32 %s19, 2
      %s26 = sadd.s32 %s19, 1
      %s27 = ssub.s32 %s19, %s26
      %p28 = scmp.eq.s32.totalorder %s27, 0
      %s30 = sadd.s32 %s29, 1
      %s31 = scalar_select %p28, %s29, %s30
      %p34 = pneg %p28
      %p35 = scmp.eq.s32.totalorder %s19, 1
      %p36 = por %p34, %p35
      %p37 = scmp.ne.s32.totalorder %s29, %s32
      %p38 = scmp.eq.s32.totalorder %s19, 0
      %p39 = por %p37, %p38
      %p40 = scmp.ne.s32.totalorder %s29, %s32
      %p41 = scmp.eq.s32.totalorder %s24, 1
      %p42 = por %p40, %p41
      %p43 = scmp.ne.s32.totalorder %s32, %s33
      %p44 = scmp.eq.s32.totalorder %s24, 0
      %p45 = por %p43, %p44
      %p46 = scmp.ne.s32.totalorder %s32, %s33
      %p47 = scmp.eq.s32.totalorder %s25, 1
      %p48 = por %p46, %p47
      %p50 = scmp.ne.s32.totalorder %s33, %s49
      %p51 = scmp.eq.s32.totalorder %s25, 0
      %p52 = por %p50, %p51
      %s54 = sadd.s32 %s53, 1
      %p57 = scmp.eq.s32.totalorder %s19, 1
      %p58 = scmp.ne.s32.totalorder %s53, %s55
      %p59 = scmp.eq.s32.totalorder %s19, 0
      %p60 = por %p58, %p59
      %p61 = scmp.ne.s32.totalorder %s53, %s55
      %p62 = scmp.eq.s32.totalorder %s24, 1
      %p63 = por %p61, %p62
      %p64 = scmp.ne.s32.totalorder %s55, %s56
      %p65 = scmp.eq.s32.totalorder %s24, 0
      %p66 = por %p64, %p65
      %p67 = scmp.ne.s32.totalorder %s55, %s56
      %p68 = scmp.eq.s32.totalorder %s25, 1
      %p69 = por %p67, %p68
      %p71 = scmp.ne.s32.totalorder %s56, %s70
      %p72 = scmp.eq.s32.totalorder %s25, 0
      %p73 = por %p71, %p72
      %s75 = sadd.s32 %s74, 1
      %p78 = scmp.eq.s32.totalorder %s19, 1
      %p79 = scmp.ne.s32.totalorder %s74, %s76
      %p80 = scmp.eq.s32.totalorder %s19, 0
      %p81 = por %p79, %p80
      %p82 = scmp.ne.s32.totalorder %s74, %s76
      %p83 = scmp.eq.s32.totalorder %s24, 1
      %p84 = por %p82, %p83
      %p85 = scmp.ne.s32.totalorder %s76, %s77
      %p86 = scmp.eq.s32.totalorder %s24, 0
      %p87 = por %p85, %p86
      %p88 = scmp.ne.s32.totalorder %s76, %s77
      %p89 = scmp.eq.s32.totalorder %s25, 1
      %p90 = por %p88, %p89
      %p92 = scmp.ne.s32.totalorder %s77, %s91
      %p93 = scmp.eq.s32.totalorder %s25, 0
      %p94 = por %p92, %p93
      %s96 = sadd.s32 %s95, 1
      %p99 = scmp.eq.s32.totalorder %s19, 1
      %p100 = scmp.ne.s32.totalorder %s95, %s97
      %p101 = scmp.eq.s32.totalorder %s19, 0
      %p102 = por %p100, %p101
      %p103 = scmp.ne.s32.totalorder %s95, %s97
      %p104 = scmp.eq.s32.totalorder %s24, 1
      %p105 = por %p103, %p104
      %p106 = scmp.ne.s32.totalorder %s97, %s98
      %p107 = scmp.eq.s32.totalorder %s24, 0
      %p108 = por %p106, %p107
      %p109 = scmp.ne.s32.totalorder %s97, %s98
      %p110 = scmp.eq.s32.totalorder %s25, 1
      %p111 = por %p109, %p110
      %p113 = scmp.ne.s32.totalorder %s98, %s112
      %p114 = scmp.eq.s32.totalorder %s25, 0
      %p115 = por %p113, %p114
      %s117 = sadd.s32 %s116, 1
      %p120 = scmp.eq.s32.totalorder %s19, 1
      %p121 = scmp.ne.s32.totalorder %s116, %s118
      %p122 = scmp.eq.s32.totalorder %s19, 0
      %p123 = por %p121, %p122
      %p124 = scmp.ne.s32.totalorder %s116, %s118
      %p125 = scmp.eq.s32.totalorder %s24, 1
      %p126 = por %p124, %p125
      %p127 = scmp.ne.s32.totalorder %s118, %s119
      %p128 = scmp.eq.s32.totalorder %s24, 0
      %p129 = por %p127, %p128
      %p130 = scmp.ne.s32.totalorder %s118, %s119
      %p131 = scmp.eq.s32.totalorder %s25, 1
      %p132 = por %p130, %p131
      %p134 = scmp.ne.s32.totalorder %s119, %s133
      %p135 = scmp.eq.s32.totalorder %s25, 0
      %p136 = por %p134, %p135
      %s138 = sadd.s32 %s137, 1
      %p141 = scmp.eq.s32.totalorder %s19, 1
      %p142 = scmp.ne.s32.totalorder %s137, %s139
      %p143 = scmp.eq.s32.totalorder %s19, 0
      %p144 = por %p142, %p143
      %p145 = scmp.ne.s32.totalorder %s137, %s139
      %p146 = scmp.eq.s32.totalorder %s24, 1
      %p147 = por %p145, %p146
      %p148 = scmp.ne.s32.totalorder %s139, %s140
      %p149 = scmp.eq.s32.totalorder %s24, 0
      %p150 = por %p148, %p149
      %p151 = scmp.ne.s32.totalorder %s139, %s140
      %p152 = scmp.eq.s32.totalorder %s25, 1
      %p153 = por %p151, %p152
      %p155 = scmp.ne.s32.totalorder %s140, %s154
      %p156 = scmp.eq.s32.totalorder %s25, 0
      %p157 = por %p155, %p156
      %s159 = sadd.s32 %s158, 1
      %p162 = scmp.eq.s32.totalorder %s19, 1
      %p163 = scmp.ne.s32.totalorder %s158, %s160
      %p164 = scmp.eq.s32.totalorder %s19, 0
      %p165 = por %p163, %p164
      %p166 = scmp.ne.s32.totalorder %s158, %s160
      %p167 = scmp.eq.s32.totalorder %s24, 1
      %p168 = por %p166, %p167
      %p169 = scmp.ne.s32.totalorder %s160, %s161
      %p170 = scmp.eq.s32.totalorder %s24, 0
      %p171 = por %p169, %p170
      %p172 = scmp.ne.s32.totalorder %s160, %s161
      %p173 = scmp.eq.s32.totalorder %s25, 1
      %p174 = por %p172, %p173
      %p176 = scmp.ne.s32.totalorder %s161, %s175
      %p177 = scmp.eq.s32.totalorder %s25, 0
      %p178 = por %p176, %p177
      %s179 = ssub.s32 %s19, %s26
      %p180 = scmp.eq.s32.totalorder %s179, 0
      %s182 = sadd.s32 %s181, 1
      %s183 = scalar_select %p180, %s181, %s182
      %p186 = pneg %p180
      %p187 = scmp.eq.s32.totalorder %s19, 1
      %p188 = por %p186, %p187
      %p189 = scmp.ne.s32.totalorder %s181, %s184
      %p190 = scmp.eq.s32.totalorder %s19, 0
      %p191 = por %p189, %p190
      %p192 = scmp.ne.s32.totalorder %s181, %s184
      %p193 = scmp.eq.s32.totalorder %s24, 1
      %p194 = por %p192, %p193
      %p195 = scmp.ne.s32.totalorder %s184, %s185
      %p196 = scmp.eq.s32.totalorder %s24, 0
      %p197 = por %p195, %p196
      %p198 = scmp.ne.s32.totalorder %s184, %s185
      %p199 = scmp.eq.s32.totalorder %s25, 1
      %p200 = por %p198, %p199
      %p202 = scmp.ne.s32.totalorder %s185, %s201
      %p203 = scmp.eq.s32.totalorder %s25, 0
      %p204 = por %p202, %p203
      %s205 = ssub.s32 %s19, %s26
      %p206 = scmp.eq.s32.totalorder %s205, 0
      %s208 = sadd.s32 %s207, 1
      %s209 = scalar_select %p206, %s207, %s208
      %p212 = pneg %p206
      %p213 = scmp.eq.s32.totalorder %s19, 1
      %p214 = por %p212, %p213
      %p215 = scmp.ne.s32.totalorder %s207, %s210
      %p216 = scmp.eq.s32.totalorder %s19, 0
      %p217 = por %p215, %p216
      %p218 = scmp.ne.s32.totalorder %s207, %s210
      %p219 = scmp.eq.s32.totalorder %s24, 1
      %p220 = por %p218, %p219
      %p221 = scmp.ne.s32.totalorder %s210, %s211
      %p222 = scmp.eq.s32.totalorder %s24, 0
      %p223 = por %p221, %p222
      %p224 = scmp.ne.s32.totalorder %s210, %s211
      %p225 = scmp.eq.s32.totalorder %s25, 1
      %p226 = por %p224, %p225
      %p228 = scmp.ne.s32.totalorder %s211, %s227
      %p229 = scmp.eq.s32.totalorder %s25, 0
      %p230 = por %p228, %p229
      %s231 = ssub.s32 %s19, %s26
      %p232 = scmp.eq.s32.totalorder %s231, 0
      %s234 = sadd.s32 %s233, 1
      %s235 = scalar_select %p232, %s233, %s234
      %p238 = pneg %p232
      %p239 = scmp.eq.s32.totalorder %s19, 1
      %p240 = por %p238, %p239
      %p241 = scmp.ne.s32.totalorder %s233, %s236
      %p242 = scmp.eq.s32.totalorder %s19, 0
      %p243 = por %p241, %p242
      %p244 = scmp.ne.s32.totalorder %s233, %s236
      %p245 = scmp.eq.s32.totalorder %s24, 1
      %p246 = por %p244, %p245
      %p247 = scmp.ne.s32.totalorder %s236, %s237
      %p248 = scmp.eq.s32.totalorder %s24, 0
      %p249 = por %p247, %p248
      %p250 = scmp.ne.s32.totalorder %s236, %s237
      %p251 = scmp.eq.s32.totalorder %s25, 1
      %p252 = por %p250, %p251
      %p254 = scmp.ne.s32.totalorder %s237, %s253
      %p255 = scmp.eq.s32.totalorder %s25, 0
      %p256 = por %p254, %p255
      %p257 = scmp.le.s32.totalorder 1, %s19
      %p258 = scmp.lt.s32.totalorder %s19, 3
      %p259 = pnand %p257, %p258
      %p260 = pneg %p259
      // Predicated region
      $region9: #{feature_extractor_forward.1} parent=5 // pred_check
        _
      $region10: #{feature_extractor_forward.1} parent=5 // pred_check_branch
        %262 = sbr.rel (%p259) target = $region12
      $region11: #{feature_extractor_forward.1} parent=5 // pred_region
        %s263 = ssub.s32 %s19, 1
        // Predicated region
        $region13: #{feature_extractor_forward.1} parent=11 // pred_check
          %p264 = pneg %p66
        $region14: #{feature_extractor_forward.1} parent=11 // pred_check_branch
          %266 = sbr.rel (%p264) target = $region16
        $region15: #{feature_extractor_forward.1} parent=11 // pred_region
          _
        $region16: #{feature_extractor_forward.1} parent=11 // pred_fallthru
          _
        // Predicated region
        $region17: #{feature_extractor_forward.1} parent=11 // pred_check
          %p267 = pneg %p87
        $region18: #{feature_extractor_forward.1} parent=11 // pred_check_branch
          %269 = sbr.rel (%p267) target = $region20
        $region19: #{feature_extractor_forward.1} parent=11 // pred_region
          _
        $region20: #{feature_extractor_forward.1} parent=11 // pred_fallthru
          _
        // Predicated region
        $region21: #{feature_extractor_forward.1} parent=11 // pred_check
          %p270 = pneg %p108
        $region22: #{feature_extractor_forward.1} parent=11 // pred_check_branch
          %272 = sbr.rel (%p270) target = $region24
        $region23: #{feature_extractor_forward.1} parent=11 // pred_region
          _
        $region24: #{feature_extractor_forward.1} parent=11 // pred_fallthru
          _
        // Predicated region
        $region25: #{feature_extractor_forward.1} parent=11 // pred_check
          %p273 = pneg %p129
        $region26: #{feature_extractor_forward.1} parent=11 // pred_check_branch
          %275 = sbr.rel (%p273) target = $region28
        $region27: #{feature_extractor_forward.1} parent=11 // pred_region
          _
        $region28: #{feature_extractor_forward.1} parent=11 // pred_fallthru
          _
        // Predicated region
        $region29: #{feature_extractor_forward.1} parent=11 // pred_check
          %p276 = pneg %p150
        $region30: #{feature_extractor_forward.1} parent=11 // pred_check_branch
          %278 = sbr.rel (%p276) target = $region32
        $region31: #{feature_extractor_forward.1} parent=11 // pred_region
          _
        $region32: #{feature_extractor_forward.1} parent=11 // pred_fallthru
          _
        // Predicated region
        $region33: #{feature_extractor_forward.1} parent=11 // pred_check
          %p279 = pneg %p171
        $region34: #{feature_extractor_forward.1} parent=11 // pred_check_branch
          %281 = sbr.rel (%p279) target = $region36
        $region35: #{feature_extractor_forward.1} parent=11 // pred_region
          _
        $region36: #{feature_extractor_forward.1} parent=11 // pred_fallthru
          _
      $region12: #{feature_extractor_forward.1} parent=5 // pred_fallthru
        _
      %p282 = scmp.lt.s32.totalorder %s19, 2
      // Predicated region
      $region37: #{feature_extractor_forward.1} parent=5 // pred_check
        %p283 = pneg %p282
      $region38: #{feature_extractor_forward.1} parent=5 // pred_check_branch
        %285 = sbr.rel (%p283) target = $region40
      $region39: #{feature_extractor_forward.1} parent=5 // pred_region
        // Predicated region
        $region41: #{feature_extractor_forward.1} parent=39 // pred_check
          %p286 = pneg %p39
        $region42: #{feature_extractor_forward.1} parent=39 // pred_check_branch
          %288 = sbr.rel (%p286) target = $region44
        $region43: #{feature_extractor_forward.1} parent=39 // pred_region
          %p289 = scmp.lt.s32.totalorder %s19, 1
          %s290 = scalar_select %p289, %s19, 1
          %s291 = smul.addr %s290, 32
          %s292 = smul.addr %s291, 4
          %s293 = scalar_lea.vmem %s0, %s292
        $region44: #{feature_extractor_forward.1} parent=39 // pred_fallthru
          _
      $region40: #{feature_extractor_forward.1} parent=5 // pred_fallthru
        _
      %p294 = scmp.le.s32.totalorder 1, %s19
      %p295 = scmp.lt.s32.totalorder %s19, 3
      %p296 = pnand %p294, %p295
      %p297 = pneg %p296
      // Predicated region
      $region45: #{feature_extractor_forward.1} parent=5 // pred_check
        _
      $region46: #{feature_extractor_forward.1} parent=5 // pred_check_branch
        %299 = sbr.rel (%p296) target = $region48
      $region47: #{feature_extractor_forward.1} parent=5 // pred_region
        %s300 = ssub.s32 %s19, 1
        %p301 = scmp.lt.s32.totalorder %s24, 1
        %s302 = scalar_select %p301, %s24, 1
        %s303 = smul.addr %s302, 32
        %s304 = smul.addr %s303, 4
        %s305 = scalar_lea.vmem %s0, %s304
        %p306 = pneg %p45
        %p307 = pneg %p42
        %p308 = pneg %p66
        %p309 = pneg %p63
        %p310 = pneg %p87
        %p311 = pneg %p84
        %p312 = pneg %p108
        %p313 = pneg %p105
        %p314 = pneg %p129
        %p315 = pneg %p126
        %p316 = pneg %p150
        %p317 = pneg %p147
        %p318 = pneg %p171
        %p319 = pneg %p168
        %p320 = pneg %p197
        %p321 = pneg %p194
        %p322 = scmp.lt.s32.totalorder %s24, 1
        %s323 = scalar_select %p322, %s24, 1
        %s324 = smul.addr %s323, 32
        %s325 = smul.addr %s324, 8
        %s326 = scalar_lea.vmem %s7, %s325
        %p327 = pneg %p223
        %p328 = pneg %p220
        %p329 = scmp.lt.s32.totalorder %s24, 1
        %s330 = scalar_select %p329, %s24, 1
        %s331 = smul.addr %s330, 32
        %s332 = smul.addr %s331, 8
        %s333 = scalar_lea.vmem %s8, %s332
        %p334 = pneg %p249
        %p335 = pneg %p246
        %s336 = sand.u32 %s236, 1
        %s337 = scalar_lea.sflag [#allocation5], %s336
        %s338 = sand.u32 %s236, 1
        %s339 = scalar_lea.vmem [#allocation4], %s338
        %p340 = scmp.lt.s32.totalorder %s24, 1
        %s341 = scalar_select %p340, %s24, 1
        %s342 = smul.addr %s341, 32
        %s343 = smul.addr %s342, 4
        %s344 = scalar_lea.vmem %s0, %s343
        %p345 = scmp.lt.s32.totalorder %s24, 1
        %s346 = scalar_select %p345, %s24, 1
        %s347 = smul.addr %s346, 32
        %s348 = smul.addr %s347, 8
        %s349 = scalar_lea.vmem %s7, %s348
        %p350 = scmp.lt.s32.totalorder %s24, 1
        %s351 = scalar_select %p350, %s24, 1
        %s352 = smul.addr %s351, 32
        %s353 = smul.addr %s352, 8
        %s354 = scalar_lea.vmem %s8, %s353
        %vm356 = vcmask 60416
        %357 = vst.msk [vmem:[#allocation2] sm:$0xf] %vm356, 0
        %358 = vst.msk [vmem:[#allocation2 + $0x4] sm:$0xf] %vm356, 0
        %vm359 = vcmask 57344
        %360 = vst.msk [vmem:[#allocation2 + $0x8] sm:$0x1] %vm359, 0
        %s361 = scalar_lea.vmem [#allocation2], 204
        %362 = vst.msk [vmem:[%s361] sm:$0xf] %vm356, 0
        %363 = vst.msk [vmem:[%s361 + $0x4] sm:$0xf] %vm356, 0
        %364 = vst.msk [vmem:[%s361 + $0x8] sm:$0x1] %vm359, 0
        %vm365 = vcmask 57344
        %vm366 = vsmask.f32 256
        %vm367 = vmand %vm365, %vm366
        %v368 = vld [vmem:[#allocation2] sm:$0x1]
        %v369 = vsel %vm367, 0, %v368
        %370 = vst [vmem:[#allocation2] sm:$0x1] %v369
        %v371 = vld [vmem:[#allocation2 + $0xc] sm:$0x1]
        %v372 = vsel %vm367, 0, %v371
        %373 = vst [vmem:[#allocation2 + $0xc] sm:$0x1] %v372
        %v374 = vld [vmem:[#allocation2 + $0x18] sm:$0x1]
        %v375 = vsel %vm367, 0, %v374
        %376 = vst [vmem:[#allocation2 + $0x18] sm:$0x1] %v375
        %v377 = vld [vmem:[#allocation2 + $0x24] sm:$0x1]
        %v378 = vsel %vm367, 0, %v377
        %379 = vst [vmem:[#allocation2 + $0x24] sm:$0x1] %v378
        %v380 = vld [vmem:[#allocation2 + $0x30] sm:$0x1]
        %v381 = vsel %vm367, 0, %v380
        %382 = vst [vmem:[#allocation2 + $0x30] sm:$0x1] %v381
        %v383 = vld [vmem:[#allocation2 + $0x3c] sm:$0x1]
        %v384 = vsel %vm367, 0, %v383
        %385 = vst [vmem:[#allocation2 + $0x3c] sm:$0x1] %v384
        %v386 = vld [vmem:[#allocation2 + $0x48] sm:$0x1]
        %v387 = vsel %vm367, 0, %v386
        %388 = vst [vmem:[#allocation2 + $0x48] sm:$0x1] %v387
        %v389 = vld [vmem:[#allocation2 + $0x54] sm:$0x1]
        %v390 = vsel %vm367, 0, %v389
        %391 = vst [vmem:[#allocation2 + $0x54] sm:$0x1] %v390
        %v392 = vld [vmem:[#allocation2 + $0x60] sm:$0x1]
        %v393 = vsel %vm367, 0, %v392
        %394 = vst [vmem:[#allocation2 + $0x60] sm:$0x1] %v393
        %v395 = vld [vmem:[#allocation2 + $0x6c] sm:$0x1]
        %v396 = vsel %vm367, 0, %v395
        %397 = vst [vmem:[#allocation2 + $0x6c] sm:$0x1] %v396
        %v398 = vld [vmem:[#allocation2 + $0x78] sm:$0x1]
        %v399 = vsel %vm367, 0, %v398
        %400 = vst [vmem:[#allocation2 + $0x78] sm:$0x1] %v399
        %v401 = vld [vmem:[#allocation2 + $0x84] sm:$0x1]
        %v402 = vsel %vm367, 0, %v401
        %403 = vst [vmem:[#allocation2 + $0x84] sm:$0x1] %v402
        %v404 = vld [vmem:[#allocation2 + $0x90] sm:$0x1]
        %v405 = vsel %vm367, 0, %v404
        %406 = vst [vmem:[#allocation2 + $0x90] sm:$0x1] %v405
        %v407 = vld [vmem:[#allocation2 + $0x9c] sm:$0x1]
        %v408 = vsel %vm367, 0, %v407
        %409 = vst [vmem:[#allocation2 + $0x9c] sm:$0x1] %v408
        %v410 = vld [vmem:[#allocation2 + $0xa8] sm:$0x1]
        %v411 = vsel %vm367, 0, %v410
        %412 = vst [vmem:[#allocation2 + $0xa8] sm:$0x1] %v411
        %v413 = vld [vmem:[#allocation2 + $0xb4] sm:$0x1]
        %v414 = vsel %vm367, 0, %v413
        %415 = vst [vmem:[#allocation2 + $0xb4] sm:$0x1] %v414
        %v416 = vld [vmem:[#allocation2 + $0xc0] sm:$0x1]
        %v417 = vsel %vm367, 0, %v416
        %418 = vst [vmem:[#allocation2 + $0xc0] sm:$0x1] %v417
        %v419 = vld [vmem:[#allocation2 + $0xcc] sm:$0x1]
        %v420 = vsel %vm367, 0, %v419
        %421 = vst [vmem:[#allocation2 + $0xcc] sm:$0x1] %v420
        %vm422 = vsmask.f32 7938
        %vm423 = vmand %vm365, %vm422
        %v424 = vld [vmem:[#allocation2 + $0x8] sm:$0x1]
        %v425 = vsel %vm423, 0, %v424
        %426 = vst [vmem:[#allocation2 + $0x8] sm:$0x1] %v425
        %v427 = vld [vmem:[#allocation2 + $0x14] sm:$0x1]
        %v428 = vsel %vm423, 0, %v427
        %429 = vst [vmem:[#allocation2 + $0x14] sm:$0x1] %v428
        %v430 = vld [vmem:[#allocation2 + $0x20] sm:$0x1]
        %v431 = vsel %vm423, 0, %v430
        %432 = vst [vmem:[#allocation2 + $0x20] sm:$0x1] %v431
        %v433 = vld [vmem:[#allocation2 + $0x2c] sm:$0x1]
        %v434 = vsel %vm423, 0, %v433
        %435 = vst [vmem:[#allocation2 + $0x2c] sm:$0x1] %v434
        %v436 = vld [vmem:[#allocation2 + $0x38] sm:$0x1]
        %v437 = vsel %vm423, 0, %v436
        %438 = vst [vmem:[#allocation2 + $0x38] sm:$0x1] %v437
        %v439 = vld [vmem:[#allocation2 + $0x44] sm:$0x1]
        %v440 = vsel %vm423, 0, %v439
        %441 = vst [vmem:[#allocation2 + $0x44] sm:$0x1] %v440
        %v442 = vld [vmem:[#allocation2 + $0x50] sm:$0x1]
        %v443 = vsel %vm423, 0, %v442
        %444 = vst [vmem:[#allocation2 + $0x50] sm:$0x1] %v443
        %v445 = vld [vmem:[#allocation2 + $0x5c] sm:$0x1]
        %v446 = vsel %vm423, 0, %v445
        %447 = vst [vmem:[#allocation2 + $0x5c] sm:$0x1] %v446
        %v448 = vld [vmem:[#allocation2 + $0x68] sm:$0x1]
        %v449 = vsel %vm423, 0, %v448
        %450 = vst [vmem:[#allocation2 + $0x68] sm:$0x1] %v449
        %v451 = vld [vmem:[#allocation2 + $0x74] sm:$0x1]
        %v452 = vsel %vm423, 0, %v451
        %453 = vst [vmem:[#allocation2 + $0x74] sm:$0x1] %v452
        %v454 = vld [vmem:[#allocation2 + $0x80] sm:$0x1]
        %v455 = vsel %vm423, 0, %v454
        %456 = vst [vmem:[#allocation2 + $0x80] sm:$0x1] %v455
        %v457 = vld [vmem:[#allocation2 + $0x8c] sm:$0x1]
        %v458 = vsel %vm423, 0, %v457
        %459 = vst [vmem:[#allocation2 + $0x8c] sm:$0x1] %v458
        %v460 = vld [vmem:[#allocation2 + $0x98] sm:$0x1]
        %v461 = vsel %vm423, 0, %v460
        %462 = vst [vmem:[#allocation2 + $0x98] sm:$0x1] %v461
        %v463 = vld [vmem:[#allocation2 + $0xa4] sm:$0x1]
        %v464 = vsel %vm423, 0, %v463
        %465 = vst [vmem:[#allocation2 + $0xa4] sm:$0x1] %v464
        %v466 = vld [vmem:[#allocation2 + $0xb0] sm:$0x1]
        %v467 = vsel %vm423, 0, %v466
        %468 = vst [vmem:[#allocation2 + $0xb0] sm:$0x1] %v467
        %v469 = vld [vmem:[#allocation2 + $0xbc] sm:$0x1]
        %v470 = vsel %vm423, 0, %v469
        %471 = vst [vmem:[#allocation2 + $0xbc] sm:$0x1] %v470
        %v472 = vld [vmem:[#allocation2 + $0xc8] sm:$0x1]
        %v473 = vsel %vm423, 0, %v472
        %474 = vst [vmem:[#allocation2 + $0xc8] sm:$0x1] %v473
        %v475 = vld [vmem:[#allocation2 + $0xd4] sm:$0x1]
        %v476 = vsel %vm423, 0, %v475
        %477 = vst [vmem:[#allocation2 + $0xd4] sm:$0x1] %v476
        %vm478 = vcmask 1048128
        %479 = vst.msk [vmem:[#allocation3] sm:$0xff] %vm478, 0
        %480 = vst.msk [vmem:[#allocation3 + $0x8] sm:$0xff] %vm478, 0
        %481 = vst.msk [vmem:[#allocation3 + $0x10] sm:$0xff] %vm478, 0
        %482 = vst.msk [vmem:[#allocation3 + $0x18] sm:$0xff] %vm478, 0
        %483 = vst.msk [vmem:[#allocation3 + $0x20] sm:$0xff] %vm478, 0
        %484 = vst.msk [vmem:[#allocation3 + $0x28] sm:$0xff] %vm478, 0
        %485 = vst.msk [vmem:[#allocation3 + $0x30] sm:$0xff] %vm478, 0
        %486 = vst.msk [vmem:[#allocation3 + $0x38] sm:$0xff] %vm478, 0
        %487 = vst.msk [vmem:[#allocation3 + $0x40] sm:$0xff] %vm478, 0
        %488 = vst.msk [vmem:[#allocation3 + $0x48] sm:$0xff] %vm478, 0
        %489 = vst.msk [vmem:[#allocation3 + $0x50] sm:$0xff] %vm478, 0
        %490 = vst.msk [vmem:[#allocation3 + $0x58] sm:$0xff] %vm478, 0
        %491 = vst.msk [vmem:[#allocation3 + $0x60] sm:$0xff] %vm478, 0
        %492 = vst.msk [vmem:[#allocation3 + $0x68] sm:$0xff] %vm478, 0
        %493 = vst.msk [vmem:[#allocation3 + $0x70] sm:$0xff] %vm478, 0
        %494 = vst.msk [vmem:[#allocation3 + $0x78] sm:$0xff] %vm478, 0
        %v495 = vld [vmem:[%s344] sm:$0xf]
        %v496 = vld [vmem:[%s344 + $0x4] sm:$0xf]
        %v497 = vld [vmem:[%s344 + $0x8] sm:$0xf]
        %v498 = vld [vmem:[%s344 + $0xc] sm:$0xf]
        %v499 = vld [vmem:[%s344 + $0x10] sm:$0xf]
        %v500 = vld [vmem:[%s344 + $0x14] sm:$0xf]
        %v501 = vld [vmem:[%s344 + $0x18] sm:$0xf]
        %v502 = vld [vmem:[%s344 + $0x1c] sm:$0xf]
        %v503 = vld [vmem:[%s344 + $0x20] sm:$0xf]
        %v504 = vld [vmem:[%s344 + $0x24] sm:$0xf]
        %v505 = vld [vmem:[%s344 + $0x28] sm:$0xf]
        %v506 = vld [vmem:[%s344 + $0x2c] sm:$0xf]
        %v507 = vld [vmem:[%s344 + $0x30] sm:$0xf]
        %v508 = vld [vmem:[%s344 + $0x34] sm:$0xf]
        %v509 = vld [vmem:[%s344 + $0x38] sm:$0xf]
        %v510 = vld [vmem:[%s344 + $0x3c] sm:$0xf]
        %v511 = vld [vmem:[%s344 + $0x40] sm:$0xf]
        %v512 = vld [vmem:[%s344 + $0x44] sm:$0xf]
        %v513 = vld [vmem:[%s344 + $0x48] sm:$0xf]
        %v514 = vld [vmem:[%s344 + $0x4c] sm:$0xf]
        %v515 = vld [vmem:[%s344 + $0x50] sm:$0xf]
        %v516 = vld [vmem:[%s344 + $0x54] sm:$0xf]
        %v517 = vld [vmem:[%s344 + $0x58] sm:$0xf]
        %v518 = vld [vmem:[%s344 + $0x5c] sm:$0xf]
        %v519 = vld [vmem:[%s344 + $0x60] sm:$0xf]
        %v520 = vld [vmem:[%s344 + $0x64] sm:$0xf]
        %v521 = vld [vmem:[%s344 + $0x68] sm:$0xf]
        %v522 = vld [vmem:[%s344 + $0x6c] sm:$0xf]
        %v523 = vld [vmem:[%s344 + $0x70] sm:$0xf]
        %v524 = vld [vmem:[%s344 + $0x74] sm:$0xf]
        %v525 = vld [vmem:[%s344 + $0x78] sm:$0xf]
        %v526 = vld [vmem:[%s344 + $0x7c] sm:$0xf]
        %v527 = vld [vmem:[%s1] sm:$0xf]
        %v528 = vld [vmem:[%s1 + $0x4] sm:$0xf]
        %v529 = vld [vmem:[%s1 + $0x8] sm:$0xf]
        %v530 = vld [vmem:[%s1 + $0xc] sm:$0xf]
        %v531 = vld [vmem:[%s1 + $0x10] sm:$0xf]
        %v532 = vld [vmem:[%s1 + $0x14] sm:$0xf]
        %v533 = vld [vmem:[%s1 + $0x18] sm:$0xf]
        %v534 = vld [vmem:[%s1 + $0x1c] sm:$0xf]
        %v535 = vld [vmem:[%s1 + $0x20] sm:$0xf]
        %v536 = vld [vmem:[%s1 + $0x24] sm:$0xf]
        %v537 = vld [vmem:[%s1 + $0x28] sm:$0xf]
        %v538 = vld [vmem:[%s1 + $0x2c] sm:$0xf]
        %v539 = vld [vmem:[%s1 + $0x30] sm:$0xf]
        %v540 = vld [vmem:[%s1 + $0x34] sm:$0xf]
        %v541 = vld [vmem:[%s1 + $0x38] sm:$0xf]
        %v542 = vld [vmem:[%s1 + $0x3c] sm:$0xf]
        %v543 = vld [vmem:[%s2] sm:$0x1]
        %v545 = vlaneseq
        %v546 = vshrl.u32 %v545, 7
        %v547 = vsub.s32 0, %v546
        %v548 = vrot.slane %v543, %v547
        %v582 = vunpack.c.l.b16 %v495
        %v583 = vunpack.c.l.b16 %v496
        %v584 = vunpack.c.l.b16 %v497
        %v585 = vunpack.c.l.b16 %v498
        %v586 = vunpack.c.l.b16 %v499
        %v587 = vunpack.c.l.b16 %v500
        %v588 = vunpack.c.l.b16 %v501
        %v589 = vunpack.c.l.b16 %v502
        %v590 = vunpack.c.l.b16 %v503
        %v591 = vunpack.c.l.b16 %v504
        %v592 = vunpack.c.l.b16 %v505
        %v593 = vunpack.c.l.b16 %v506
        %v594 = vunpack.c.l.b16 %v507
        %v595 = vunpack.c.l.b16 %v508
        %v596 = vunpack.c.l.b16 %v509
        %v597 = vunpack.c.l.b16 %v510
        %v598 = vunpack.c.l.b16 %v511
        %v599 = vunpack.c.l.b16 %v512
        %v600 = vunpack.c.l.b16 %v513
        %v601 = vunpack.c.l.b16 %v514
        %v602 = vunpack.c.l.b16 %v515
        %v603 = vunpack.c.l.b16 %v516
        %v604 = vunpack.c.l.b16 %v517
        %v605 = vunpack.c.l.b16 %v518
        %v606 = vunpack.c.l.b16 %v519
        %v607 = vunpack.c.l.b16 %v520
        %v608 = vunpack.c.l.b16 %v521
        %v609 = vunpack.c.l.b16 %v522
        %v610 = vunpack.c.l.b16 %v523
        %v611 = vunpack.c.l.b16 %v524
        %v612 = vunpack.c.l.b16 %v525
        %v613 = vunpack.c.l.b16 %v526
        %v614 = vpack.c.b16 %v583, %v582
        %v615 = vpack.c.b16 %v585, %v584
        %v616 = vpack.c.b16 %v587, %v586
        %v617 = vpack.c.b16 %v589, %v588
        %v618 = vpack.c.b16 %v591, %v590
        %v619 = vpack.c.b16 %v593, %v592
        %v620 = vpack.c.b16 %v595, %v594
        %v621 = vpack.c.b16 %v597, %v596
        %v622 = vpack.c.b16 %v599, %v598
        %v623 = vpack.c.b16 %v601, %v600
        %v624 = vpack.c.b16 %v603, %v602
        %v625 = vpack.c.b16 %v605, %v604
        %v626 = vpack.c.b16 %v607, %v606
        %v627 = vpack.c.b16 %v609, %v608
        %v628 = vpack.c.b16 %v611, %v610
        %v629 = vpack.c.b16 %v613, %v612
        %v662 = vunpack.c.l.b16 %v527
        %v663 = vunpack.c.l.b16 %v528
        %v664 = vunpack.c.l.b16 %v529
        %v665 = vunpack.c.l.b16 %v530
        %v666 = vunpack.c.l.b16 %v531
        %v667 = vunpack.c.l.b16 %v532
        %v668 = vunpack.c.l.b16 %v533
        %v669 = vunpack.c.l.b16 %v534
        %v670 = vunpack.c.l.b16 %v535
        %v671 = vunpack.c.l.b16 %v536
        %v672 = vunpack.c.l.b16 %v537
        %v673 = vunpack.c.l.b16 %v538
        %v674 = vunpack.c.l.b16 %v539
        %v675 = vunpack.c.l.b16 %v540
        %v676 = vunpack.c.l.b16 %v541
        %v677 = vunpack.c.l.b16 %v542
        %v678 = vpack.c.b16 %v663, %v662
        %v679 = vpack.c.b16 %v665, %v664
        %v680 = vpack.c.b16 %v667, %v666
        %v681 = vpack.c.b16 %v669, %v668
        %v682 = vpack.c.b16 %v671, %v670
        %v683 = vpack.c.b16 %v673, %v672
        %v684 = vpack.c.b16 %v675, %v674
        %v685 = vpack.c.b16 %v677, %v676
        %694 = vmatprep.subr.bf16.mxu0 0
        %695 = vmatpush1.bf16.msra.mxu0 %v678
        %696 = vmatprep.subr.bf16.mxu0 0
        %697 = vmatpush1.bf16.msra.mxu0 %v679
        %698 = vmatprep.subr.bf16.mxu0 0
        %699 = vmatpush1.bf16.msra.mxu0 %v680
        %700 = vmatprep.subr.bf16.mxu0 0
        %701 = vmatpush1.bf16.msra.mxu0 %v681
        %702 = vmatprep.subr.bf16.mxu0 0
        %703 = vmatpush1.bf16.msra.mxu0 %v682
        %704 = vmatprep.subr.bf16.mxu0 0
        %705 = vmatpush1.bf16.msra.mxu0 %v683
        %706 = vmatprep.subr.bf16.mxu0 0
        %707 = vmatpush1.bf16.msra.mxu0 %v684
        %708 = vmatprep.subr.bf16.mxu0 0
        %709 = vmatpush1.bf16.msra.mxu0 %v685
        %710 = vmatprep.subr.bf16.mxu0 0
        %711 = vmatpush1.bf16.msra.mxu0 0
        %712 = vmatprep.subr.bf16.mxu0 0
        %713 = vmatpush1.bf16.msra.mxu0 0
        %714 = vmatprep.subr.bf16.mxu0 0
        %715 = vmatpush1.bf16.msra.mxu0 0
        %716 = vmatprep.subr.bf16.mxu0 0
        %717 = vmatpush1.bf16.msra.mxu0 0
        %718 = vmatprep.subr.bf16.mxu0 0
        %719 = vmatpush1.bf16.msra.mxu0 0
        %720 = vmatprep.subr.bf16.mxu0 0
        %721 = vmatpush1.bf16.msra.mxu0 0
        %722 = vmatprep.subr.bf16.mxu0 0
        %723 = vmatpush1.bf16.msra.mxu0 0
        %724 = vmatprep.subr.bf16.mxu0 0
        %725 = vmatpush1.bf16.msra.mxu0 0
        %726 = vmatprep.mubr.bf16.mxu0 0
        %727 = vmatmul.mubr.bf16.gmra.mrb[0].mxu0 %v614
        %v728 = vpop.f32.mrb[0].mxu0
        %v729 = vadd.f32 %v548, %v728
        %v730 = vpop.f32.mrb[0].mxu0
        %v731 = vpop.f32.mrb[0].mxu0
        %v732 = vadd.f32 %v548, %v731
        %v733 = vpop.f32.mrb[0].mxu0
        %734 = vmatprep.mubr.bf16.mxu0 0
        %735 = vmatmul.mubr.bf16.gmra.mrb[0].mxu0 %v615
        %v736 = vpop.f32.mrb[0].mxu0
        %v737 = vadd.f32 %v548, %v736
        %v738 = vpop.f32.mrb[0].mxu0
        %v739 = vpop.f32.mrb[0].mxu0
        %v740 = vadd.f32 %v548, %v739
        %v741 = vpop.f32.mrb[0].mxu0
        %742 = vmatprep.mubr.bf16.mxu0 0
        %743 = vmatmul.mubr.bf16.gmra.mrb[0].mxu0 %v616
        %v744 = vpop.f32.mrb[0].mxu0
        %v745 = vadd.f32 %v548, %v744
        %v746 = vpop.f32.mrb[0].mxu0
        %v747 = vpop.f32.mrb[0].mxu0
        %v748 = vadd.f32 %v548, %v747
        %v749 = vpop.f32.mrb[0].mxu0
        %750 = vmatprep.mubr.bf16.mxu0 0
        %751 = vmatmul.mubr.bf16.gmra.mrb[0].mxu0 %v617
        %v752 = vpop.f32.mrb[0].mxu0
        %v753 = vadd.f32 %v548, %v752
        %v754 = vpop.f32.mrb[0].mxu0
        %v755 = vpop.f32.mrb[0].mxu0
        %v756 = vadd.f32 %v548, %v755
        %v757 = vpop.f32.mrb[0].mxu0
        %758 = vmatprep.mubr.bf16.mxu0 0
        %759 = vmatmul.mubr.bf16.gmra.mrb[0].mxu0 %v618
        %v760 = vpop.f32.mrb[0].mxu0
        %v761 = vadd.f32 %v548, %v760
        %v762 = vpop.f32.mrb[0].mxu0
        %v763 = vpop.f32.mrb[0].mxu0
        %v764 = vadd.f32 %v548, %v763
        %v765 = vpop.f32.mrb[0].mxu0
        %766 = vmatprep.mubr.bf16.mxu0 0
        %767 = vmatmul.mubr.bf16.gmra.mrb[0].mxu0 %v619
        %v768 = vpop.f32.mrb[0].mxu0
        %v769 = vadd.f32 %v548, %v768
        %v770 = vpop.f32.mrb[0].mxu0
        %v771 = vpop.f32.mrb[0].mxu0
        %v772 = vadd.f32 %v548, %v771
        %v773 = vpop.f32.mrb[0].mxu0
        %774 = vmatprep.mubr.bf16.mxu0 0
        %775 = vmatmul.mubr.bf16.gmra.mrb[0].mxu0 %v620
        %v776 = vpop.f32.mrb[0].mxu0
        %v777 = vadd.f32 %v548, %v776
        %v778 = vpop.f32.mrb[0].mxu0
        %v779 = vpop.f32.mrb[0].mxu0
        %v780 = vadd.f32 %v548, %v779
        %v781 = vpop.f32.mrb[0].mxu0
        %782 = vmatprep.mubr.bf16.mxu0 0
        %783 = vmatmul.mubr.bf16.gmra.mrb[0].mxu0 %v621
        %v784 = vpop.f32.mrb[0].mxu0
        %v785 = vadd.f32 %v548, %v784
        %v786 = vpop.f32.mrb[0].mxu0
        %v787 = vpop.f32.mrb[0].mxu0
        %v788 = vadd.f32 %v548, %v787
        %v789 = vpop.f32.mrb[0].mxu0
        %790 = vmatprep.mubr.bf16.mxu0 0
        %791 = vmatmul.mubr.bf16.gmra.mrb[0].mxu0 %v622
        %v792 = vpop.f32.mrb[0].mxu0
        %v793 = vadd.f32 %v548, %v792
        %v794 = vpop.f32.mrb[0].mxu0
        %v795 = vpop.f32.mrb[0].mxu0
        %v796 = vadd.f32 %v548, %v795
        %v797 = vpop.f32.mrb[0].mxu0
        %798 = vmatprep.mubr.bf16.mxu0 0
        %799 = vmatmul.mubr.bf16.gmra.mrb[0].mxu0 %v623
        %v800 = vpop.f32.mrb[0].mxu0
        %v801 = vadd.f32 %v548, %v800
        %v802 = vpop.f32.mrb[0].mxu0
        %v803 = vpop.f32.mrb[0].mxu0
        %v804 = vadd.f32 %v548, %v803
        %v805 = vpop.f32.mrb[0].mxu0
        %806 = vmatprep.mubr.bf16.mxu0 0
        %807 = vmatmul.mubr.bf16.gmra.mrb[0].mxu0 %v624
        %v808 = vpop.f32.mrb[0].mxu0
        %v809 = vadd.f32 %v548, %v808
        %v810 = vpop.f32.mrb[0].mxu0
        %v811 = vpop.f32.mrb[0].mxu0
        %v812 = vadd.f32 %v548, %v811
        %v813 = vpop.f32.mrb[0].mxu0
        %814 = vmatprep.mubr.bf16.mxu0 0
        %815 = vmatmul.mubr.bf16.gmra.mrb[0].mxu0 %v625
        %v816 = vpop.f32.mrb[0].mxu0
        %v817 = vadd.f32 %v548, %v816
        %v818 = vpop.f32.mrb[0].mxu0
        %v819 = vpop.f32.mrb[0].mxu0
        %v820 = vadd.f32 %v548, %v819
        %v821 = vpop.f32.mrb[0].mxu0
        %822 = vmatprep.mubr.bf16.mxu0 0
        %823 = vmatmul.mubr.bf16.gmra.mrb[0].mxu0 %v626
        %v824 = vpop.f32.mrb[0].mxu0
        %v825 = vadd.f32 %v548, %v824
        %v826 = vpop.f32.mrb[0].mxu0
        %v827 = vpop.f32.mrb[0].mxu0
        %v828 = vadd.f32 %v548, %v827
        %v829 = vpop.f32.mrb[0].mxu0
        %830 = vmatprep.mubr.bf16.mxu0 0
        %831 = vmatmul.mubr.bf16.gmra.mrb[0].mxu0 %v627
        %v832 = vpop.f32.mrb[0].mxu0
        %v833 = vadd.f32 %v548, %v832
        %v834 = vpop.f32.mrb[0].mxu0
        %v835 = vpop.f32.mrb[0].mxu0
        %v836 = vadd.f32 %v548, %v835
        %v837 = vpop.f32.mrb[0].mxu0
        %838 = vmatprep.mubr.bf16.mxu0 0
        %839 = vmatmul.mubr.bf16.gmra.mrb[0].mxu0 %v628
        %v840 = vpop.f32.mrb[0].mxu0
        %v841 = vadd.f32 %v548, %v840
        %v842 = vpop.f32.mrb[0].mxu0
        %v843 = vpop.f32.mrb[0].mxu0
        %v844 = vadd.f32 %v548, %v843
        %v845 = vpop.f32.mrb[0].mxu0
        %846 = vmatprep.mubr.bf16.mxu0 0
        %847 = vmatmul.mubr.bf16.gmra.mrb[0].mxu0 %v629
        %v848 = vpop.f32.mrb[0].mxu0
        %v849 = vadd.f32 %v548, %v848
        %v850 = vpop.f32.mrb[0].mxu0
        %v851 = vpop.f32.mrb[0].mxu0
        %v852 = vadd.f32 %v548, %v851
        %v853 = vpop.f32.mrb[0].mxu0
        %854 = vdwg.mxu0
        %v855 = vmax.f32 %v729, 0.0
        %v856 = vmax.f32 %v732, 0.0
        %v857 = vmax.f32 %v737, 0.0
        %v858 = vmax.f32 %v740, 0.0
        %v859 = vmax.f32 %v745, 0.0
        %v860 = vmax.f32 %v748, 0.0
        %v861 = vmax.f32 %v753, 0.0
        %v862 = vmax.f32 %v756, 0.0
        %v863 = vmax.f32 %v761, 0.0
        %v864 = vmax.f32 %v764, 0.0
        %v865 = vmax.f32 %v769, 0.0
        %v866 = vmax.f32 %v772, 0.0
        %v867 = vmax.f32 %v777, 0.0
        %v868 = vmax.f32 %v780, 0.0
        %v869 = vmax.f32 %v785, 0.0
        %v870 = vmax.f32 %v788, 0.0
        %v871 = vmax.f32 %v793, 0.0
        %v872 = vmax.f32 %v796, 0.0
        %v873 = vmax.f32 %v801, 0.0
        %v874 = vmax.f32 %v804, 0.0
        %v875 = vmax.f32 %v809, 0.0
        %v876 = vmax.f32 %v812, 0.0
        %v877 = vmax.f32 %v817, 0.0
        %v878 = vmax.f32 %v820, 0.0
        %v879 = vmax.f32 %v825, 0.0
        %v880 = vmax.f32 %v828, 0.0
        %v881 = vmax.f32 %v833, 0.0
        %v882 = vmax.f32 %v836, 0.0
        %v883 = vmax.f32 %v841, 0.0
        %v884 = vmax.f32 %v844, 0.0
        %v885 = vmax.f32 %v849, 0.0
        %v886 = vmax.f32 %v852, 0.0
        %vm887 = vcmask 64512
        %888 = vst.msk [vmem:[%s349] sm:$0xff] %vm887, %v855
        %889 = vst.msk [vmem:[%s349 + $0x8] sm:$0xff] %vm887, %v856
        %890 = vst.msk [vmem:[%s349 + $0x10] sm:$0xff] %vm887, %v857
        %891 = vst.msk [vmem:[%s349 + $0x18] sm:$0xff] %vm887, %v858
        %892 = vst.msk [vmem:[%s349 + $0x20] sm:$0xff] %vm887, %v859
        %893 = vst.msk [vmem:[%s349 + $0x28] sm:$0xff] %vm887, %v860
        %894 = vst.msk [vmem:[%s349 + $0x30] sm:$0xff] %vm887, %v861
        %895 = vst.msk [vmem:[%s349 + $0x38] sm:$0xff] %vm887, %v862
        %896 = vst.msk [vmem:[%s349 + $0x40] sm:$0xff] %vm887, %v863
        %897 = vst.msk [vmem:[%s349 + $0x48] sm:$0xff] %vm887, %v864
        %898 = vst.msk [vmem:[%s349 + $0x50] sm:$0xff] %vm887, %v865
        %899 = vst.msk [vmem:[%s349 + $0x58] sm:$0xff] %vm887, %v866
        %900 = vst.msk [vmem:[%s349 + $0x60] sm:$0xff] %vm887, %v867
        %901 = vst.msk [vmem:[%s349 + $0x68] sm:$0xff] %vm887, %v868
        %902 = vst.msk [vmem:[%s349 + $0x70] sm:$0xff] %vm887, %v869
        %903 = vst.msk [vmem:[%s349 + $0x78] sm:$0xff] %vm887, %v870
        %904 = vst.msk [vmem:[%s349 + $0x80] sm:$0xff] %vm887, %v871
        %905 = vst.msk [vmem:[%s349 + $0x88] sm:$0xff] %vm887, %v872
        %906 = vst.msk [vmem:[%s349 + $0x90] sm:$0xff] %vm887, %v873
        %907 = vst.msk [vmem:[%s349 + $0x98] sm:$0xff] %vm887, %v874
        %908 = vst.msk [vmem:[%s349 + $0xa0] sm:$0xff] %vm887, %v875
        %909 = vst.msk [vmem:[%s349 + $0xa8] sm:$0xff] %vm887, %v876
        %910 = vst.msk [vmem:[%s349 + $0xb0] sm:$0xff] %vm887, %v877
        %911 = vst.msk [vmem:[%s349 + $0xb8] sm:$0xff] %vm887, %v878
        %912 = vst.msk [vmem:[%s349 + $0xc0] sm:$0xff] %vm887, %v879
        %913 = vst.msk [vmem:[%s349 + $0xc8] sm:$0xff] %vm887, %v880
        %914 = vst.msk [vmem:[%s349 + $0xd0] sm:$0xff] %vm887, %v881
        %915 = vst.msk [vmem:[%s349 + $0xd8] sm:$0xff] %vm887, %v882
        %916 = vst.msk [vmem:[%s349 + $0xe0] sm:$0xff] %vm887, %v883
        %917 = vst.msk [vmem:[%s349 + $0xe8] sm:$0xff] %vm887, %v884
        %918 = vst.msk [vmem:[%s349 + $0xf0] sm:$0xff] %vm887, %v885
        %919 = vst.msk [vmem:[%s349 + $0xf8] sm:$0xff] %vm887, %v886
        %v920 = vpack.c.bf16 %v856, %v855
        %v921 = vpack.c.bf16 %v858, %v857
        %v922 = vpack.c.bf16 %v860, %v859
        %v923 = vpack.c.bf16 %v862, %v861
        %v924 = vpack.c.bf16 %v864, %v863
        %v925 = vpack.c.bf16 %v866, %v865
        %v926 = vpack.c.bf16 %v868, %v867
        %v927 = vpack.c.bf16 %v870, %v869
        %v928 = vpack.c.bf16 %v872, %v871
        %v929 = vpack.c.bf16 %v874, %v873
        %v930 = vpack.c.bf16 %v876, %v875
        %v931 = vpack.c.bf16 %v878, %v877
        %v932 = vpack.c.bf16 %v880, %v879
        %v933 = vpack.c.bf16 %v882, %v881
        %v934 = vpack.c.bf16 %v884, %v883
        %v935 = vpack.c.bf16 %v886, %v885
        %v952 = vunpack.c.l.b16 %v920
        %v953 = vunpack.c.h.b16 %v920
        %v954 = vunpack.c.l.b16 %v921
        %v955 = vunpack.c.h.b16 %v921
        %v956 = vunpack.c.l.b16 %v922
        %v957 = vunpack.c.h.b16 %v922
        %v958 = vunpack.c.l.b16 %v923
        %v959 = vunpack.c.h.b16 %v923
        %v960 = vunpack.c.l.b16 %v924
        %v961 = vunpack.c.h.b16 %v924
        %v962 = vunpack.c.l.b16 %v925
        %v963 = vunpack.c.h.b16 %v925
        %v964 = vunpack.c.l.b16 %v926
        %v965 = vunpack.c.h.b16 %v926
        %v966 = vunpack.c.l.b16 %v927
        %v967 = vunpack.c.h.b16 %v927
        %v968 = vunpack.c.l.b16 %v928
        %v969 = vunpack.c.h.b16 %v928
        %v970 = vunpack.c.l.b16 %v929
        %v971 = vunpack.c.h.b16 %v929
        %v972 = vunpack.c.l.b16 %v930
        %v973 = vunpack.c.h.b16 %v930
        %v974 = vunpack.c.l.b16 %v931
        %v975 = vunpack.c.h.b16 %v931
        %v976 = vunpack.c.l.b16 %v932
        %v977 = vunpack.c.h.b16 %v932
        %v978 = vunpack.c.l.b16 %v933
        %v979 = vunpack.c.h.b16 %v933
        %v980 = vunpack.c.l.b16 %v934
        %v981 = vunpack.c.h.b16 %v934
        %v982 = vunpack.c.l.b16 %v935
        %v983 = vunpack.c.h.b16 %v935
        %v984 = vpack.c.b16 %v952, %v952
        %v985 = vpack.c.b16 %v953, %v953
        %v986 = vpack.c.b16 %v954, %v954
        %v987 = vpack.c.b16 %v955, %v955
        %v988 = vpack.c.b16 %v956, %v956
        %v989 = vpack.c.b16 %v957, %v957
        %v990 = vpack.c.b16 %v958, %v958
        %v991 = vpack.c.b16 %v959, %v959
        %v992 = vpack.c.b16 %v960, %v960
        %v993 = vpack.c.b16 %v961, %v961
        %v994 = vpack.c.b16 %v962, %v962
        %v995 = vpack.c.b16 %v963, %v963
        %v996 = vpack.c.b16 %v964, %v964
        %v997 = vpack.c.b16 %v965, %v965
        %v998 = vpack.c.b16 %v966, %v966
        %v999 = vpack.c.b16 %v967, %v967
        %v1000 = vpack.c.b16 %v968, %v968
        %v1001 = vpack.c.b16 %v969, %v969
        %v1002 = vpack.c.b16 %v970, %v970
        %v1003 = vpack.c.b16 %v971, %v971
        %v1004 = vpack.c.b16 %v972, %v972
        %v1005 = vpack.c.b16 %v973, %v973
        %v1006 = vpack.c.b16 %v974, %v974
        %v1007 = vpack.c.b16 %v975, %v975
        %v1008 = vpack.c.b16 %v976, %v976
        %v1009 = vpack.c.b16 %v977, %v977
        %v1010 = vpack.c.b16 %v978, %v978
        %v1011 = vpack.c.b16 %v979, %v979
        %v1012 = vpack.c.b16 %v980, %v980
        %v1013 = vpack.c.b16 %v981, %v981
        %v1014 = vpack.c.b16 %v982, %v982
        %v1015 = vpack.c.b16 %v983, %v983
        %vm1016 = vsmask.f32 4368
        %vm1017 = vmor %vm366, %vm1016
        %v1019 = vshrl.u32 %v984, 16
        %v1021 = vrot.slane %v1019, 7
        %v1022 = vshll.u32 %v984, 16
        %v1024 = vor.u32 %v1021, %v1022
        %v1025 = vrot.slane %v1021, 4
        %v1027 = vshrl.u32 %v985, 16
        %v1029 = vrot.slane %v1027, 7
        %v1030 = vshll.u32 %v985, 16
        %v1032 = vor.u32 %v1029, %v1030
        %v1033 = vsel %vm1017, %v1025, %v1032
        %v1034 = vrot.slane %v1029, 4
        %v1036 = vshrl.u32 %v986, 16
        %v1038 = vrot.slane %v1036, 7
        %v1039 = vshll.u32 %v986, 16
        %v1041 = vor.u32 %v1038, %v1039
        %v1042 = vrot.slane %v1038, 4
        %v1044 = vshrl.u32 %v987, 16
        %v1046 = vrot.slane %v1044, 7
        %v1047 = vshll.u32 %v987, 16
        %v1049 = vor.u32 %v1046, %v1047
        %v1050 = vsel %vm1017, %v1042, %v1049
        %v1051 = vrot.slane %v1046, 4
        %v1053 = vshrl.u32 %v988, 16
        %v1055 = vrot.slane %v1053, 7
        %v1056 = vshll.u32 %v988, 16
        %v1058 = vor.u32 %v1055, %v1056
        %v1059 = vrot.slane %v1055, 4
        %v1061 = vshrl.u32 %v989, 16
        %v1063 = vrot.slane %v1061, 7
        %v1064 = vshll.u32 %v989, 16
        %v1066 = vor.u32 %v1063, %v1064
        %v1067 = vsel %vm1017, %v1059, %v1066
        %v1068 = vrot.slane %v1063, 4
        %v1070 = vshrl.u32 %v990, 16
        %v1072 = vrot.slane %v1070, 7
        %v1073 = vshll.u32 %v990, 16
        %v1075 = vor.u32 %v1072, %v1073
        %v1076 = vrot.slane %v1072, 4
        %v1078 = vshrl.u32 %v991, 16
        %v1080 = vrot.slane %v1078, 7
        %v1081 = vshll.u32 %v991, 16
        %v1083 = vor.u32 %v1080, %v1081
        %v1084 = vsel %vm1017, %v1076, %v1083
        %v1085 = vrot.slane %v1080, 4
        %v1087 = vshrl.u32 %v992, 16
        %v1089 = vrot.slane %v1087, 7
        %v1090 = vshll.u32 %v992, 16
        %v1092 = vor.u32 %v1089, %v1090
        %v1093 = vrot.slane %v1089, 4
        %v1095 = vshrl.u32 %v993, 16
        %v1097 = vrot.slane %v1095, 7
        %v1098 = vshll.u32 %v993, 16
        %v1100 = vor.u32 %v1097, %v1098
        %v1101 = vsel %vm1017, %v1093, %v1100
        %v1102 = vrot.slane %v1097, 4
        %v1104 = vshrl.u32 %v994, 16
        %v1106 = vrot.slane %v1104, 7
        %v1107 = vshll.u32 %v994, 16
        %v1109 = vor.u32 %v1106, %v1107
        %v1110 = vrot.slane %v1106, 4
        %v1112 = vshrl.u32 %v995, 16
        %v1114 = vrot.slane %v1112, 7
        %v1115 = vshll.u32 %v995, 16
        %v1117 = vor.u32 %v1114, %v1115
        %v1118 = vsel %vm1017, %v1110, %v1117
        %v1119 = vrot.slane %v1114, 4
        %v1121 = vshrl.u32 %v996, 16
        %v1123 = vrot.slane %v1121, 7
        %v1124 = vshll.u32 %v996, 16
        %v1126 = vor.u32 %v1123, %v1124
        %v1127 = vrot.slane %v1123, 4
        %v1129 = vshrl.u32 %v997, 16
        %v1131 = vrot.slane %v1129, 7
        %v1132 = vshll.u32 %v997, 16
        %v1134 = vor.u32 %v1131, %v1132
        %v1135 = vsel %vm1017, %v1127, %v1134
        %v1136 = vrot.slane %v1131, 4
        %v1138 = vshrl.u32 %v998, 16
        %v1140 = vrot.slane %v1138, 7
        %v1141 = vshll.u32 %v998, 16
        %v1143 = vor.u32 %v1140, %v1141
        %v1144 = vrot.slane %v1140, 4
        %v1146 = vshrl.u32 %v999, 16
        %v1148 = vrot.slane %v1146, 7
        %v1149 = vshll.u32 %v999, 16
        %v1151 = vor.u32 %v1148, %v1149
        %v1152 = vsel %vm1017, %v1144, %v1151
        %v1153 = vrot.slane %v1148, 4
        %v1155 = vshrl.u32 %v1000, 16
        %v1157 = vrot.slane %v1155, 7
        %v1158 = vshll.u32 %v1000, 16
        %v1160 = vor.u32 %v1157, %v1158
        %v1161 = vrot.slane %v1157, 4
        %v1163 = vshrl.u32 %v1001, 16
        %v1165 = vrot.slane %v1163, 7
        %v1166 = vshll.u32 %v1001, 16
        %v1168 = vor.u32 %v1165, %v1166
        %v1169 = vsel %vm1017, %v1161, %v1168
        %v1170 = vrot.slane %v1165, 4
        %v1172 = vshrl.u32 %v1002, 16
        %v1174 = vrot.slane %v1172, 7
        %v1175 = vshll.u32 %v1002, 16
        %v1177 = vor.u32 %v1174, %v1175
        %v1178 = vrot.slane %v1174, 4
        %v1180 = vshrl.u32 %v1003, 16
        %v1182 = vrot.slane %v1180, 7
        %v1183 = vshll.u32 %v1003, 16
        %v1185 = vor.u32 %v1182, %v1183
        %v1186 = vsel %vm1017, %v1178, %v1185
        %v1187 = vrot.slane %v1182, 4
        %v1189 = vshrl.u32 %v1004, 16
        %v1191 = vrot.slane %v1189, 7
        %v1192 = vshll.u32 %v1004, 16
        %v1194 = vor.u32 %v1191, %v1192
        %v1195 = vrot.slane %v1191, 4
        %v1197 = vshrl.u32 %v1005, 16
        %v1199 = vrot.slane %v1197, 7
        %v1200 = vshll.u32 %v1005, 16
        %v1202 = vor.u32 %v1199, %v1200
        %v1203 = vsel %vm1017, %v1195, %v1202
        %v1204 = vrot.slane %v1199, 4
        %v1206 = vshrl.u32 %v1006, 16
        %v1208 = vrot.slane %v1206, 7
        %v1209 = vshll.u32 %v1006, 16
        %v1211 = vor.u32 %v1208, %v1209
        %v1212 = vrot.slane %v1208, 4
        %v1214 = vshrl.u32 %v1007, 16
        %v1216 = vrot.slane %v1214, 7
        %v1217 = vshll.u32 %v1007, 16
        %v1219 = vor.u32 %v1216, %v1217
        %v1220 = vsel %vm1017, %v1212, %v1219
        %v1221 = vrot.slane %v1216, 4
        %v1223 = vshrl.u32 %v1008, 16
        %v1225 = vrot.slane %v1223, 7
        %v1226 = vshll.u32 %v1008, 16
        %v1228 = vor.u32 %v1225, %v1226
        %v1229 = vrot.slane %v1225, 4
        %v1231 = vshrl.u32 %v1009, 16
        %v1233 = vrot.slane %v1231, 7
        %v1234 = vshll.u32 %v1009, 16
        %v1236 = vor.u32 %v1233, %v1234
        %v1237 = vsel %vm1017, %v1229, %v1236
        %v1238 = vrot.slane %v1233, 4
        %v1240 = vshrl.u32 %v1010, 16
        %v1242 = vrot.slane %v1240, 7
        %v1243 = vshll.u32 %v1010, 16
        %v1245 = vor.u32 %v1242, %v1243
        %v1246 = vrot.slane %v1242, 4
        %v1248 = vshrl.u32 %v1011, 16
        %v1250 = vrot.slane %v1248, 7
        %v1251 = vshll.u32 %v1011, 16
        %v1253 = vor.u32 %v1250, %v1251
        %v1254 = vsel %vm1017, %v1246, %v1253
        %v1255 = vrot.slane %v1250, 4
        %v1257 = vshrl.u32 %v1012, 16
        %v1259 = vrot.slane %v1257, 7
        %v1260 = vshll.u32 %v1012, 16
        %v1262 = vor.u32 %v1259, %v1260
        %v1263 = vrot.slane %v1259, 4
        %v1265 = vshrl.u32 %v1013, 16
        %v1267 = vrot.slane %v1265, 7
        %v1268 = vshll.u32 %v1013, 16
        %v1270 = vor.u32 %v1267, %v1268
        %v1271 = vsel %vm1017, %v1263, %v1270
        %v1272 = vrot.slane %v1267, 4
        %v1274 = vshrl.u32 %v1014, 16
        %v1276 = vrot.slane %v1274, 7
        %v1277 = vshll.u32 %v1014, 16
        %v1279 = vor.u32 %v1276, %v1277
        %v1280 = vrot.slane %v1276, 4
        %v1282 = vshrl.u32 %v1015, 16
        %v1284 = vrot.slane %v1282, 7
        %v1285 = vshll.u32 %v1015, 16
        %v1287 = vor.u32 %v1284, %v1285
        %v1288 = vsel %vm1017, %v1280, %v1287
        %v1289 = vrot.slane %v1284, 4
        %s1338 = scalar_lea.vmem [#allocation2], 12
        %vm1339 = vcmask 60416
        %vm1340 = vmand %vm1339, %vm422
        %v1341 = vld [vmem:[%s1338] sm:$0xf]
        %v1342 = vsel %vm1340, %v1024, %v1341
        %1343 = vst [vmem:[%s1338] sm:$0xf] %v1342
        %1344 = vst.msk [vmem:[%s1338 + $0x4] sm:$0xf] %vm356, %v1033
        %v1345 = vld [vmem:[%s1338 + $0x8] sm:$0x1]
        %v1346 = vsel %vm367, %v1034, %v1345
        %1347 = vst [vmem:[%s1338 + $0x8] sm:$0x1] %v1346
        %v1348 = vld [vmem:[%s1338 + $0xc] sm:$0xf]
        %v1349 = vsel %vm1340, %v1041, %v1348
        %1350 = vst [vmem:[%s1338 + $0xc] sm:$0xf] %v1349
        %1351 = vst.msk [vmem:[%s1338 + $0x10] sm:$0xf] %vm356, %v1050
        %v1352 = vld [vmem:[%s1338 + $0x14] sm:$0x1]
        %v1353 = vsel %vm367, %v1051, %v1352
        %1354 = vst [vmem:[%s1338 + $0x14] sm:$0x1] %v1353
        %v1355 = vld [vmem:[%s1338 + $0x18] sm:$0xf]
        %v1356 = vsel %vm1340, %v1058, %v1355
        %1357 = vst [vmem:[%s1338 + $0x18] sm:$0xf] %v1356
        %1358 = vst.msk [vmem:[%s1338 + $0x1c] sm:$0xf] %vm356, %v1067
        %v1359 = vld [vmem:[%s1338 + $0x20] sm:$0x1]
        %v1360 = vsel %vm367, %v1068, %v1359
        %1361 = vst [vmem:[%s1338 + $0x20] sm:$0x1] %v1360
        %v1362 = vld [vmem:[%s1338 + $0x24] sm:$0xf]
        %v1363 = vsel %vm1340, %v1075, %v1362
        %1364 = vst [vmem:[%s1338 + $0x24] sm:$0xf] %v1363
        %1365 = vst.msk [vmem:[%s1338 + $0x28] sm:$0xf] %vm356, %v1084
        %v1366 = vld [vmem:[%s1338 + $0x2c] sm:$0x1]
        %v1367 = vsel %vm367, %v1085, %v1366
        %1368 = vst [vmem:[%s1338 + $0x2c] sm:$0x1] %v1367
        %v1369 = vld [vmem:[%s1338 + $0x30] sm:$0xf]
        %v1370 = vsel %vm1340, %v1092, %v1369
        %1371 = vst [vmem:[%s1338 + $0x30] sm:$0xf] %v1370
        %1372 = vst.msk [vmem:[%s1338 + $0x34] sm:$0xf] %vm356, %v1101
        %v1373 = vld [vmem:[%s1338 + $0x38] sm:$0x1]
        %v1374 = vsel %vm367, %v1102, %v1373
        %1375 = vst [vmem:[%s1338 + $0x38] sm:$0x1] %v1374
        %v1376 = vld [vmem:[%s1338 + $0x3c] sm:$0xf]
        %v1377 = vsel %vm1340, %v1109, %v1376
        %1378 = vst [vmem:[%s1338 + $0x3c] sm:$0xf] %v1377
        %1379 = vst.msk [vmem:[%s1338 + $0x40] sm:$0xf] %vm356, %v1118
        %v1380 = vld [vmem:[%s1338 + $0x44] sm:$0x1]
        %v1381 = vsel %vm367, %v1119, %v1380
        %1382 = vst [vmem:[%s1338 + $0x44] sm:$0x1] %v1381
        %v1383 = vld [vmem:[%s1338 + $0x48] sm:$0xf]
        %v1384 = vsel %vm1340, %v1126, %v1383
        %1385 = vst [vmem:[%s1338 + $0x48] sm:$0xf] %v1384
        %1386 = vst.msk [vmem:[%s1338 + $0x4c] sm:$0xf] %vm356, %v1135
        %v1387 = vld [vmem:[%s1338 + $0x50] sm:$0x1]
        %v1388 = vsel %vm367, %v1136, %v1387
        %1389 = vst [vmem:[%s1338 + $0x50] sm:$0x1] %v1388
        %v1390 = vld [vmem:[%s1338 + $0x54] sm:$0xf]
        %v1391 = vsel %vm1340, %v1143, %v1390
        %1392 = vst [vmem:[%s1338 + $0x54] sm:$0xf] %v1391
        %1393 = vst.msk [vmem:[%s1338 + $0x58] sm:$0xf] %vm356, %v1152
        %v1394 = vld [vmem:[%s1338 + $0x5c] sm:$0x1]
        %v1395 = vsel %vm367, %v1153, %v1394
        %1396 = vst [vmem:[%s1338 + $0x5c] sm:$0x1] %v1395
        %v1397 = vld [vmem:[%s1338 + $0x60] sm:$0xf]
        %v1398 = vsel %vm1340, %v1160, %v1397
        %1399 = vst [vmem:[%s1338 + $0x60] sm:$0xf] %v1398
        %1400 = vst.msk [vmem:[%s1338 + $0x64] sm:$0xf] %vm356, %v1169
        %v1401 = vld [vmem:[%s1338 + $0x68] sm:$0x1]
        %v1402 = vsel %vm367, %v1170, %v1401
        %1403 = vst [vmem:[%s1338 + $0x68] sm:$0x1] %v1402
        %v1404 = vld [vmem:[%s1338 + $0x6c] sm:$0xf]
        %v1405 = vsel %vm1340, %v1177, %v1404
        %1406 = vst [vmem:[%s1338 + $0x6c] sm:$0xf] %v1405
        %1407 = vst.msk [vmem:[%s1338 + $0x70] sm:$0xf] %vm356, %v1186
        %v1408 = vld [vmem:[%s1338 + $0x74] sm:$0x1]
        %v1409 = vsel %vm367, %v1187, %v1408
        %1410 = vst [vmem:[%s1338 + $0x74] sm:$0x1] %v1409
        %v1411 = vld [vmem:[%s1338 + $0x78] sm:$0xf]
        %v1412 = vsel %vm1340, %v1194, %v1411
        %1413 = vst [vmem:[%s1338 + $0x78] sm:$0xf] %v1412
        %1414 = vst.msk [vmem:[%s1338 + $0x7c] sm:$0xf] %vm356, %v1203
        %v1415 = vld [vmem:[%s1338 + $0x80] sm:$0x1]
        %v1416 = vsel %vm367, %v1204, %v1415
        %1417 = vst [vmem:[%s1338 + $0x80] sm:$0x1] %v1416
        %v1418 = vld [vmem:[%s1338 + $0x84] sm:$0xf]
        %v1419 = vsel %vm1340, %v1211, %v1418
        %1420 = vst [vmem:[%s1338 + $0x84] sm:$0xf] %v1419
        %1421 = vst.msk [vmem:[%s1338 + $0x88] sm:$0xf] %vm356, %v1220
        %v1422 = vld [vmem:[%s1338 + $0x8c] sm:$0x1]
        %v1423 = vsel %vm367, %v1221, %v1422
        %1424 = vst [vmem:[%s1338 + $0x8c] sm:$0x1] %v1423
        %v1425 = vld [vmem:[%s1338 + $0x90] sm:$0xf]
        %v1426 = vsel %vm1340, %v1228, %v1425
        %1427 = vst [vmem:[%s1338 + $0x90] sm:$0xf] %v1426
        %1428 = vst.msk [vmem:[%s1338 + $0x94] sm:$0xf] %vm356, %v1237
        %v1429 = vld [vmem:[%s1338 + $0x98] sm:$0x1]
        %v1430 = vsel %vm367, %v1238, %v1429
        %1431 = vst [vmem:[%s1338 + $0x98] sm:$0x1] %v1430
        %v1432 = vld [vmem:[%s1338 + $0x9c] sm:$0xf]
        %v1433 = vsel %vm1340, %v1245, %v1432
        %1434 = vst [vmem:[%s1338 + $0x9c] sm:$0xf] %v1433
        %1435 = vst.msk [vmem:[%s1338 + $0xa0] sm:$0xf] %vm356, %v1254
        %v1436 = vld [vmem:[%s1338 + $0xa4] sm:$0x1]
        %v1437 = vsel %vm367, %v1255, %v1436
        %1438 = vst [vmem:[%s1338 + $0xa4] sm:$0x1] %v1437
        %v1439 = vld [vmem:[%s1338 + $0xa8] sm:$0xf]
        %v1440 = vsel %vm1340, %v1262, %v1439
        %1441 = vst [vmem:[%s1338 + $0xa8] sm:$0xf] %v1440
        %1442 = vst.msk [vmem:[%s1338 + $0xac] sm:$0xf] %vm356, %v1271
        %v1443 = vld [vmem:[%s1338 + $0xb0] sm:$0x1]
        %v1444 = vsel %vm367, %v1272, %v1443
        %1445 = vst [vmem:[%s1338 + $0xb0] sm:$0x1] %v1444
        %v1446 = vld [vmem:[%s1338 + $0xb4] sm:$0xf]
        %v1447 = vsel %vm1340, %v1279, %v1446
        %1448 = vst [vmem:[%s1338 + $0xb4] sm:$0xf] %v1447
        %1449 = vst.msk [vmem:[%s1338 + $0xb8] sm:$0xf] %vm356, %v1288
        %v1450 = vld [vmem:[%s1338 + $0xbc] sm:$0x1]
        %v1451 = vsel %vm367, %v1289, %v1450
        %1452 = vst [vmem:[%s1338 + $0xbc] sm:$0x1] %v1451
        %v1453 = vld [vmem:[#allocation2] sm:$0xf]
        %v1454 = vld [vmem:[#allocation2 + $0x4] sm:$0xf]
        %v1455 = vld [vmem:[#allocation2 + $0xc] sm:$0xf]
        %v1456 = vld [vmem:[#allocation2 + $0x10] sm:$0xf]
        %v1457 = vld [vmem:[#allocation2 + $0x18] sm:$0xf]
        %v1458 = vld [vmem:[#allocation2 + $0x1c] sm:$0xf]
        %v1459 = vld [vmem:[#allocation2 + $0x24] sm:$0xf]
        %v1460 = vld [vmem:[#allocation2 + $0x28] sm:$0xf]
        %v1461 = vld [vmem:[#allocation2 + $0x30] sm:$0xf]
        %v1462 = vld [vmem:[#allocation2 + $0x34] sm:$0xf]
        %v1463 = vld [vmem:[#allocation2 + $0x3c] sm:$0xf]
        %v1464 = vld [vmem:[#allocation2 + $0x40] sm:$0xf]
        %v1465 = vld [vmem:[#allocation2 + $0x48] sm:$0xf]
        %v1466 = vld [vmem:[#allocation2 + $0x4c] sm:$0xf]
        %v1467 = vld [vmem:[#allocation2 + $0x54] sm:$0xf]
        %v1468 = vld [vmem:[#allocation2 + $0x58] sm:$0xf]
        %v1469 = vld [vmem:[#allocation2 + $0x60] sm:$0xf]
        %v1470 = vld [vmem:[#allocation2 + $0x64] sm:$0xf]
        %v1471 = vld [vmem:[#allocation2 + $0x6c] sm:$0xf]
        %v1472 = vld [vmem:[#allocation2 + $0x70] sm:$0xf]
        %v1473 = vld [vmem:[#allocation2 + $0x78] sm:$0xf]
        %v1474 = vld [vmem:[#allocation2 + $0x7c] sm:$0xf]
        %v1475 = vld [vmem:[#allocation2 + $0x84] sm:$0xf]
        %v1476 = vld [vmem:[#allocation2 + $0x88] sm:$0xf]
        %v1477 = vld [vmem:[#allocation2 + $0x90] sm:$0xf]
        %v1478 = vld [vmem:[#allocation2 + $0x94] sm:$0xf]
        %v1479 = vld [vmem:[#allocation2 + $0x9c] sm:$0xf]
        %v1480 = vld [vmem:[#allocation2 + $0xa0] sm:$0xf]
        %v1481 = vld [vmem:[#allocation2 + $0xa8] sm:$0xf]
        %v1482 = vld [vmem:[#allocation2 + $0xac] sm:$0xf]
        %v1483 = vld [vmem:[#allocation2 + $0xb4] sm:$0xf]
        %v1484 = vld [vmem:[#allocation2 + $0xb8] sm:$0xf]
        %v1517 = vunpack.c.l.b16 %v1453
        %v1518 = vunpack.c.l.b16 %v1454
        %v1519 = vunpack.c.l.b16 %v1455
        %v1520 = vunpack.c.l.b16 %v1456
        %v1521 = vunpack.c.l.b16 %v1457
        %v1522 = vunpack.c.l.b16 %v1458
        %v1523 = vunpack.c.l.b16 %v1459
        %v1524 = vunpack.c.l.b16 %v1460
        %v1525 = vunpack.c.l.b16 %v1461
        %v1526 = vunpack.c.l.b16 %v1462
        %v1527 = vunpack.c.l.b16 %v1463
        %v1528 = vunpack.c.l.b16 %v1464
        %v1529 = vunpack.c.l.b16 %v1465
        %v1530 = vunpack.c.l.b16 %v1466
        %v1531 = vunpack.c.l.b16 %v1467
        %v1532 = vunpack.c.l.b16 %v1468
        %v1533 = vunpack.c.l.b16 %v1469
        %v1534 = vunpack.c.l.b16 %v1470
        %v1535 = vunpack.c.l.b16 %v1471
        %v1536 = vunpack.c.l.b16 %v1472
        %v1537 = vunpack.c.l.b16 %v1473
        %v1538 = vunpack.c.l.b16 %v1474
        %v1539 = vunpack.c.l.b16 %v1475
        %v1540 = vunpack.c.l.b16 %v1476
        %v1541 = vunpack.c.l.b16 %v1477
        %v1542 = vunpack.c.l.b16 %v1478
        %v1543 = vunpack.c.l.b16 %v1479
        %v1544 = vunpack.c.l.b16 %v1480
        %v1545 = vunpack.c.l.b16 %v1481
        %v1546 = vunpack.c.l.b16 %v1482
        %v1547 = vunpack.c.l.b16 %v1483
        %v1548 = vunpack.c.l.b16 %v1484
        %v1549 = vpack.c.b16 %v1518, %v1517
        %v1550 = vpack.c.b16 %v1520, %v1519
        %v1551 = vpack.c.b16 %v1522, %v1521
        %v1552 = vpack.c.b16 %v1524, %v1523
        %v1553 = vpack.c.b16 %v1526, %v1525
        %v1554 = vpack.c.b16 %v1528, %v1527
        %v1555 = vpack.c.b16 %v1530, %v1529
        %v1556 = vpack.c.b16 %v1532, %v1531
        %v1557 = vpack.c.b16 %v1534, %v1533
        %v1558 = vpack.c.b16 %v1536, %v1535
        %v1559 = vpack.c.b16 %v1538, %v1537
        %v1560 = vpack.c.b16 %v1540, %v1539
        %v1561 = vpack.c.b16 %v1542, %v1541
        %v1562 = vpack.c.b16 %v1544, %v1543
        %v1563 = vpack.c.b16 %v1546, %v1545
        %v1564 = vpack.c.b16 %v1548, %v1547
        %1581 = vst.msk [vmem:[#allocation3] sm:$0xff] %vm887, %v1549
        %1582 = vst.msk [vmem:[#allocation3 + $0x8] sm:$0xff] %vm887, %v1550
        %1583 = vst.msk [vmem:[#allocation3 + $0x10] sm:$0xff] %vm887, %v1551
        %1584 = vst.msk [vmem:[#allocation3 + $0x18] sm:$0xff] %vm887, %v1552
        %1585 = vst.msk [vmem:[#allocation3 + $0x20] sm:$0xff] %vm887, %v1553
        %1586 = vst.msk [vmem:[#allocation3 + $0x28] sm:$0xff] %vm887, %v1554
        %1587 = vst.msk [vmem:[#allocation3 + $0x30] sm:$0xff] %vm887, %v1555
        %1588 = vst.msk [vmem:[#allocation3 + $0x38] sm:$0xff] %vm887, %v1556
        %1589 = vst.msk [vmem:[#allocation3 + $0x40] sm:$0xff] %vm887, %v1557
        %1590 = vst.msk [vmem:[#allocation3 + $0x48] sm:$0xff] %vm887, %v1558
        %1591 = vst.msk [vmem:[#allocation3 + $0x50] sm:$0xff] %vm887, %v1559
        %1592 = vst.msk [vmem:[#allocation3 + $0x58] sm:$0xff] %vm887, %v1560
        %1593 = vst.msk [vmem:[#allocation3 + $0x60] sm:$0xff] %vm887, %v1561
        %1594 = vst.msk [vmem:[#allocation3 + $0x68] sm:$0xff] %vm887, %v1562
        %1595 = vst.msk [vmem:[#allocation3 + $0x70] sm:$0xff] %vm887, %v1563
        %1596 = vst.msk [vmem:[#allocation3 + $0x78] sm:$0xff] %vm887, %v1564
        %v1597 = vld [vmem:[#allocation2] sm:$0xf]
        %v1598 = vld [vmem:[#allocation2 + $0x4] sm:$0xf]
        %v1599 = vld [vmem:[#allocation2 + $0x8] sm:$0x1]
        %v1600 = vld [vmem:[#allocation2 + $0xc] sm:$0xf]
        %v1601 = vld [vmem:[#allocation2 + $0x10] sm:$0xf]
        %v1602 = vld [vmem:[#allocation2 + $0x14] sm:$0x1]
        %v1603 = vld [vmem:[#allocation2 + $0x18] sm:$0xf]
        %v1604 = vld [vmem:[#allocation2 + $0x1c] sm:$0xf]
        %v1605 = vld [vmem:[#allocation2 + $0x20] sm:$0x1]
        %v1606 = vld [vmem:[#allocation2 + $0x24] sm:$0xf]
        %v1607 = vld [vmem:[#allocation2 + $0x28] sm:$0xf]
        %v1608 = vld [vmem:[#allocation2 + $0x2c] sm:$0x1]
        %v1609 = vld [vmem:[#allocation2 + $0x30] sm:$0xf]
        %v1610 = vld [vmem:[#allocation2 + $0x34] sm:$0xf]
        %v1611 = vld [vmem:[#allocation2 + $0x38] sm:$0x1]
        %v1612 = vld [vmem:[#allocation2 + $0x3c] sm:$0xf]
        %v1613 = vld [vmem:[#allocation2 + $0x40] sm:$0xf]
        %v1614 = vld [vmem:[#allocation2 + $0x44] sm:$0x1]
        %v1615 = vld [vmem:[#allocation2 + $0x48] sm:$0xf]
        %v1616 = vld [vmem:[#allocation2 + $0x4c] sm:$0xf]
        %v1617 = vld [vmem:[#allocation2 + $0x50] sm:$0x1]
        %v1618 = vld [vmem:[#allocation2 + $0x54] sm:$0xf]
        %v1619 = vld [vmem:[#allocation2 + $0x58] sm:$0xf]
        %v1620 = vld [vmem:[#allocation2 + $0x5c] sm:$0x1]
        %v1621 = vld [vmem:[#allocation2 + $0x60] sm:$0xf]
        %v1622 = vld [vmem:[#allocation2 + $0x64] sm:$0xf]
        %v1623 = vld [vmem:[#allocation2 + $0x68] sm:$0x1]
        %v1624 = vld [vmem:[#allocation2 + $0x6c] sm:$0xf]
        %v1625 = vld [vmem:[#allocation2 + $0x70] sm:$0xf]
        %v1626 = vld [vmem:[#allocation2 + $0x74] sm:$0x1]
        %v1627 = vld [vmem:[#allocation2 + $0x78] sm:$0xf]
        %v1628 = vld [vmem:[#allocation2 + $0x7c] sm:$0xf]
        %v1629 = vld [vmem:[#allocation2 + $0x80] sm:$0x1]
        %v1630 = vld [vmem:[#allocation2 + $0x84] sm:$0xf]
        %v1631 = vld [vmem:[#allocation2 + $0x88] sm:$0xf]
        %v1632 = vld [vmem:[#allocation2 + $0x8c] sm:$0x1]
        %v1633 = vld [vmem:[#allocation2 + $0x90] sm:$0xf]
        %v1634 = vld [vmem:[#allocation2 + $0x94] sm:$0xf]
        %v1635 = vld [vmem:[#allocation2 + $0x98] sm:$0x1]
        %v1636 = vld [vmem:[#allocation2 + $0x9c] sm:$0xf]
        %v1637 = vld [vmem:[#allocation2 + $0xa0] sm:$0xf]
        %v1638 = vld [vmem:[#allocation2 + $0xa4] sm:$0x1]
        %v1639 = vld [vmem:[#allocation2 + $0xa8] sm:$0xf]
        %v1640 = vld [vmem:[#allocation2 + $0xac] sm:$0xf]
        %v1641 = vld [vmem:[#allocation2 + $0xb0] sm:$0x1]
        %v1642 = vld [vmem:[#allocation2 + $0xb4] sm:$0xf]
        %v1643 = vld [vmem:[#allocation2 + $0xb8] sm:$0xf]
        %v1644 = vld [vmem:[#allocation2 + $0xbc] sm:$0x1]
        %vm1645 = vsmask.f32 3328
        %vm1646 = vsmask.f32 7440
        %vm1647 = vmor %vm1645, %vm1646
        %v1649 = vshrl.u32 %v1597, 16
        %v1651 = vrot.slane %v1649, 4
        %v1652 = vshll.u32 %v1597, 16
        %v1654 = vrot.slane %v1652, 5
        %v1655 = vor.u32 %v1651, %v1654
        %v1656 = vrot.slane %v1655, 4
        %v1658 = vshll.u32 %v1598, 16
        %v1660 = vrot.slane %v1658, 5
        %v1661 = vsel %vm1647, %v1656, %v1660
        %v1662 = vshrl.u32 %v1598, 16
        %v1664 = vrot.slane %v1662, 4
        %v1665 = vor.u32 %v1664, %v1660
        %v1666 = vrot.slane %v1665, 4
        %v1668 = vshll.u32 %v1599, 16
        %v1670 = vrot.slane %v1668, 5
        %v1671 = vsel %vm1647, %v1666, %v1670
        %v1673 = vshrl.u32 %v1600, 16
        %v1675 = vrot.slane %v1673, 4
        %v1676 = vshll.u32 %v1600, 16
        %v1678 = vrot.slane %v1676, 5
        %v1679 = vor.u32 %v1675, %v1678
        %v1680 = vrot.slane %v1679, 4
        %v1682 = vshll.u32 %v1601, 16
        %v1684 = vrot.slane %v1682, 5
        %v1685 = vsel %vm1647, %v1680, %v1684
        %v1686 = vshrl.u32 %v1601, 16
        %v1688 = vrot.slane %v1686, 4
        %v1689 = vor.u32 %v1688, %v1684
        %v1690 = vrot.slane %v1689, 4
        %v1692 = vshll.u32 %v1602, 16
        %v1694 = vrot.slane %v1692, 5
        %v1695 = vsel %vm1647, %v1690, %v1694
        %v1697 = vshrl.u32 %v1603, 16
        %v1699 = vrot.slane %v1697, 4
        %v1700 = vshll.u32 %v1603, 16
        %v1702 = vrot.slane %v1700, 5
        %v1703 = vor.u32 %v1699, %v1702
        %v1704 = vrot.slane %v1703, 4
        %v1706 = vshll.u32 %v1604, 16
        %v1708 = vrot.slane %v1706, 5
        %v1709 = vsel %vm1647, %v1704, %v1708
        %v1710 = vshrl.u32 %v1604, 16
        %v1712 = vrot.slane %v1710, 4
        %v1713 = vor.u32 %v1712, %v1708
        %v1714 = vrot.slane %v1713, 4
        %v1716 = vshll.u32 %v1605, 16
        %v1718 = vrot.slane %v1716, 5
        %v1719 = vsel %vm1647, %v1714, %v1718
        %v1721 = vshrl.u32 %v1606, 16
        %v1723 = vrot.slane %v1721, 4
        %v1724 = vshll.u32 %v1606, 16
        %v1726 = vrot.slane %v1724, 5
        %v1727 = vor.u32 %v1723, %v1726
        %v1728 = vrot.slane %v1727, 4
        %v1730 = vshll.u32 %v1607, 16
        %v1732 = vrot.slane %v1730, 5
        %v1733 = vsel %vm1647, %v1728, %v1732
        %v1734 = vshrl.u32 %v1607, 16
        %v1736 = vrot.slane %v1734, 4
        %v1737 = vor.u32 %v1736, %v1732
        %v1738 = vrot.slane %v1737, 4
        %v1740 = vshll.u32 %v1608, 16
        %v1742 = vrot.slane %v1740, 5
        %v1743 = vsel %vm1647, %v1738, %v1742
        %v1745 = vshrl.u32 %v1609, 16
        %v1747 = vrot.slane %v1745, 4
        %v1748 = vshll.u32 %v1609, 16
        %v1750 = vrot.slane %v1748, 5
        %v1751 = vor.u32 %v1747, %v1750
        %v1752 = vrot.slane %v1751, 4
        %v1754 = vshll.u32 %v1610, 16
        %v1756 = vrot.slane %v1754, 5
        %v1757 = vsel %vm1647, %v1752, %v1756
        %v1758 = vshrl.u32 %v1610, 16
        %v1760 = vrot.slane %v1758, 4
        %v1761 = vor.u32 %v1760, %v1756
        %v1762 = vrot.slane %v1761, 4
        %v1764 = vshll.u32 %v1611, 16
        %v1766 = vrot.slane %v1764, 5
        %v1767 = vsel %vm1647, %v1762, %v1766
        %v1769 = vshrl.u32 %v1612, 16
        %v1771 = vrot.slane %v1769, 4
        %v1772 = vshll.u32 %v1612, 16
        %v1774 = vrot.slane %v1772, 5
        %v1775 = vor.u32 %v1771, %v1774
        %v1776 = vrot.slane %v1775, 4
        %v1778 = vshll.u32 %v1613, 16
        %v1780 = vrot.slane %v1778, 5
        %v1781 = vsel %vm1647, %v1776, %v1780
        %v1782 = vshrl.u32 %v1613, 16
        %v1784 = vrot.slane %v1782, 4
        %v1785 = vor.u32 %v1784, %v1780
        %v1786 = vrot.slane %v1785, 4
        %v1788 = vshll.u32 %v1614, 16
        %v1790 = vrot.slane %v1788, 5
        %v1791 = vsel %vm1647, %v1786, %v1790
        %v1793 = vshrl.u32 %v1615, 16
        %v1795 = vrot.slane %v1793, 4
        %v1796 = vshll.u32 %v1615, 16
        %v1798 = vrot.slane %v1796, 5
        %v1799 = vor.u32 %v1795, %v1798
        %v1800 = vrot.slane %v1799, 4
        %v1802 = vshll.u32 %v1616, 16
        %v1804 = vrot.slane %v1802, 5
        %v1805 = vsel %vm1647, %v1800, %v1804
        %v1806 = vshrl.u32 %v1616, 16
        %v1808 = vrot.slane %v1806, 4
        %v1809 = vor.u32 %v1808, %v1804
        %v1810 = vrot.slane %v1809, 4
        %v1812 = vshll.u32 %v1617, 16
        %v1814 = vrot.slane %v1812, 5
        %v1815 = vsel %vm1647, %v1810, %v1814
        %v1817 = vshrl.u32 %v1618, 16
        %v1819 = vrot.slane %v1817, 4
        %v1820 = vshll.u32 %v1618, 16
        %v1822 = vrot.slane %v1820, 5
        %v1823 = vor.u32 %v1819, %v1822
        %v1824 = vrot.slane %v1823, 4
        %v1826 = vshll.u32 %v1619, 16
        %v1828 = vrot.slane %v1826, 5
        %v1829 = vsel %vm1647, %v1824, %v1828
        %v1830 = vshrl.u32 %v1619, 16
        %v1832 = vrot.slane %v1830, 4
        %v1833 = vor.u32 %v1832, %v1828
        %v1834 = vrot.slane %v1833, 4
        %v1836 = vshll.u32 %v1620, 16
        %v1838 = vrot.slane %v1836, 5
        %v1839 = vsel %vm1647, %v1834, %v1838
        %v1841 = vshrl.u32 %v1621, 16
        %v1843 = vrot.slane %v1841, 4
        %v1844 = vshll.u32 %v1621, 16
        %v1846 = vrot.slane %v1844, 5
        %v1847 = vor.u32 %v1843, %v1846
        %v1848 = vrot.slane %v1847, 4
        %v1850 = vshll.u32 %v1622, 16
        %v1852 = vrot.slane %v1850, 5
        %v1853 = vsel %vm1647, %v1848, %v1852
        %v1854 = vshrl.u32 %v1622, 16
        %v1856 = vrot.slane %v1854, 4
        %v1857 = vor.u32 %v1856, %v1852
        %v1858 = vrot.slane %v1857, 4
        %v1860 = vshll.u32 %v1623, 16
        %v1862 = vrot.slane %v1860, 5
        %v1863 = vsel %vm1647, %v1858, %v1862
        %v1865 = vshrl.u32 %v1624, 16
        %v1867 = vrot.slane %v1865, 4
        %v1868 = vshll.u32 %v1624, 16
        %v1870 = vrot.slane %v1868, 5
        %v1871 = vor.u32 %v1867, %v1870
        %v1872 = vrot.slane %v1871, 4
        %v1874 = vshll.u32 %v1625, 16
        %v1876 = vrot.slane %v1874, 5
        %v1877 = vsel %vm1647, %v1872, %v1876
        %v1878 = vshrl.u32 %v1625, 16
        %v1880 = vrot.slane %v1878, 4
        %v1881 = vor.u32 %v1880, %v1876
        %v1882 = vrot.slane %v1881, 4
        %v1884 = vshll.u32 %v1626, 16
        %v1886 = vrot.slane %v1884, 5
        %v1887 = vsel %vm1647, %v1882, %v1886
        %v1889 = vshrl.u32 %v1627, 16
        %v1891 = vrot.slane %v1889, 4
        %v1892 = vshll.u32 %v1627, 16
        %v1894 = vrot.slane %v1892, 5
        %v1895 = vor.u32 %v1891, %v1894
        %v1896 = vrot.slane %v1895, 4
        %v1898 = vshll.u32 %v1628, 16
        %v1900 = vrot.slane %v1898, 5
        %v1901 = vsel %vm1647, %v1896, %v1900
        %v1902 = vshrl.u32 %v1628, 16
        %v1904 = vrot.slane %v1902, 4
        %v1905 = vor.u32 %v1904, %v1900
        %v1906 = vrot.slane %v1905, 4
        %v1908 = vshll.u32 %v1629, 16
        %v1910 = vrot.slane %v1908, 5
        %v1911 = vsel %vm1647, %v1906, %v1910
        %v1913 = vshrl.u32 %v1630, 16
        %v1915 = vrot.slane %v1913, 4
        %v1916 = vshll.u32 %v1630, 16
        %v1918 = vrot.slane %v1916, 5
        %v1919 = vor.u32 %v1915, %v1918
        %v1920 = vrot.slane %v1919, 4
        %v1922 = vshll.u32 %v1631, 16
        %v1924 = vrot.slane %v1922, 5
        %v1925 = vsel %vm1647, %v1920, %v1924
        %v1926 = vshrl.u32 %v1631, 16
        %v1928 = vrot.slane %v1926, 4
        %v1929 = vor.u32 %v1928, %v1924
        %v1930 = vrot.slane %v1929, 4
        %v1932 = vshll.u32 %v1632, 16
        %v1934 = vrot.slane %v1932, 5
        %v1935 = vsel %vm1647, %v1930, %v1934
        %v1937 = vshrl.u32 %v1633, 16
        %v1939 = vrot.slane %v1937, 4
        %v1940 = vshll.u32 %v1633, 16
        %v1942 = vrot.slane %v1940, 5
        %v1943 = vor.u32 %v1939, %v1942
        %v1944 = vrot.slane %v1943, 4
        %v1946 = vshll.u32 %v1634, 16
        %v1948 = vrot.slane %v1946, 5
        %v1949 = vsel %vm1647, %v1944, %v1948
        %v1950 = vshrl.u32 %v1634, 16
        %v1952 = vrot.slane %v1950, 4
        %v1953 = vor.u32 %v1952, %v1948
        %v1954 = vrot.slane %v1953, 4
        %v1956 = vshll.u32 %v1635, 16
        %v1958 = vrot.slane %v1956, 5
        %v1959 = vsel %vm1647, %v1954, %v1958
        %v1961 = vshrl.u32 %v1636, 16
        %v1963 = vrot.slane %v1961, 4
        %v1964 = vshll.u32 %v1636, 16
        %v1966 = vrot.slane %v1964, 5
        %v1967 = vor.u32 %v1963, %v1966
        %v1968 = vrot.slane %v1967, 4
        %v1970 = vshll.u32 %v1637, 16
        %v1972 = vrot.slane %v1970, 5
        %v1973 = vsel %vm1647, %v1968, %v1972
        %v1974 = vshrl.u32 %v1637, 16
        %v1976 = vrot.slane %v1974, 4
        %v1977 = vor.u32 %v1976, %v1972
        %v1978 = vrot.slane %v1977, 4
        %v1980 = vshll.u32 %v1638, 16
        %v1982 = vrot.slane %v1980, 5
        %v1983 = vsel %vm1647, %v1978, %v1982
        %v1985 = vshrl.u32 %v1639, 16
        %v1987 = vrot.slane %v1985, 4
        %v1988 = vshll.u32 %v1639, 16
        %v1990 = vrot.slane %v1988, 5
        %v1991 = vor.u32 %v1987, %v1990
        %v1992 = vrot.slane %v1991, 4
        %v1994 = vshll.u32 %v1640, 16
        %v1996 = vrot.slane %v1994, 5
        %v1997 = vsel %vm1647, %v1992, %v1996
        %v1998 = vshrl.u32 %v1640, 16
        %v2000 = vrot.slane %v1998, 4
        %v2001 = vor.u32 %v2000, %v1996
        %v2002 = vrot.slane %v2001, 4
        %v2004 = vshll.u32 %v1641, 16
        %v2006 = vrot.slane %v2004, 5
        %v2007 = vsel %vm1647, %v2002, %v2006
        %v2009 = vshrl.u32 %v1642, 16
        %v2011 = vrot.slane %v2009, 4
        %v2012 = vshll.u32 %v1642, 16
        %v2014 = vrot.slane %v2012, 5
        %v2015 = vor.u32 %v2011, %v2014
        %v2016 = vrot.slane %v2015, 4
        %v2018 = vshll.u32 %v1643, 16
        %v2020 = vrot.slane %v2018, 5
        %v2021 = vsel %vm1647, %v2016, %v2020
        %v2022 = vshrl.u32 %v1643, 16
        %v2024 = vrot.slane %v2022, 4
        %v2025 = vor.u32 %v2024, %v2020
        %v2026 = vrot.slane %v2025, 4
        %v2028 = vshll.u32 %v1644, 16
        %v2030 = vrot.slane %v2028, 5
        %v2031 = vsel %vm1647, %v2026, %v2030
        %v2032 = vunpack.c.l.b16 %v1661
        %v2033 = vunpack.c.l.b16 %v1671
        %v2034 = vunpack.c.l.b16 %v1685
        %v2035 = vunpack.c.l.b16 %v1695
        %v2036 = vunpack.c.l.b16 %v1709
        %v2037 = vunpack.c.l.b16 %v1719
        %v2038 = vunpack.c.l.b16 %v1733
        %v2039 = vunpack.c.l.b16 %v1743
        %v2040 = vunpack.c.l.b16 %v1757
        %v2041 = vunpack.c.l.b16 %v1767
        %v2042 = vunpack.c.l.b16 %v1781
        %v2043 = vunpack.c.l.b16 %v1791
        %v2044 = vunpack.c.l.b16 %v1805
        %v2045 = vunpack.c.l.b16 %v1815
        %v2046 = vunpack.c.l.b16 %v1829
        %v2047 = vunpack.c.l.b16 %v1839
        %v2048 = vunpack.c.l.b16 %v1853
        %v2049 = vunpack.c.l.b16 %v1863
        %v2050 = vunpack.c.l.b16 %v1877
        %v2051 = vunpack.c.l.b16 %v1887
        %v2052 = vunpack.c.l.b16 %v1901
        %v2053 = vunpack.c.l.b16 %v1911
        %v2054 = vunpack.c.l.b16 %v1925
        %v2055 = vunpack.c.l.b16 %v1935
        %v2056 = vunpack.c.l.b16 %v1949
        %v2057 = vunpack.c.l.b16 %v1959
        %v2058 = vunpack.c.l.b16 %v1973
        %v2059 = vunpack.c.l.b16 %v1983
        %v2060 = vunpack.c.l.b16 %v1997
        %v2061 = vunpack.c.l.b16 %v2007
        %v2062 = vunpack.c.l.b16 %v2021
        %v2063 = vunpack.c.l.b16 %v2031
        %v2064 = vpack.c.b16 %v2033, %v2032
        %v2065 = vpack.c.b16 %v2035, %v2034
        %v2066 = vpack.c.b16 %v2037, %v2036
        %v2067 = vpack.c.b16 %v2039, %v2038
        %v2068 = vpack.c.b16 %v2041, %v2040
        %v2069 = vpack.c.b16 %v2043, %v2042
        %v2070 = vpack.c.b16 %v2045, %v2044
        %v2071 = vpack.c.b16 %v2047, %v2046
        %v2072 = vpack.c.b16 %v2049, %v2048
        %v2073 = vpack.c.b16 %v2051, %v2050
        %v2074 = vpack.c.b16 %v2053, %v2052
        %v2075 = vpack.c.b16 %v2055, %v2054
        %v2076 = vpack.c.b16 %v2057, %v2056
        %v2077 = vpack.c.b16 %v2059, %v2058
        %v2078 = vpack.c.b16 %v2061, %v2060
        %v2079 = vpack.c.b16 %v2063, %v2062
        %2080 = vrot.lane.b32.xlu0 %v2064, 8
        %v2081 = vpop.permute.xlu0 %2080
        %2082 = vrot.lane.b32.xlu0 %v2065, 8
        %v2083 = vpop.permute.xlu0 %2082
        %2084 = vrot.lane.b32.xlu0 %v2066, 8
        %v2085 = vpop.permute.xlu0 %2084
        %2086 = vrot.lane.b32.xlu0 %v2067, 8
        %v2087 = vpop.permute.xlu0 %2086
        %2088 = vrot.lane.b32.xlu0 %v2068, 8
        %v2089 = vpop.permute.xlu0 %2088
        %2090 = vrot.lane.b32.xlu0 %v2069, 8
        %v2091 = vpop.permute.xlu0 %2090
        %2092 = vrot.lane.b32.xlu0 %v2070, 8
        %v2093 = vpop.permute.xlu0 %2092
        %2094 = vrot.lane.b32.xlu0 %v2071, 8
        %v2095 = vpop.permute.xlu0 %2094
        %2096 = vrot.lane.b32.xlu0 %v2072, 8
        %v2097 = vpop.permute.xlu0 %2096
        %2098 = vrot.lane.b32.xlu0 %v2073, 8
        %v2099 = vpop.permute.xlu0 %2098
        %2100 = vrot.lane.b32.xlu0 %v2074, 8
        %v2101 = vpop.permute.xlu0 %2100
        %2102 = vrot.lane.b32.xlu0 %v2075, 8
        %v2103 = vpop.permute.xlu0 %2102
        %2104 = vrot.lane.b32.xlu0 %v2076, 8
        %v2105 = vpop.permute.xlu0 %2104
        %2106 = vrot.lane.b32.xlu0 %v2077, 8
        %v2107 = vpop.permute.xlu0 %2106
        %2108 = vrot.lane.b32.xlu0 %v2078, 8
        %v2109 = vpop.permute.xlu0 %2108
        %2110 = vrot.lane.b32.xlu0 %v2079, 8
        %v2111 = vpop.permute.xlu0 %2110
        %vm2128 = vcmask 130112
        %2129 = vst.msk [vmem:[#allocation3] sm:$0xff] %vm2128, %v2081
        %2130 = vst.msk [vmem:[#allocation3 + $0x8] sm:$0xff] %vm2128, %v2083
        %2131 = vst.msk [vmem:[#allocation3 + $0x10] sm:$0xff] %vm2128, %v2085
        %2132 = vst.msk [vmem:[#allocation3 + $0x18] sm:$0xff] %vm2128, %v2087
        %2133 = vst.msk [vmem:[#allocation3 + $0x20] sm:$0xff] %vm2128, %v2089
        %2134 = vst.msk [vmem:[#allocation3 + $0x28] sm:$0xff] %vm2128, %v2091
        %2135 = vst.msk [vmem:[#allocation3 + $0x30] sm:$0xff] %vm2128, %v2093
        %2136 = vst.msk [vmem:[#allocation3 + $0x38] sm:$0xff] %vm2128, %v2095
        %2137 = vst.msk [vmem:[#allocation3 + $0x40] sm:$0xff] %vm2128, %v2097
        %2138 = vst.msk [vmem:[#allocation3 + $0x48] sm:$0xff] %vm2128, %v2099
        %2139 = vst.msk [vmem:[#allocation3 + $0x50] sm:$0xff] %vm2128, %v2101
        %2140 = vst.msk [vmem:[#allocation3 + $0x58] sm:$0xff] %vm2128, %v2103
        %2141 = vst.msk [vmem:[#allocation3 + $0x60] sm:$0xff] %vm2128, %v2105
        %2142 = vst.msk [vmem:[#allocation3 + $0x68] sm:$0xff] %vm2128, %v2107
        %2143 = vst.msk [vmem:[#allocation3 + $0x70] sm:$0xff] %vm2128, %v2109
        %2144 = vst.msk [vmem:[#allocation3 + $0x78] sm:$0xff] %vm2128, %v2111
        %v2145 = vld [vmem:[#allocation2] sm:$0xe]
        %v2146 = vld [vmem:[#allocation2 + $0x4] sm:$0xf]
        %v2147 = vld [vmem:[#allocation2 + $0x8] sm:$0x1]
        %v2148 = vld [vmem:[#allocation2 + $0xc] sm:$0xe]
        %v2149 = vld [vmem:[#allocation2 + $0x10] sm:$0xf]
        %v2150 = vld [vmem:[#allocation2 + $0x14] sm:$0x1]
        %v2151 = vld [vmem:[#allocation2 + $0x18] sm:$0xe]
        %v2152 = vld [vmem:[#allocation2 + $0x1c] sm:$0xf]
        %v2153 = vld [vmem:[#allocation2 + $0x20] sm:$0x1]
        %v2154 = vld [vmem:[#allocation2 + $0x24] sm:$0xe]
        %v2155 = vld [vmem:[#allocation2 + $0x28] sm:$0xf]
        %v2156 = vld [vmem:[#allocation2 + $0x2c] sm:$0x1]
        %v2157 = vld [vmem:[#allocation2 + $0x30] sm:$0xe]
        %v2158 = vld [vmem:[#allocation2 + $0x34] sm:$0xf]
        %v2159 = vld [vmem:[#allocation2 + $0x38] sm:$0x1]
        %v2160 = vld [vmem:[#allocation2 + $0x3c] sm:$0xe]
        %v2161 = vld [vmem:[#allocation2 + $0x40] sm:$0xf]
        %v2162 = vld [vmem:[#allocation2 + $0x44] sm:$0x1]
        %v2163 = vld [vmem:[#allocation2 + $0x48] sm:$0xe]
        %v2164 = vld [vmem:[#allocation2 + $0x4c] sm:$0xf]
        %v2165 = vld [vmem:[#allocation2 + $0x50] sm:$0x1]
        %v2166 = vld [vmem:[#allocation2 + $0x54] sm:$0xe]
        %v2167 = vld [vmem:[#allocation2 + $0x58] sm:$0xf]
        %v2168 = vld [vmem:[#allocation2 + $0x5c] sm:$0x1]
        %v2169 = vld [vmem:[#allocation2 + $0x60] sm:$0xe]
        %v2170 = vld [vmem:[#allocation2 + $0x64] sm:$0xf]
        %v2171 = vld [vmem:[#allocation2 + $0x68] sm:$0x1]
        %v2172 = vld [vmem:[#allocation2 + $0x6c] sm:$0xe]
        %v2173 = vld [vmem:[#allocation2 + $0x70] sm:$0xf]
        %v2174 = vld [vmem:[#allocation2 + $0x74] sm:$0x1]
        %v2175 = vld [vmem:[#allocation2 + $0x78] sm:$0xe]
        %v2176 = vld [vmem:[#allocation2 + $0x7c] sm:$0xf]
        %v2177 = vld [vmem:[#allocation2 + $0x80] sm:$0x1]
        %v2178 = vld [vmem:[#allocation2 + $0x84] sm:$0xe]
        %v2179 = vld [vmem:[#allocation2 + $0x88] sm:$0xf]
        %v2180 = vld [vmem:[#allocation2 + $0x8c] sm:$0x1]
        %v2181 = vld [vmem:[#allocation2 + $0x90] sm:$0xe]
        %v2182 = vld [vmem:[#allocation2 + $0x94] sm:$0xf]
        %v2183 = vld [vmem:[#allocation2 + $0x98] sm:$0x1]
        %v2184 = vld [vmem:[#allocation2 + $0x9c] sm:$0xe]
        %v2185 = vld [vmem:[#allocation2 + $0xa0] sm:$0xf]
        %v2186 = vld [vmem:[#allocation2 + $0xa4] sm:$0x1]
        %v2187 = vld [vmem:[#allocation2 + $0xa8] sm:$0xe]
        %v2188 = vld [vmem:[#allocation2 + $0xac] sm:$0xf]
        %v2189 = vld [vmem:[#allocation2 + $0xb0] sm:$0x1]
        %v2190 = vld [vmem:[#allocation2 + $0xb4] sm:$0xe]
        %v2191 = vld [vmem:[#allocation2 + $0xb8] sm:$0xf]
        %v2192 = vld [vmem:[#allocation2 + $0xbc] sm:$0x1]
        %vm2241 = vcmask 1042432
        %vm2242 = vcmask 1046532
        %vm2243 = vmor %vm2241, %vm2242
        %v2244 = vrot.slane %v2145, 5
        %v2245 = vrot.slane %v2244, 4
        %v2246 = vrot.slane %v2146, 5
        %v2247 = vsel %vm2243, %v2245, %v2246
        %v2248 = vrot.slane %v2246, 4
        %v2249 = vrot.slane %v2147, 5
        %v2250 = vsel %vm2243, %v2248, %v2249
        %v2251 = vrot.slane %v2148, 5
        %v2252 = vrot.slane %v2251, 4
        %v2253 = vrot.slane %v2149, 5
        %v2254 = vsel %vm2243, %v2252, %v2253
        %v2255 = vrot.slane %v2253, 4
        %v2256 = vrot.slane %v2150, 5
        %v2257 = vsel %vm2243, %v2255, %v2256
        %v2258 = vrot.slane %v2151, 5
        %v2259 = vrot.slane %v2258, 4
        %v2260 = vrot.slane %v2152, 5
        %v2261 = vsel %vm2243, %v2259, %v2260
        %v2262 = vrot.slane %v2260, 4
        %v2263 = vrot.slane %v2153, 5
        %v2264 = vsel %vm2243, %v2262, %v2263
        %v2265 = vrot.slane %v2154, 5
        %v2266 = vrot.slane %v2265, 4
        %v2267 = vrot.slane %v2155, 5
        %v2268 = vsel %vm2243, %v2266, %v2267
        %v2269 = vrot.slane %v2267, 4
        %v2270 = vrot.slane %v2156, 5
        %v2271 = vsel %vm2243, %v2269, %v2270
        %v2272 = vrot.slane %v2157, 5
        %v2273 = vrot.slane %v2272, 4
        %v2274 = vrot.slane %v2158, 5
        %v2275 = vsel %vm2243, %v2273, %v2274
        %v2276 = vrot.slane %v2274, 4
        %v2277 = vrot.slane %v2159, 5
        %v2278 = vsel %vm2243, %v2276, %v2277
        %v2279 = vrot.slane %v2160, 5
        %v2280 = vrot.slane %v2279, 4
        %v2281 = vrot.slane %v2161, 5
        %v2282 = vsel %vm2243, %v2280, %v2281
        %v2283 = vrot.slane %v2281, 4
        %v2284 = vrot.slane %v2162, 5
        %v2285 = vsel %vm2243, %v2283, %v2284
        %v2286 = vrot.slane %v2163, 5
        %v2287 = vrot.slane %v2286, 4
        %v2288 = vrot.slane %v2164, 5
        %v2289 = vsel %vm2243, %v2287, %v2288
        %v2290 = vrot.slane %v2288, 4
        %v2291 = vrot.slane %v2165, 5
        %v2292 = vsel %vm2243, %v2290, %v2291
        %v2293 = vrot.slane %v2166, 5
        %v2294 = vrot.slane %v2293, 4
        %v2295 = vrot.slane %v2167, 5
        %v2296 = vsel %vm2243, %v2294, %v2295
        %v2297 = vrot.slane %v2295, 4
        %v2298 = vrot.slane %v2168, 5
        %v2299 = vsel %vm2243, %v2297, %v2298
        %v2300 = vrot.slane %v2169, 5
        %v2301 = vrot.slane %v2300, 4
        %v2302 = vrot.slane %v2170, 5
        %v2303 = vsel %vm2243, %v2301, %v2302
        %v2304 = vrot.slane %v2302, 4
        %v2305 = vrot.slane %v2171, 5
        %v2306 = vsel %vm2243, %v2304, %v2305
        %v2307 = vrot.slane %v2172, 5
        %v2308 = vrot.slane %v2307, 4
        %v2309 = vrot.slane %v2173, 5
        %v2310 = vsel %vm2243, %v2308, %v2309
        %v2311 = vrot.slane %v2309, 4
        %v2312 = vrot.slane %v2174, 5
        %v2313 = vsel %vm2243, %v2311, %v2312
        %v2314 = vrot.slane %v2175, 5
        %v2315 = vrot.slane %v2314, 4
        %v2316 = vrot.slane %v2176, 5
        %v2317 = vsel %vm2243, %v2315, %v2316
        %v2318 = vrot.slane %v2316, 4
        %v2319 = vrot.slane %v2177, 5
        %v2320 = vsel %vm2243, %v2318, %v2319
        %v2321 = vrot.slane %v2178, 5
        %v2322 = vrot.slane %v2321, 4
        %v2323 = vrot.slane %v2179, 5
        %v2324 = vsel %vm2243, %v2322, %v2323
        %v2325 = vrot.slane %v2323, 4
        %v2326 = vrot.slane %v2180, 5
        %v2327 = vsel %vm2243, %v2325, %v2326
        %v2328 = vrot.slane %v2181, 5
        %v2329 = vrot.slane %v2328, 4
        %v2330 = vrot.slane %v2182, 5
        %v2331 = vsel %vm2243, %v2329, %v2330
        %v2332 = vrot.slane %v2330, 4
        %v2333 = vrot.slane %v2183, 5
        %v2334 = vsel %vm2243, %v2332, %v2333
        %v2335 = vrot.slane %v2184, 5
        %v2336 = vrot.slane %v2335, 4
        %v2337 = vrot.slane %v2185, 5
        %v2338 = vsel %vm2243, %v2336, %v2337
        %v2339 = vrot.slane %v2337, 4
        %v2340 = vrot.slane %v2186, 5
        %v2341 = vsel %vm2243, %v2339, %v2340
        %v2342 = vrot.slane %v2187, 5
        %v2343 = vrot.slane %v2342, 4
        %v2344 = vrot.slane %v2188, 5
        %v2345 = vsel %vm2243, %v2343, %v2344
        %v2346 = vrot.slane %v2344, 4
        %v2347 = vrot.slane %v2189, 5
        %v2348 = vsel %vm2243, %v2346, %v2347
        %v2349 = vrot.slane %v2190, 5
        %v2350 = vrot.slane %v2349, 4
        %v2351 = vrot.slane %v2191, 5
        %v2352 = vsel %vm2243, %v2350, %v2351
        %v2353 = vrot.slane %v2351, 4
        %v2354 = vrot.slane %v2192, 5
        %v2355 = vsel %vm2243, %v2353, %v2354
        %v2356 = vunpack.c.l.b16 %v2247
        %v2357 = vunpack.c.l.b16 %v2250
        %v2358 = vunpack.c.l.b16 %v2254
        %v2359 = vunpack.c.l.b16 %v2257
        %v2360 = vunpack.c.l.b16 %v2261
        %v2361 = vunpack.c.l.b16 %v2264
        %v2362 = vunpack.c.l.b16 %v2268
        %v2363 = vunpack.c.l.b16 %v2271
        %v2364 = vunpack.c.l.b16 %v2275
        %v2365 = vunpack.c.l.b16 %v2278
        %v2366 = vunpack.c.l.b16 %v2282
        %v2367 = vunpack.c.l.b16 %v2285
        %v2368 = vunpack.c.l.b16 %v2289
        %v2369 = vunpack.c.l.b16 %v2292
        %v2370 = vunpack.c.l.b16 %v2296
        %v2371 = vunpack.c.l.b16 %v2299
        %v2372 = vunpack.c.l.b16 %v2303
        %v2373 = vunpack.c.l.b16 %v2306
        %v2374 = vunpack.c.l.b16 %v2310
        %v2375 = vunpack.c.l.b16 %v2313
        %v2376 = vunpack.c.l.b16 %v2317
        %v2377 = vunpack.c.l.b16 %v2320
        %v2378 = vunpack.c.l.b16 %v2324
        %v2379 = vunpack.c.l.b16 %v2327
        %v2380 = vunpack.c.l.b16 %v2331
        %v2381 = vunpack.c.l.b16 %v2334
        %v2382 = vunpack.c.l.b16 %v2338
        %v2383 = vunpack.c.l.b16 %v2341
        %v2384 = vunpack.c.l.b16 %v2345
        %v2385 = vunpack.c.l.b16 %v2348
        %v2386 = vunpack.c.l.b16 %v2352
        %v2387 = vunpack.c.l.b16 %v2355
        %v2388 = vpack.c.b16 %v2357, %v2356
        %v2389 = vpack.c.b16 %v2359, %v2358
        %v2390 = vpack.c.b16 %v2361, %v2360
        %v2391 = vpack.c.b16 %v2363, %v2362
        %v2392 = vpack.c.b16 %v2365, %v2364
        %v2393 = vpack.c.b16 %v2367, %v2366
        %v2394 = vpack.c.b16 %v2369, %v2368
        %v2395 = vpack.c.b16 %v2371, %v2370
        %v2396 = vpack.c.b16 %v2373, %v2372
        %v2397 = vpack.c.b16 %v2375, %v2374
        %v2398 = vpack.c.b16 %v2377, %v2376
        %v2399 = vpack.c.b16 %v2379, %v2378
        %v2400 = vpack.c.b16 %v2381, %v2380
        %v2401 = vpack.c.b16 %v2383, %v2382
        %v2402 = vpack.c.b16 %v2385, %v2384
        %v2403 = vpack.c.b16 %v2387, %v2386
        %2404 = vrot.lane.b32.xlu0 %v2388, 16
        %v2405 = vpop.permute.xlu0 %2404
        %2406 = vrot.lane.b32.xlu0 %v2389, 16
        %v2407 = vpop.permute.xlu0 %2406
        %2408 = vrot.lane.b32.xlu0 %v2390, 16
        %v2409 = vpop.permute.xlu0 %2408
        %2410 = vrot.lane.b32.xlu0 %v2391, 16
        %v2411 = vpop.permute.xlu0 %2410
        %2412 = vrot.lane.b32.xlu0 %v2392, 16
        %v2413 = vpop.permute.xlu0 %2412
        %2414 = vrot.lane.b32.xlu0 %v2393, 16
        %v2415 = vpop.permute.xlu0 %2414
        %2416 = vrot.lane.b32.xlu0 %v2394, 16
        %v2417 = vpop.permute.xlu0 %2416
        %2418 = vrot.lane.b32.xlu0 %v2395, 16
        %v2419 = vpop.permute.xlu0 %2418
        %2420 = vrot.lane.b32.xlu0 %v2396, 16
        %v2421 = vpop.permute.xlu0 %2420
        %2422 = vrot.lane.b32.xlu0 %v2397, 16
        %v2423 = vpop.permute.xlu0 %2422
        %2424 = vrot.lane.b32.xlu0 %v2398, 16
        %v2425 = vpop.permute.xlu0 %2424
        %2426 = vrot.lane.b32.xlu0 %v2399, 16
        %v2427 = vpop.permute.xlu0 %2426
        %2428 = vrot.lane.b32.xlu0 %v2400, 16
        %v2429 = vpop.permute.xlu0 %2428
        %2430 = vrot.lane.b32.xlu0 %v2401, 16
        %v2431 = vpop.permute.xlu0 %2430
        %2432 = vrot.lane.b32.xlu0 %v2402, 16
        %v2433 = vpop.permute.xlu0 %2432
        %2434 = vrot.lane.b32.xlu0 %v2403, 16
        %v2435 = vpop.permute.xlu0 %2434
        %vm2452 = vcmask 195712
        %2453 = vst.msk [vmem:[#allocation3] sm:$0xff] %vm2452, %v2405
        %2454 = vst.msk [vmem:[#allocation3 + $0x8] sm:$0xff] %vm2452, %v2407
        %2455 = vst.msk [vmem:[#allocation3 + $0x10] sm:$0xff] %vm2452, %v2409
        %2456 = vst.msk [vmem:[#allocation3 + $0x18] sm:$0xff] %vm2452, %v2411
        %2457 = vst.msk [vmem:[#allocation3 + $0x20] sm:$0xff] %vm2452, %v2413
        %2458 = vst.msk [vmem:[#allocation3 + $0x28] sm:$0xff] %vm2452, %v2415
        %2459 = vst.msk [vmem:[#allocation3 + $0x30] sm:$0xff] %vm2452, %v2417
        %2460 = vst.msk [vmem:[#allocation3 + $0x38] sm:$0xff] %vm2452, %v2419
        %2461 = vst.msk [vmem:[#allocation3 + $0x40] sm:$0xff] %vm2452, %v2421
        %2462 = vst.msk [vmem:[#allocation3 + $0x48] sm:$0xff] %vm2452, %v2423
        %2463 = vst.msk [vmem:[#allocation3 + $0x50] sm:$0xff] %vm2452, %v2425
        %2464 = vst.msk [vmem:[#allocation3 + $0x58] sm:$0xff] %vm2452, %v2427
        %2465 = vst.msk [vmem:[#allocation3 + $0x60] sm:$0xff] %vm2452, %v2429
        %2466 = vst.msk [vmem:[#allocation3 + $0x68] sm:$0xff] %vm2452, %v2431
        %2467 = vst.msk [vmem:[#allocation3 + $0x70] sm:$0xff] %vm2452, %v2433
        %2468 = vst.msk [vmem:[#allocation3 + $0x78] sm:$0xff] %vm2452, %v2435
        %v2469 = vld [vmem:[%s1338] sm:$0xf]
        %v2470 = vld [vmem:[%s1338 + $0x4] sm:$0xf]
        %v2471 = vld [vmem:[%s1338 + $0xc] sm:$0xf]
        %v2472 = vld [vmem:[%s1338 + $0x10] sm:$0xf]
        %v2473 = vld [vmem:[%s1338 + $0x18] sm:$0xf]
        %v2474 = vld [vmem:[%s1338 + $0x1c] sm:$0xf]
        %v2475 = vld [vmem:[%s1338 + $0x24] sm:$0xf]
        %v2476 = vld [vmem:[%s1338 + $0x28] sm:$0xf]
        %v2477 = vld [vmem:[%s1338 + $0x30] sm:$0xf]
        %v2478 = vld [vmem:[%s1338 + $0x34] sm:$0xf]
        %v2479 = vld [vmem:[%s1338 + $0x3c] sm:$0xf]
        %v2480 = vld [vmem:[%s1338 + $0x40] sm:$0xf]
        %v2481 = vld [vmem:[%s1338 + $0x48] sm:$0xf]
        %v2482 = vld [vmem:[%s1338 + $0x4c] sm:$0xf]
        %v2483 = vld [vmem:[%s1338 + $0x54] sm:$0xf]
        %v2484 = vld [vmem:[%s1338 + $0x58] sm:$0xf]
        %v2485 = vld [vmem:[%s1338 + $0x60] sm:$0xf]
        %v2486 = vld [vmem:[%s1338 + $0x64] sm:$0xf]
        %v2487 = vld [vmem:[%s1338 + $0x6c] sm:$0xf]
        %v2488 = vld [vmem:[%s1338 + $0x70] sm:$0xf]
        %v2489 = vld [vmem:[%s1338 + $0x78] sm:$0xf]
        %v2490 = vld [vmem:[%s1338 + $0x7c] sm:$0xf]
        %v2491 = vld [vmem:[%s1338 + $0x84] sm:$0xf]
        %v2492 = vld [vmem:[%s1338 + $0x88] sm:$0xf]
        %v2493 = vld [vmem:[%s1338 + $0x90] sm:$0xf]
        %v2494 = vld [vmem:[%s1338 + $0x94] sm:$0xf]
        %v2495 = vld [vmem:[%s1338 + $0x9c] sm:$0xf]
        %v2496 = vld [vmem:[%s1338 + $0xa0] sm:$0xf]
        %v2497 = vld [vmem:[%s1338 + $0xa8] sm:$0xf]
        %v2498 = vld [vmem:[%s1338 + $0xac] sm:$0xf]
        %v2499 = vld [vmem:[%s1338 + $0xb4] sm:$0xf]
        %v2500 = vld [vmem:[%s1338 + $0xb8] sm:$0xf]
        %v2533 = vunpack.c.l.b16 %v2469
        %v2534 = vunpack.c.l.b16 %v2470
        %v2535 = vunpack.c.l.b16 %v2471
        %v2536 = vunpack.c.l.b16 %v2472
        %v2537 = vunpack.c.l.b16 %v2473
        %v2538 = vunpack.c.l.b16 %v2474
        %v2539 = vunpack.c.l.b16 %v2475
        %v2540 = vunpack.c.l.b16 %v2476
        %v2541 = vunpack.c.l.b16 %v2477
        %v2542 = vunpack.c.l.b16 %v2478
        %v2543 = vunpack.c.l.b16 %v2479
        %v2544 = vunpack.c.l.b16 %v2480
        %v2545 = vunpack.c.l.b16 %v2481
        %v2546 = vunpack.c.l.b16 %v2482
        %v2547 = vunpack.c.l.b16 %v2483
        %v2548 = vunpack.c.l.b16 %v2484
        %v2549 = vunpack.c.l.b16 %v2485
        %v2550 = vunpack.c.l.b16 %v2486
        %v2551 = vunpack.c.l.b16 %v2487
        %v2552 = vunpack.c.l.b16 %v2488
        %v2553 = vunpack.c.l.b16 %v2489
        %v2554 = vunpack.c.l.b16 %v2490
        %v2555 = vunpack.c.l.b16 %v2491
        %v2556 = vunpack.c.l.b16 %v2492
        %v2557 = vunpack.c.l.b16 %v2493
        %v2558 = vunpack.c.l.b16 %v2494
        %v2559 = vunpack.c.l.b16 %v2495
        %v2560 = vunpack.c.l.b16 %v2496
        %v2561 = vunpack.c.l.b16 %v2497
        %v2562 = vunpack.c.l.b16 %v2498
        %v2563 = vunpack.c.l.b16 %v2499
        %v2564 = vunpack.c.l.b16 %v2500
        %v2565 = vpack.c.b16 %v2534, %v2533
        %v2566 = vpack.c.b16 %v2536, %v2535
        %v2567 = vpack.c.b16 %v2538, %v2537
        %v2568 = vpack.c.b16 %v2540, %v2539
        %v2569 = vpack.c.b16 %v2542, %v2541
        %v2570 = vpack.c.b16 %v2544, %v2543
        %v2571 = vpack.c.b16 %v2546, %v2545
        %v2572 = vpack.c.b16 %v2548, %v2547
        %v2573 = vpack.c.b16 %v2550, %v2549
        %v2574 = vpack.c.b16 %v2552, %v2551
        %v2575 = vpack.c.b16 %v2554, %v2553
        %v2576 = vpack.c.b16 %v2556, %v2555
        %v2577 = vpack.c.b16 %v2558, %v2557
        %v2578 = vpack.c.b16 %v2560, %v2559
        %v2579 = vpack.c.b16 %v2562, %v2561
        %v2580 = vpack.c.b16 %v2564, %v2563
        %2581 = vrot.lane.b32.xlu0 %v2565, 24
        %v2582 = vpop.permute.xlu0 %2581
        %2583 = vrot.lane.b32.xlu0 %v2566, 24
        %v2584 = vpop.permute.xlu0 %2583
        %2585 = vrot.lane.b32.xlu0 %v2567, 24
        %v2586 = vpop.permute.xlu0 %2585
        %2587 = vrot.lane.b32.xlu0 %v2568, 24
        %v2588 = vpop.permute.xlu0 %2587
        %2589 = vrot.lane.b32.xlu0 %v2569, 24
        %v2590 = vpop.permute.xlu0 %2589
        %2591 = vrot.lane.b32.xlu0 %v2570, 24
        %v2592 = vpop.permute.xlu0 %2591
        %2593 = vrot.lane.b32.xlu0 %v2571, 24
        %v2594 = vpop.permute.xlu0 %2593
        %2595 = vrot.lane.b32.xlu0 %v2572, 24
        %v2596 = vpop.permute.xlu0 %2595
        %2597 = vrot.lane.b32.xlu0 %v2573, 24
        %v2598 = vpop.permute.xlu0 %2597
        %2599 = vrot.lane.b32.xlu0 %v2574, 24
        %v2600 = vpop.permute.xlu0 %2599
        %2601 = vrot.lane.b32.xlu0 %v2575, 24
        %v2602 = vpop.permute.xlu0 %2601
        %2603 = vrot.lane.b32.xlu0 %v2576, 24
        %v2604 = vpop.permute.xlu0 %2603
        %2605 = vrot.lane.b32.xlu0 %v2577, 24
        %v2606 = vpop.permute.xlu0 %2605
        %2607 = vrot.lane.b32.xlu0 %v2578, 24
        %v2608 = vpop.permute.xlu0 %2607
        %2609 = vrot.lane.b32.xlu0 %v2579, 24
        %v2610 = vpop.permute.xlu0 %2609
        %2611 = vrot.lane.b32.xlu0 %v2580, 24
        %v2612 = vpop.permute.xlu0 %2611
        %vm2629 = vcmask 261312
        %2630 = vst.msk [vmem:[#allocation3] sm:$0xff] %vm2629, %v2582
        %2631 = vst.msk [vmem:[#allocation3 + $0x8] sm:$0xff] %vm2629, %v2584
        %2632 = vst.msk [vmem:[#allocation3 + $0x10] sm:$0xff] %vm2629, %v2586
        %2633 = vst.msk [vmem:[#allocation3 + $0x18] sm:$0xff] %vm2629, %v2588
        %2634 = vst.msk [vmem:[#allocation3 + $0x20] sm:$0xff] %vm2629, %v2590
        %2635 = vst.msk [vmem:[#allocation3 + $0x28] sm:$0xff] %vm2629, %v2592
        %2636 = vst.msk [vmem:[#allocation3 + $0x30] sm:$0xff] %vm2629, %v2594
        %2637 = vst.msk [vmem:[#allocation3 + $0x38] sm:$0xff] %vm2629, %v2596
        %2638 = vst.msk [vmem:[#allocation3 + $0x40] sm:$0xff] %vm2629, %v2598
        %2639 = vst.msk [vmem:[#allocation3 + $0x48] sm:$0xff] %vm2629, %v2600
        %2640 = vst.msk [vmem:[#allocation3 + $0x50] sm:$0xff] %vm2629, %v2602
        %2641 = vst.msk [vmem:[#allocation3 + $0x58] sm:$0xff] %vm2629, %v2604
        %2642 = vst.msk [vmem:[#allocation3 + $0x60] sm:$0xff] %vm2629, %v2606
        %2643 = vst.msk [vmem:[#allocation3 + $0x68] sm:$0xff] %vm2629, %v2608
        %2644 = vst.msk [vmem:[#allocation3 + $0x70] sm:$0xff] %vm2629, %v2610
        %2645 = vst.msk [vmem:[#allocation3 + $0x78] sm:$0xff] %vm2629, %v2612
        %v2646 = vld [vmem:[%s1338] sm:$0xf]
        %v2647 = vld [vmem:[%s1338 + $0x4] sm:$0xf]
        %v2648 = vld [vmem:[%s1338 + $0x8] sm:$0x1]
        %v2649 = vld [vmem:[%s1338 + $0xc] sm:$0xf]
        %v2650 = vld [vmem:[%s1338 + $0x10] sm:$0xf]
        %v2651 = vld [vmem:[%s1338 + $0x14] sm:$0x1]
        %v2652 = vld [vmem:[%s1338 + $0x18] sm:$0xf]
        %v2653 = vld [vmem:[%s1338 + $0x1c] sm:$0xf]
        %v2654 = vld [vmem:[%s1338 + $0x20] sm:$0x1]
        %v2655 = vld [vmem:[%s1338 + $0x24] sm:$0xf]
        %v2656 = vld [vmem:[%s1338 + $0x28] sm:$0xf]
        %v2657 = vld [vmem:[%s1338 + $0x2c] sm:$0x1]
        %v2658 = vld [vmem:[%s1338 + $0x30] sm:$0xf]
        %v2659 = vld [vmem:[%s1338 + $0x34] sm:$0xf]
        %v2660 = vld [vmem:[%s1338 + $0x38] sm:$0x1]
        %v2661 = vld [vmem:[%s1338 + $0x3c] sm:$0xf]
        %v2662 = vld [vmem:[%s1338 + $0x40] sm:$0xf]
        %v2663 = vld [vmem:[%s1338 + $0x44] sm:$0x1]
        %v2664 = vld [vmem:[%s1338 + $0x48] sm:$0xf]
        %v2665 = vld [vmem:[%s1338 + $0x4c] sm:$0xf]
        %v2666 = vld [vmem:[%s1338 + $0x50] sm:$0x1]
        %v2667 = vld [vmem:[%s1338 + $0x54] sm:$0xf]
        %v2668 = vld [vmem:[%s1338 + $0x58] sm:$0xf]
        %v2669 = vld [vmem:[%s1338 + $0x5c] sm:$0x1]
        %v2670 = vld [vmem:[%s1338 + $0x60] sm:$0xf]
        %v2671 = vld [vmem:[%s1338 + $0x64] sm:$0xf]
        %v2672 = vld [vmem:[%s1338 + $0x68] sm:$0x1]
        %v2673 = vld [vmem:[%s1338 + $0x6c] sm:$0xf]
        %v2674 = vld [vmem:[%s1338 + $0x70] sm:$0xf]
        %v2675 = vld [vmem:[%s1338 + $0x74] sm:$0x1]
        %v2676 = vld [vmem:[%s1338 + $0x78] sm:$0xf]
        %v2677 = vld [vmem:[%s1338 + $0x7c] sm:$0xf]
        %v2678 = vld [vmem:[%s1338 + $0x80] sm:$0x1]
        %v2679 = vld [vmem:[%s1338 + $0x84] sm:$0xf]
        %v2680 = vld [vmem:[%s1338 + $0x88] sm:$0xf]
        %v2681 = vld [vmem:[%s1338 + $0x8c] sm:$0x1]
        %v2682 = vld [vmem:[%s1338 + $0x90] sm:$0xf]
        %v2683 = vld [vmem:[%s1338 + $0x94] sm:$0xf]
        %v2684 = vld [vmem:[%s1338 + $0x98] sm:$0x1]
        %v2685 = vld [vmem:[%s1338 + $0x9c] sm:$0xf]
        %v2686 = vld [vmem:[%s1338 + $0xa0] sm:$0xf]
        %v2687 = vld [vmem:[%s1338 + $0xa4] sm:$0x1]
        %v2688 = vld [vmem:[%s1338 + $0xa8] sm:$0xf]
        %v2689 = vld [vmem:[%s1338 + $0xac] sm:$0xf]
        %v2690 = vld [vmem:[%s1338 + $0xb0] sm:$0x1]
        %v2691 = vld [vmem:[%s1338 + $0xb4] sm:$0xf]
        %v2692 = vld [vmem:[%s1338 + $0xb8] sm:$0xf]
        %v2693 = vld [vmem:[%s1338 + $0xbc] sm:$0x1]
        %v2695 = vshrl.u32 %v2646, 16
        %v2697 = vrot.slane %v2695, 4
        %v2698 = vshll.u32 %v2646, 16
        %v2700 = vrot.slane %v2698, 5
        %v2701 = vor.u32 %v2697, %v2700
        %v2702 = vrot.slane %v2701, 4
        %v2704 = vshll.u32 %v2647, 16
        %v2706 = vrot.slane %v2704, 5
        %v2707 = vsel %vm1647, %v2702, %v2706
        %v2708 = vshrl.u32 %v2647, 16
        %v2710 = vrot.slane %v2708, 4
        %v2711 = vor.u32 %v2710, %v2706
        %v2712 = vrot.slane %v2711, 4
        %v2714 = vshll.u32 %v2648, 16
        %v2716 = vrot.slane %v2714, 5
        %v2717 = vsel %vm1647, %v2712, %v2716
        %v2719 = vshrl.u32 %v2649, 16
        %v2721 = vrot.slane %v2719, 4
        %v2722 = vshll.u32 %v2649, 16
        %v2724 = vrot.slane %v2722, 5
        %v2725 = vor.u32 %v2721, %v2724
        %v2726 = vrot.slane %v2725, 4
        %v2728 = vshll.u32 %v2650, 16
        %v2730 = vrot.slane %v2728, 5
        %v2731 = vsel %vm1647, %v2726, %v2730
        %v2732 = vshrl.u32 %v2650, 16
        %v2734 = vrot.slane %v2732, 4
        %v2735 = vor.u32 %v2734, %v2730
        %v2736 = vrot.slane %v2735, 4
        %v2738 = vshll.u32 %v2651, 16
        %v2740 = vrot.slane %v2738, 5
        %v2741 = vsel %vm1647, %v2736, %v2740
        %v2743 = vshrl.u32 %v2652, 16
        %v2745 = vrot.slane %v2743, 4
        %v2746 = vshll.u32 %v2652, 16
        %v2748 = vrot.slane %v2746, 5
        %v2749 = vor.u32 %v2745, %v2748
        %v2750 = vrot.slane %v2749, 4
        %v2752 = vshll.u32 %v2653, 16
        %v2754 = vrot.slane %v2752, 5
        %v2755 = vsel %vm1647, %v2750, %v2754
        %v2756 = vshrl.u32 %v2653, 16
        %v2758 = vrot.slane %v2756, 4
        %v2759 = vor.u32 %v2758, %v2754
        %v2760 = vrot.slane %v2759, 4
        %v2762 = vshll.u32 %v2654, 16
        %v2764 = vrot.slane %v2762, 5
        %v2765 = vsel %vm1647, %v2760, %v2764
        %v2767 = vshrl.u32 %v2655, 16
        %v2769 = vrot.slane %v2767, 4
        %v2770 = vshll.u32 %v2655, 16
        %v2772 = vrot.slane %v2770, 5
        %v2773 = vor.u32 %v2769, %v2772
        %v2774 = vrot.slane %v2773, 4
        %v2776 = vshll.u32 %v2656, 16
        %v2778 = vrot.slane %v2776, 5
        %v2779 = vsel %vm1647, %v2774, %v2778
        %v2780 = vshrl.u32 %v2656, 16
        %v2782 = vrot.slane %v2780, 4
        %v2783 = vor.u32 %v2782, %v2778
        %v2784 = vrot.slane %v2783, 4
        %v2786 = vshll.u32 %v2657, 16
        %v2788 = vrot.slane %v2786, 5
        %v2789 = vsel %vm1647, %v2784, %v2788
        %v2791 = vshrl.u32 %v2658, 16
        %v2793 = vrot.slane %v2791, 4
        %v2794 = vshll.u32 %v2658, 16
        %v2796 = vrot.slane %v2794, 5
        %v2797 = vor.u32 %v2793, %v2796
        %v2798 = vrot.slane %v2797, 4
        %v2800 = vshll.u32 %v2659, 16
        %v2802 = vrot.slane %v2800, 5
        %v2803 = vsel %vm1647, %v2798, %v2802
        %v2804 = vshrl.u32 %v2659, 16
        %v2806 = vrot.slane %v2804, 4
        %v2807 = vor.u32 %v2806, %v2802
        %v2808 = vrot.slane %v2807, 4
        %v2810 = vshll.u32 %v2660, 16
        %v2812 = vrot.slane %v2810, 5
        %v2813 = vsel %vm1647, %v2808, %v2812
        %v2815 = vshrl.u32 %v2661, 16
        %v2817 = vrot.slane %v2815, 4
        %v2818 = vshll.u32 %v2661, 16
        %v2820 = vrot.slane %v2818, 5
        %v2821 = vor.u32 %v2817, %v2820
        %v2822 = vrot.slane %v2821, 4
        %v2824 = vshll.u32 %v2662, 16
        %v2826 = vrot.slane %v2824, 5
        %v2827 = vsel %vm1647, %v2822, %v2826
        %v2828 = vshrl.u32 %v2662, 16
        %v2830 = vrot.slane %v2828, 4
        %v2831 = vor.u32 %v2830, %v2826
        %v2832 = vrot.slane %v2831, 4
        %v2834 = vshll.u32 %v2663, 16
        %v2836 = vrot.slane %v2834, 5
        %v2837 = vsel %vm1647, %v2832, %v2836
        %v2839 = vshrl.u32 %v2664, 16
        %v2841 = vrot.slane %v2839, 4
        %v2842 = vshll.u32 %v2664, 16
        %v2844 = vrot.slane %v2842, 5
        %v2845 = vor.u32 %v2841, %v2844
        %v2846 = vrot.slane %v2845, 4
        %v2848 = vshll.u32 %v2665, 16
        %v2850 = vrot.slane %v2848, 5
        %v2851 = vsel %vm1647, %v2846, %v2850
        %v2852 = vshrl.u32 %v2665, 16
        %v2854 = vrot.slane %v2852, 4
        %v2855 = vor.u32 %v2854, %v2850
        %v2856 = vrot.slane %v2855, 4
        %v2858 = vshll.u32 %v2666, 16
        %v2860 = vrot.slane %v2858, 5
        %v2861 = vsel %vm1647, %v2856, %v2860
        %v2863 = vshrl.u32 %v2667, 16
        %v2865 = vrot.slane %v2863, 4
        %v2866 = vshll.u32 %v2667, 16
        %v2868 = vrot.slane %v2866, 5
        %v2869 = vor.u32 %v2865, %v2868
        %v2870 = vrot.slane %v2869, 4
        %v2872 = vshll.u32 %v2668, 16
        %v2874 = vrot.slane %v2872, 5
        %v2875 = vsel %vm1647, %v2870, %v2874
        %v2876 = vshrl.u32 %v2668, 16
        %v2878 = vrot.slane %v2876, 4
        %v2879 = vor.u32 %v2878, %v2874
        %v2880 = vrot.slane %v2879, 4
        %v2882 = vshll.u32 %v2669, 16
        %v2884 = vrot.slane %v2882, 5
        %v2885 = vsel %vm1647, %v2880, %v2884
        %v2887 = vshrl.u32 %v2670, 16
        %v2889 = vrot.slane %v2887, 4
        %v2890 = vshll.u32 %v2670, 16
        %v2892 = vrot.slane %v2890, 5
        %v2893 = vor.u32 %v2889, %v2892
        %v2894 = vrot.slane %v2893, 4
        %v2896 = vshll.u32 %v2671, 16
        %v2898 = vrot.slane %v2896, 5
        %v2899 = vsel %vm1647, %v2894, %v2898
        %v2900 = vshrl.u32 %v2671, 16
        %v2902 = vrot.slane %v2900, 4
        %v2903 = vor.u32 %v2902, %v2898
        %v2904 = vrot.slane %v2903, 4
        %v2906 = vshll.u32 %v2672, 16
        %v2908 = vrot.slane %v2906, 5
        %v2909 = vsel %vm1647, %v2904, %v2908
        %v2911 = vshrl.u32 %v2673, 16
        %v2913 = vrot.slane %v2911, 4
        %v2914 = vshll.u32 %v2673, 16
        %v2916 = vrot.slane %v2914, 5
        %v2917 = vor.u32 %v2913, %v2916
        %v2918 = vrot.slane %v2917, 4
        %v2920 = vshll.u32 %v2674, 16
        %v2922 = vrot.slane %v2920, 5
        %v2923 = vsel %vm1647, %v2918, %v2922
        %v2924 = vshrl.u32 %v2674, 16
        %v2926 = vrot.slane %v2924, 4
        %v2927 = vor.u32 %v2926, %v2922
        %v2928 = vrot.slane %v2927, 4
        %v2930 = vshll.u32 %v2675, 16
        %v2932 = vrot.slane %v2930, 5
        %v2933 = vsel %vm1647, %v2928, %v2932
        %v2935 = vshrl.u32 %v2676, 16
        %v2937 = vrot.slane %v2935, 4
        %v2938 = vshll.u32 %v2676, 16
        %v2940 = vrot.slane %v2938, 5
        %v2941 = vor.u32 %v2937, %v2940
        %v2942 = vrot.slane %v2941, 4
        %v2944 = vshll.u32 %v2677, 16
        %v2946 = vrot.slane %v2944, 5
        %v2947 = vsel %vm1647, %v2942, %v2946
        %v2948 = vshrl.u32 %v2677, 16
        %v2950 = vrot.slane %v2948, 4
        %v2951 = vor.u32 %v2950, %v2946
        %v2952 = vrot.slane %v2951, 4
        %v2954 = vshll.u32 %v2678, 16
        %v2956 = vrot.slane %v2954, 5
        %v2957 = vsel %vm1647, %v2952, %v2956
        %v2959 = vshrl.u32 %v2679, 16
        %v2961 = vrot.slane %v2959, 4
        %v2962 = vshll.u32 %v2679, 16
        %v2964 = vrot.slane %v2962, 5
        %v2965 = vor.u32 %v2961, %v2964
        %v2966 = vrot.slane %v2965, 4
        %v2968 = vshll.u32 %v2680, 16
        %v2970 = vrot.slane %v2968, 5
        %v2971 = vsel %vm1647, %v2966, %v2970
        %v2972 = vshrl.u32 %v2680, 16
        %v2974 = vrot.slane %v2972, 4
        %v2975 = vor.u32 %v2974, %v2970
        %v2976 = vrot.slane %v2975, 4
        %v2978 = vshll.u32 %v2681, 16
        %v2980 = vrot.slane %v2978, 5
        %v2981 = vsel %vm1647, %v2976, %v2980
        %v2983 = vshrl.u32 %v2682, 16
        %v2985 = vrot.slane %v2983, 4
        %v2986 = vshll.u32 %v2682, 16
        %v2988 = vrot.slane %v2986, 5
        %v2989 = vor.u32 %v2985, %v2988
        %v2990 = vrot.slane %v2989, 4
        %v2992 = vshll.u32 %v2683, 16
        %v2994 = vrot.slane %v2992, 5
        %v2995 = vsel %vm1647, %v2990, %v2994
        %v2996 = vshrl.u32 %v2683, 16
        %v2998 = vrot.slane %v2996, 4
        %v2999 = vor.u32 %v2998, %v2994
        %v3000 = vrot.slane %v2999, 4
        %v3002 = vshll.u32 %v2684, 16
        %v3004 = vrot.slane %v3002, 5
        %v3005 = vsel %vm1647, %v3000, %v3004
        %v3007 = vshrl.u32 %v2685, 16
        %v3009 = vrot.slane %v3007, 4
        %v3010 = vshll.u32 %v2685, 16
        %v3012 = vrot.slane %v3010, 5
        %v3013 = vor.u32 %v3009, %v3012
        %v3014 = vrot.slane %v3013, 4
        %v3016 = vshll.u32 %v2686, 16
        %v3018 = vrot.slane %v3016, 5
        %v3019 = vsel %vm1647, %v3014, %v3018
        %v3020 = vshrl.u32 %v2686, 16
        %v3022 = vrot.slane %v3020, 4
        %v3023 = vor.u32 %v3022, %v3018
        %v3024 = vrot.slane %v3023, 4
        %v3026 = vshll.u32 %v2687, 16
        %v3028 = vrot.slane %v3026, 5
        %v3029 = vsel %vm1647, %v3024, %v3028
        %v3031 = vshrl.u32 %v2688, 16
        %v3033 = vrot.slane %v3031, 4
        %v3034 = vshll.u32 %v2688, 16
        %v3036 = vrot.slane %v3034, 5
        %v3037 = vor.u32 %v3033, %v3036
        %v3038 = vrot.slane %v3037, 4
        %v3040 = vshll.u32 %v2689, 16
        %v3042 = vrot.slane %v3040, 5
        %v3043 = vsel %vm1647, %v3038, %v3042
        %v3044 = vshrl.u32 %v2689, 16
        %v3046 = vrot.slane %v3044, 4
        %v3047 = vor.u32 %v3046, %v3042
        %v3048 = vrot.slane %v3047, 4
        %v3050 = vshll.u32 %v2690, 16
        %v3052 = vrot.slane %v3050, 5
        %v3053 = vsel %vm1647, %v3048, %v3052
        %v3055 = vshrl.u32 %v2691, 16
        %v3057 = vrot.slane %v3055, 4
        %v3058 = vshll.u32 %v2691, 16
        %v3060 = vrot.slane %v3058, 5
        %v3061 = vor.u32 %v3057, %v3060
        %v3062 = vrot.slane %v3061, 4
        %v3064 = vshll.u32 %v2692, 16
        %v3066 = vrot.slane %v3064, 5
        %v3067 = vsel %vm1647, %v3062, %v3066
        %v3068 = vshrl.u32 %v2692, 16
        %v3070 = vrot.slane %v3068, 4
        %v3071 = vor.u32 %v3070, %v3066
        %v3072 = vrot.slane %v3071, 4
        %v3074 = vshll.u32 %v2693, 16
        %v3076 = vrot.slane %v3074, 5
        %v3077 = vsel %vm1647, %v3072, %v3076
        %v3078 = vunpack.c.l.b16 %v2707
        %v3079 = vunpack.c.l.b16 %v2717
        %v3080 = vunpack.c.l.b16 %v2731
        %v3081 = vunpack.c.l.b16 %v2741
        %v3082 = vunpack.c.l.b16 %v2755
        %v3083 = vunpack.c.l.b16 %v2765
        %v3084 = vunpack.c.l.b16 %v2779
        %v3085 = vunpack.c.l.b16 %v2789
        %v3086 = vunpack.c.l.b16 %v2803
        %v3087 = vunpack.c.l.b16 %v2813
        %v3088 = vunpack.c.l.b16 %v2827
        %v3089 = vunpack.c.l.b16 %v2837
        %v3090 = vunpack.c.l.b16 %v2851
        %v3091 = vunpack.c.l.b16 %v2861
        %v3092 = vunpack.c.l.b16 %v2875
        %v3093 = vunpack.c.l.b16 %v2885
        %v3094 = vunpack.c.l.b16 %v2899
        %v3095 = vunpack.c.l.b16 %v2909
        %v3096 = vunpack.c.l.b16 %v2923
        %v3097 = vunpack.c.l.b16 %v2933
        %v3098 = vunpack.c.l.b16 %v2947
        %v3099 = vunpack.c.l.b16 %v2957
        %v3100 = vunpack.c.l.b16 %v2971
        %v3101 = vunpack.c.l.b16 %v2981
        %v3102 = vunpack.c.l.b16 %v2995
        %v3103 = vunpack.c.l.b16 %v3005
        %v3104 = vunpack.c.l.b16 %v3019
        %v3105 = vunpack.c.l.b16 %v3029
        %v3106 = vunpack.c.l.b16 %v3043
        %v3107 = vunpack.c.l.b16 %v3053
        %v3108 = vunpack.c.l.b16 %v3067
        %v3109 = vunpack.c.l.b16 %v3077
        %v3110 = vpack.c.b16 %v3079, %v3078
        %v3111 = vpack.c.b16 %v3081, %v3080
        %v3112 = vpack.c.b16 %v3083, %v3082
        %v3113 = vpack.c.b16 %v3085, %v3084
        %v3114 = vpack.c.b16 %v3087, %v3086
        %v3115 = vpack.c.b16 %v3089, %v3088
        %v3116 = vpack.c.b16 %v3091, %v3090
        %v3117 = vpack.c.b16 %v3093, %v3092
        %v3118 = vpack.c.b16 %v3095, %v3094
        %v3119 = vpack.c.b16 %v3097, %v3096
        %v3120 = vpack.c.b16 %v3099, %v3098
        %v3121 = vpack.c.b16 %v3101, %v3100
        %v3122 = vpack.c.b16 %v3103, %v3102
        %v3123 = vpack.c.b16 %v3105, %v3104
        %v3124 = vpack.c.b16 %v3107, %v3106
        %v3125 = vpack.c.b16 %v3109, %v3108
        %3126 = vrot.lane.b32.xlu0 %v3110, 32
        %v3127 = vpop.permute.xlu0 %3126
        %3128 = vrot.lane.b32.xlu0 %v3111, 32
        %v3129 = vpop.permute.xlu0 %3128
        %3130 = vrot.lane.b32.xlu0 %v3112, 32
        %v3131 = vpop.permute.xlu0 %3130
        %3132 = vrot.lane.b32.xlu0 %v3113, 32
        %v3133 = vpop.permute.xlu0 %3132
        %3134 = vrot.lane.b32.xlu0 %v3114, 32
        %v3135 = vpop.permute.xlu0 %3134
        %3136 = vrot.lane.b32.xlu0 %v3115, 32
        %v3137 = vpop.permute.xlu0 %3136
        %3138 = vrot.lane.b32.xlu0 %v3116, 32
        %v3139 = vpop.permute.xlu0 %3138
        %3140 = vrot.lane.b32.xlu0 %v3117, 32
        %v3141 = vpop.permute.xlu0 %3140
        %3142 = vrot.lane.b32.xlu0 %v3118, 32
        %v3143 = vpop.permute.xlu0 %3142
        %3144 = vrot.lane.b32.xlu0 %v3119, 32
        %v3145 = vpop.permute.xlu0 %3144
        %3146 = vrot.lane.b32.xlu0 %v3120, 32
        %v3147 = vpop.permute.xlu0 %3146
        %3148 = vrot.lane.b32.xlu0 %v3121, 32
        %v3149 = vpop.permute.xlu0 %3148
        %3150 = vrot.lane.b32.xlu0 %v3122, 32
        %v3151 = vpop.permute.xlu0 %3150
        %3152 = vrot.lane.b32.xlu0 %v3123, 32
        %v3153 = vpop.permute.xlu0 %3152
        %3154 = vrot.lane.b32.xlu0 %v3124, 32
        %v3155 = vpop.permute.xlu0 %3154
        %3156 = vrot.lane.b32.xlu0 %v3125, 32
        %v3157 = vpop.permute.xlu0 %3156
        %vm3174 = vcmask 326912
        %3175 = vst.msk [vmem:[#allocation3] sm:$0xff] %vm3174, %v3127
        %3176 = vst.msk [vmem:[#allocation3 + $0x8] sm:$0xff] %vm3174, %v3129
        %3177 = vst.msk [vmem:[#allocation3 + $0x10] sm:$0xff] %vm3174, %v3131
        %3178 = vst.msk [vmem:[#allocation3 + $0x18] sm:$0xff] %vm3174, %v3133
        %3179 = vst.msk [vmem:[#allocation3 + $0x20] sm:$0xff] %vm3174, %v3135
        %3180 = vst.msk [vmem:[#allocation3 + $0x28] sm:$0xff] %vm3174, %v3137
        %3181 = vst.msk [vmem:[#allocation3 + $0x30] sm:$0xff] %vm3174, %v3139
        %3182 = vst.msk [vmem:[#allocation3 + $0x38] sm:$0xff] %vm3174, %v3141
        %3183 = vst.msk [vmem:[#allocation3 + $0x40] sm:$0xff] %vm3174, %v3143
        %3184 = vst.msk [vmem:[#allocation3 + $0x48] sm:$0xff] %vm3174, %v3145
        %3185 = vst.msk [vmem:[#allocation3 + $0x50] sm:$0xff] %vm3174, %v3147
        %3186 = vst.msk [vmem:[#allocation3 + $0x58] sm:$0xff] %vm3174, %v3149
        %3187 = vst.msk [vmem:[#allocation3 + $0x60] sm:$0xff] %vm3174, %v3151
        %3188 = vst.msk [vmem:[#allocation3 + $0x68] sm:$0xff] %vm3174, %v3153
        %3189 = vst.msk [vmem:[#allocation3 + $0x70] sm:$0xff] %vm3174, %v3155
        %3190 = vst.msk [vmem:[#allocation3 + $0x78] sm:$0xff] %vm3174, %v3157
        %v3191 = vld [vmem:[%s1338] sm:$0xe]
        %v3192 = vld [vmem:[%s1338 + $0x4] sm:$0xf]
        %v3193 = vld [vmem:[%s1338 + $0x8] sm:$0x1]
        %v3194 = vld [vmem:[%s1338 + $0xc] sm:$0xe]
        %v3195 = vld [vmem:[%s1338 + $0x10] sm:$0xf]
        %v3196 = vld [vmem:[%s1338 + $0x14] sm:$0x1]
        %v3197 = vld [vmem:[%s1338 + $0x18] sm:$0xe]
        %v3198 = vld [vmem:[%s1338 + $0x1c] sm:$0xf]
        %v3199 = vld [vmem:[%s1338 + $0x20] sm:$0x1]
        %v3200 = vld [vmem:[%s1338 + $0x24] sm:$0xe]
        %v3201 = vld [vmem:[%s1338 + $0x28] sm:$0xf]
        %v3202 = vld [vmem:[%s1338 + $0x2c] sm:$0x1]
        %v3203 = vld [vmem:[%s1338 + $0x30] sm:$0xe]
        %v3204 = vld [vmem:[%s1338 + $0x34] sm:$0xf]
        %v3205 = vld [vmem:[%s1338 + $0x38] sm:$0x1]
        %v3206 = vld [vmem:[%s1338 + $0x3c] sm:$0xe]
        %v3207 = vld [vmem:[%s1338 + $0x40] sm:$0xf]
        %v3208 = vld [vmem:[%s1338 + $0x44] sm:$0x1]
        %v3209 = vld [vmem:[%s1338 + $0x48] sm:$0xe]
        %v3210 = vld [vmem:[%s1338 + $0x4c] sm:$0xf]
        %v3211 = vld [vmem:[%s1338 + $0x50] sm:$0x1]
        %v3212 = vld [vmem:[%s1338 + $0x54] sm:$0xe]
        %v3213 = vld [vmem:[%s1338 + $0x58] sm:$0xf]
        %v3214 = vld [vmem:[%s1338 + $0x5c] sm:$0x1]
        %v3215 = vld [vmem:[%s1338 + $0x60] sm:$0xe]
        %v3216 = vld [vmem:[%s1338 + $0x64] sm:$0xf]
        %v3217 = vld [vmem:[%s1338 + $0x68] sm:$0x1]
        %v3218 = vld [vmem:[%s1338 + $0x6c] sm:$0xe]
        %v3219 = vld [vmem:[%s1338 + $0x70] sm:$0xf]
        %v3220 = vld [vmem:[%s1338 + $0x74] sm:$0x1]
        %v3221 = vld [vmem:[%s1338 + $0x78] sm:$0xe]
        %v3222 = vld [vmem:[%s1338 + $0x7c] sm:$0xf]
        %v3223 = vld [vmem:[%s1338 + $0x80] sm:$0x1]
        %v3224 = vld [vmem:[%s1338 + $0x84] sm:$0xe]
        %v3225 = vld [vmem:[%s1338 + $0x88] sm:$0xf]
        %v3226 = vld [vmem:[%s1338 + $0x8c] sm:$0x1]
        %v3227 = vld [vmem:[%s1338 + $0x90] sm:$0xe]
        %v3228 = vld [vmem:[%s1338 + $0x94] sm:$0xf]
        %v3229 = vld [vmem:[%s1338 + $0x98] sm:$0x1]
        %v3230 = vld [vmem:[%s1338 + $0x9c] sm:$0xe]
        %v3231 = vld [vmem:[%s1338 + $0xa0] sm:$0xf]
        %v3232 = vld [vmem:[%s1338 + $0xa4] sm:$0x1]
        %v3233 = vld [vmem:[%s1338 + $0xa8] sm:$0xe]
        %v3234 = vld [vmem:[%s1338 + $0xac] sm:$0xf]
        %v3235 = vld [vmem:[%s1338 + $0xb0] sm:$0x1]
        %v3236 = vld [vmem:[%s1338 + $0xb4] sm:$0xe]
        %v3237 = vld [vmem:[%s1338 + $0xb8] sm:$0xf]
        %v3238 = vld [vmem:[%s1338 + $0xbc] sm:$0x1]
        %v3287 = vrot.slane %v3191, 5
        %v3288 = vrot.slane %v3287, 4
        %v3289 = vrot.slane %v3192, 5
        %v3290 = vsel %vm2243, %v3288, %v3289
        %v3291 = vrot.slane %v3289, 4
        %v3292 = vrot.slane %v3193, 5
        %v3293 = vsel %vm2243, %v3291, %v3292
        %v3294 = vrot.slane %v3194, 5
        %v3295 = vrot.slane %v3294, 4
        %v3296 = vrot.slane %v3195, 5
        %v3297 = vsel %vm2243, %v3295, %v3296
        %v3298 = vrot.slane %v3296, 4
        %v3299 = vrot.slane %v3196, 5
        %v3300 = vsel %vm2243, %v3298, %v3299
        %v3301 = vrot.slane %v3197, 5
        %v3302 = vrot.slane %v3301, 4
        %v3303 = vrot.slane %v3198, 5
        %v3304 = vsel %vm2243, %v3302, %v3303
        %v3305 = vrot.slane %v3303, 4
        %v3306 = vrot.slane %v3199, 5
        %v3307 = vsel %vm2243, %v3305, %v3306
        %v3308 = vrot.slane %v3200, 5
        %v3309 = vrot.slane %v3308, 4
        %v3310 = vrot.slane %v3201, 5
        %v3311 = vsel %vm2243, %v3309, %v3310
        %v3312 = vrot.slane %v3310, 4
        %v3313 = vrot.slane %v3202, 5
        %v3314 = vsel %vm2243, %v3312, %v3313
        %v3315 = vrot.slane %v3203, 5
        %v3316 = vrot.slane %v3315, 4
        %v3317 = vrot.slane %v3204, 5
        %v3318 = vsel %vm2243, %v3316, %v3317
        %v3319 = vrot.slane %v3317, 4
        %v3320 = vrot.slane %v3205, 5
        %v3321 = vsel %vm2243, %v3319, %v3320
        %v3322 = vrot.slane %v3206, 5
        %v3323 = vrot.slane %v3322, 4
        %v3324 = vrot.slane %v3207, 5
        %v3325 = vsel %vm2243, %v3323, %v3324
        %v3326 = vrot.slane %v3324, 4
        %v3327 = vrot.slane %v3208, 5
        %v3328 = vsel %vm2243, %v3326, %v3327
        %v3329 = vrot.slane %v3209, 5
        %v3330 = vrot.slane %v3329, 4
        %v3331 = vrot.slane %v3210, 5
        %v3332 = vsel %vm2243, %v3330, %v3331
        %v3333 = vrot.slane %v3331, 4
        %v3334 = vrot.slane %v3211, 5
        %v3335 = vsel %vm2243, %v3333, %v3334
        %v3336 = vrot.slane %v3212, 5
        %v3337 = vrot.slane %v3336, 4
        %v3338 = vrot.slane %v3213, 5
        %v3339 = vsel %vm2243, %v3337, %v3338
        %v3340 = vrot.slane %v3338, 4
        %v3341 = vrot.slane %v3214, 5
        %v3342 = vsel %vm2243, %v3340, %v3341
        %v3343 = vrot.slane %v3215, 5
        %v3344 = vrot.slane %v3343, 4
        %v3345 = vrot.slane %v3216, 5
        %v3346 = vsel %vm2243, %v3344, %v3345
        %v3347 = vrot.slane %v3345, 4
        %v3348 = vrot.slane %v3217, 5
        %v3349 = vsel %vm2243, %v3347, %v3348
        %v3350 = vrot.slane %v3218, 5
        %v3351 = vrot.slane %v3350, 4
        %v3352 = vrot.slane %v3219, 5
        %v3353 = vsel %vm2243, %v3351, %v3352
        %v3354 = vrot.slane %v3352, 4
        %v3355 = vrot.slane %v3220, 5
        %v3356 = vsel %vm2243, %v3354, %v3355
        %v3357 = vrot.slane %v3221, 5
        %v3358 = vrot.slane %v3357, 4
        %v3359 = vrot.slane %v3222, 5
        %v3360 = vsel %vm2243, %v3358, %v3359
        %v3361 = vrot.slane %v3359, 4
        %v3362 = vrot.slane %v3223, 5
        %v3363 = vsel %vm2243, %v3361, %v3362
        %v3364 = vrot.slane %v3224, 5
        %v3365 = vrot.slane %v3364, 4
        %v3366 = vrot.slane %v3225, 5
        %v3367 = vsel %vm2243, %v3365, %v3366
        %v3368 = vrot.slane %v3366, 4
        %v3369 = vrot.slane %v3226, 5
        %v3370 = vsel %vm2243, %v3368, %v3369
        %v3371 = vrot.slane %v3227, 5
        %v3372 = vrot.slane %v3371, 4
        %v3373 = vrot.slane %v3228, 5
        %v3374 = vsel %vm2243, %v3372, %v3373
        %v3375 = vrot.slane %v3373, 4
        %v3376 = vrot.slane %v3229, 5
        %v3377 = vsel %vm2243, %v3375, %v3376
        %v3378 = vrot.slane %v3230, 5
        %v3379 = vrot.slane %v3378, 4
        %v3380 = vrot.slane %v3231, 5
        %v3381 = vsel %vm2243, %v3379, %v3380
        %v3382 = vrot.slane %v3380, 4
        %v3383 = vrot.slane %v3232, 5
        %v3384 = vsel %vm2243, %v3382, %v3383
        %v3385 = vrot.slane %v3233, 5
        %v3386 = vrot.slane %v3385, 4
        %v3387 = vrot.slane %v3234, 5
        %v3388 = vsel %vm2243, %v3386, %v3387
        %v3389 = vrot.slane %v3387, 4
        %v3390 = vrot.slane %v3235, 5
        %v3391 = vsel %vm2243, %v3389, %v3390
        %v3392 = vrot.slane %v3236, 5
        %v3393 = vrot.slane %v3392, 4
        %v3394 = vrot.slane %v3237, 5
        %v3395 = vsel %vm2243, %v3393, %v3394
        %v3396 = vrot.slane %v3394, 4
        %v3397 = vrot.slane %v3238, 5
        %v3398 = vsel %vm2243, %v3396, %v3397
        %v3399 = vunpack.c.l.b16 %v3290
        %v3400 = vunpack.c.l.b16 %v3293
        %v3401 = vunpack.c.l.b16 %v3297
        %v3402 = vunpack.c.l.b16 %v3300
        %v3403 = vunpack.c.l.b16 %v3304
        %v3404 = vunpack.c.l.b16 %v3307
        %v3405 = vunpack.c.l.b16 %v3311
        %v3406 = vunpack.c.l.b16 %v3314
        %v3407 = vunpack.c.l.b16 %v3318
        %v3408 = vunpack.c.l.b16 %v3321
        %v3409 = vunpack.c.l.b16 %v3325
        %v3410 = vunpack.c.l.b16 %v3328
        %v3411 = vunpack.c.l.b16 %v3332
        %v3412 = vunpack.c.l.b16 %v3335
        %v3413 = vunpack.c.l.b16 %v3339
        %v3414 = vunpack.c.l.b16 %v3342
        %v3415 = vunpack.c.l.b16 %v3346
        %v3416 = vunpack.c.l.b16 %v3349
        %v3417 = vunpack.c.l.b16 %v3353
        %v3418 = vunpack.c.l.b16 %v3356
        %v3419 = vunpack.c.l.b16 %v3360
        %v3420 = vunpack.c.l.b16 %v3363
        %v3421 = vunpack.c.l.b16 %v3367
        %v3422 = vunpack.c.l.b16 %v3370
        %v3423 = vunpack.c.l.b16 %v3374
        %v3424 = vunpack.c.l.b16 %v3377
        %v3425 = vunpack.c.l.b16 %v3381
        %v3426 = vunpack.c.l.b16 %v3384
        %v3427 = vunpack.c.l.b16 %v3388
        %v3428 = vunpack.c.l.b16 %v3391
        %v3429 = vunpack.c.l.b16 %v3395
        %v3430 = vunpack.c.l.b16 %v3398
        %v3431 = vpack.c.b16 %v3400, %v3399
        %v3432 = vpack.c.b16 %v3402, %v3401
        %v3433 = vpack.c.b16 %v3404, %v3403
        %v3434 = vpack.c.b16 %v3406, %v3405
        %v3435 = vpack.c.b16 %v3408, %v3407
        %v3436 = vpack.c.b16 %v3410, %v3409
        %v3437 = vpack.c.b16 %v3412, %v3411
        %v3438 = vpack.c.b16 %v3414, %v3413
        %v3439 = vpack.c.b16 %v3416, %v3415
        %v3440 = vpack.c.b16 %v3418, %v3417
        %v3441 = vpack.c.b16 %v3420, %v3419
        %v3442 = vpack.c.b16 %v3422, %v3421
        %v3443 = vpack.c.b16 %v3424, %v3423
        %v3444 = vpack.c.b16 %v3426, %v3425
        %v3445 = vpack.c.b16 %v3428, %v3427
        %v3446 = vpack.c.b16 %v3430, %v3429
        %3447 = vrot.lane.b32.xlu0 %v3431, 40
        %v3448 = vpop.permute.xlu0 %3447
        %3449 = vrot.lane.b32.xlu0 %v3432, 40
        %v3450 = vpop.permute.xlu0 %3449
        %3451 = vrot.lane.b32.xlu0 %v3433, 40
        %v3452 = vpop.permute.xlu0 %3451
        %3453 = vrot.lane.b32.xlu0 %v3434, 40
        %v3454 = vpop.permute.xlu0 %3453
        %3455 = vrot.lane.b32.xlu0 %v3435, 40
        %v3456 = vpop.permute.xlu0 %3455
        %3457 = vrot.lane.b32.xlu0 %v3436, 40
        %v3458 = vpop.permute.xlu0 %3457
        %3459 = vrot.lane.b32.xlu0 %v3437, 40
        %v3460 = vpop.permute.xlu0 %3459
        %3461 = vrot.lane.b32.xlu0 %v3438, 40
        %v3462 = vpop.permute.xlu0 %3461
        %3463 = vrot.lane.b32.xlu0 %v3439, 40
        %v3464 = vpop.permute.xlu0 %3463
        %3465 = vrot.lane.b32.xlu0 %v3440, 40
        %v3466 = vpop.permute.xlu0 %3465
        %3467 = vrot.lane.b32.xlu0 %v3441, 40
        %v3468 = vpop.permute.xlu0 %3467
        %3469 = vrot.lane.b32.xlu0 %v3442, 40
        %v3470 = vpop.permute.xlu0 %3469
        %3471 = vrot.lane.b32.xlu0 %v3443, 40
        %v3472 = vpop.permute.xlu0 %3471
        %3473 = vrot.lane.b32.xlu0 %v3444, 40
        %v3474 = vpop.permute.xlu0 %3473
        %3475 = vrot.lane.b32.xlu0 %v3445, 40
        %v3476 = vpop.permute.xlu0 %3475
        %3477 = vrot.lane.b32.xlu0 %v3446, 40
        %v3478 = vpop.permute.xlu0 %3477
        %vm3495 = vcmask 392512
        %3496 = vst.msk [vmem:[#allocation3] sm:$0xff] %vm3495, %v3448
        %3497 = vst.msk [vmem:[#allocation3 + $0x8] sm:$0xff] %vm3495, %v3450
        %3498 = vst.msk [vmem:[#allocation3 + $0x10] sm:$0xff] %vm3495, %v3452
        %3499 = vst.msk [vmem:[#allocation3 + $0x18] sm:$0xff] %vm3495, %v3454
        %3500 = vst.msk [vmem:[#allocation3 + $0x20] sm:$0xff] %vm3495, %v3456
        %3501 = vst.msk [vmem:[#allocation3 + $0x28] sm:$0xff] %vm3495, %v3458
        %3502 = vst.msk [vmem:[#allocation3 + $0x30] sm:$0xff] %vm3495, %v3460
        %3503 = vst.msk [vmem:[#allocation3 + $0x38] sm:$0xff] %vm3495, %v3462
        %3504 = vst.msk [vmem:[#allocation3 + $0x40] sm:$0xff] %vm3495, %v3464
        %3505 = vst.msk [vmem:[#allocation3 + $0x48] sm:$0xff] %vm3495, %v3466
        %3506 = vst.msk [vmem:[#allocation3 + $0x50] sm:$0xff] %vm3495, %v3468
        %3507 = vst.msk [vmem:[#allocation3 + $0x58] sm:$0xff] %vm3495, %v3470
        %3508 = vst.msk [vmem:[#allocation3 + $0x60] sm:$0xff] %vm3495, %v3472
        %3509 = vst.msk [vmem:[#allocation3 + $0x68] sm:$0xff] %vm3495, %v3474
        %3510 = vst.msk [vmem:[#allocation3 + $0x70] sm:$0xff] %vm3495, %v3476
        %3511 = vst.msk [vmem:[#allocation3 + $0x78] sm:$0xff] %vm3495, %v3478
        %s3512 = scalar_lea.vmem [#allocation2], 24
        %v3513 = vld [vmem:[%s3512] sm:$0xf]
        %v3514 = vld [vmem:[%s3512 + $0x4] sm:$0xf]
        %v3515 = vld [vmem:[%s3512 + $0xc] sm:$0xf]
        %v3516 = vld [vmem:[%s3512 + $0x10] sm:$0xf]
        %v3517 = vld [vmem:[%s3512 + $0x18] sm:$0xf]
        %v3518 = vld [vmem:[%s3512 + $0x1c] sm:$0xf]
        %v3519 = vld [vmem:[%s3512 + $0x24] sm:$0xf]
        %v3520 = vld [vmem:[%s3512 + $0x28] sm:$0xf]
        %v3521 = vld [vmem:[%s3512 + $0x30] sm:$0xf]
        %v3522 = vld [vmem:[%s3512 + $0x34] sm:$0xf]
        %v3523 = vld [vmem:[%s3512 + $0x3c] sm:$0xf]
        %v3524 = vld [vmem:[%s3512 + $0x40] sm:$0xf]
        %v3525 = vld [vmem:[%s3512 + $0x48] sm:$0xf]
        %v3526 = vld [vmem:[%s3512 + $0x4c] sm:$0xf]
        %v3527 = vld [vmem:[%s3512 + $0x54] sm:$0xf]
        %v3528 = vld [vmem:[%s3512 + $0x58] sm:$0xf]
        %v3529 = vld [vmem:[%s3512 + $0x60] sm:$0xf]
        %v3530 = vld [vmem:[%s3512 + $0x64] sm:$0xf]
        %v3531 = vld [vmem:[%s3512 + $0x6c] sm:$0xf]
        %v3532 = vld [vmem:[%s3512 + $0x70] sm:$0xf]
        %v3533 = vld [vmem:[%s3512 + $0x78] sm:$0xf]
        %v3534 = vld [vmem:[%s3512 + $0x7c] sm:$0xf]
        %v3535 = vld [vmem:[%s3512 + $0x84] sm:$0xf]
        %v3536 = vld [vmem:[%s3512 + $0x88] sm:$0xf]
        %v3537 = vld [vmem:[%s3512 + $0x90] sm:$0xf]
        %v3538 = vld [vmem:[%s3512 + $0x94] sm:$0xf]
        %v3539 = vld [vmem:[%s3512 + $0x9c] sm:$0xf]
        %v3540 = vld [vmem:[%s3512 + $0xa0] sm:$0xf]
        %v3541 = vld [vmem:[%s3512 + $0xa8] sm:$0xf]
        %v3542 = vld [vmem:[%s3512 + $0xac] sm:$0xf]
        %v3543 = vld [vmem:[%s3512 + $0xb4] sm:$0xf]
        %v3544 = vld [vmem:[%s3512 + $0xb8] sm:$0xf]
        %v3577 = vunpack.c.l.b16 %v3513
        %v3578 = vunpack.c.l.b16 %v3514
        %v3579 = vunpack.c.l.b16 %v3515
        %v3580 = vunpack.c.l.b16 %v3516
        %v3581 = vunpack.c.l.b16 %v3517
        %v3582 = vunpack.c.l.b16 %v3518
        %v3583 = vunpack.c.l.b16 %v3519
        %v3584 = vunpack.c.l.b16 %v3520
        %v3585 = vunpack.c.l.b16 %v3521
        %v3586 = vunpack.c.l.b16 %v3522
        %v3587 = vunpack.c.l.b16 %v3523
        %v3588 = vunpack.c.l.b16 %v3524
        %v3589 = vunpack.c.l.b16 %v3525
        %v3590 = vunpack.c.l.b16 %v3526
        %v3591 = vunpack.c.l.b16 %v3527
        %v3592 = vunpack.c.l.b16 %v3528
        %v3593 = vunpack.c.l.b16 %v3529
        %v3594 = vunpack.c.l.b16 %v3530
        %v3595 = vunpack.c.l.b16 %v3531
        %v3596 = vunpack.c.l.b16 %v3532
        %v3597 = vunpack.c.l.b16 %v3533
        %v3598 = vunpack.c.l.b16 %v3534
        %v3599 = vunpack.c.l.b16 %v3535
        %v3600 = vunpack.c.l.b16 %v3536
        %v3601 = vunpack.c.l.b16 %v3537
        %v3602 = vunpack.c.l.b16 %v3538
        %v3603 = vunpack.c.l.b16 %v3539
        %v3604 = vunpack.c.l.b16 %v3540
        %v3605 = vunpack.c.l.b16 %v3541
        %v3606 = vunpack.c.l.b16 %v3542
        %v3607 = vunpack.c.l.b16 %v3543
        %v3608 = vunpack.c.l.b16 %v3544
        %v3609 = vpack.c.b16 %v3578, %v3577
        %v3610 = vpack.c.b16 %v3580, %v3579
        %v3611 = vpack.c.b16 %v3582, %v3581
        %v3612 = vpack.c.b16 %v3584, %v3583
        %v3613 = vpack.c.b16 %v3586, %v3585
        %v3614 = vpack.c.b16 %v3588, %v3587
        %v3615 = vpack.c.b16 %v3590, %v3589
        %v3616 = vpack.c.b16 %v3592, %v3591
        %v3617 = vpack.c.b16 %v3594, %v3593
        %v3618 = vpack.c.b16 %v3596, %v3595
        %v3619 = vpack.c.b16 %v3598, %v3597
        %v3620 = vpack.c.b16 %v3600, %v3599
        %v3621 = vpack.c.b16 %v3602, %v3601
        %v3622 = vpack.c.b16 %v3604, %v3603
        %v3623 = vpack.c.b16 %v3606, %v3605
        %v3624 = vpack.c.b16 %v3608, %v3607
        %3625 = vrot.lane.b32.xlu0 %v3609, 48
        %v3626 = vpop.permute.xlu0 %3625
        %3627 = vrot.lane.b32.xlu0 %v3610, 48
        %v3628 = vpop.permute.xlu0 %3627
        %3629 = vrot.lane.b32.xlu0 %v3611, 48
        %v3630 = vpop.permute.xlu0 %3629
        %3631 = vrot.lane.b32.xlu0 %v3612, 48
        %v3632 = vpop.permute.xlu0 %3631
        %3633 = vrot.lane.b32.xlu0 %v3613, 48
        %v3634 = vpop.permute.xlu0 %3633
        %3635 = vrot.lane.b32.xlu0 %v3614, 48
        %v3636 = vpop.permute.xlu0 %3635
        %3637 = vrot.lane.b32.xlu0 %v3615, 48
        %v3638 = vpop.permute.xlu0 %3637
        %3639 = vrot.lane.b32.xlu0 %v3616, 48
        %v3640 = vpop.permute.xlu0 %3639
        %3641 = vrot.lane.b32.xlu0 %v3617, 48
        %v3642 = vpop.permute.xlu0 %3641
        %3643 = vrot.lane.b32.xlu0 %v3618, 48
        %v3644 = vpop.permute.xlu0 %3643
        %3645 = vrot.lane.b32.xlu0 %v3619, 48
        %v3646 = vpop.permute.xlu0 %3645
        %3647 = vrot.lane.b32.xlu0 %v3620, 48
        %v3648 = vpop.permute.xlu0 %3647
        %3649 = vrot.lane.b32.xlu0 %v3621, 48
        %v3650 = vpop.permute.xlu0 %3649
        %3651 = vrot.lane.b32.xlu0 %v3622, 48
        %v3652 = vpop.permute.xlu0 %3651
        %3653 = vrot.lane.b32.xlu0 %v3623, 48
        %v3654 = vpop.permute.xlu0 %3653
        %3655 = vrot.lane.b32.xlu0 %v3624, 48
        %v3656 = vpop.permute.xlu0 %3655
        %vm3673 = vcmask 458112
        %3674 = vst.msk [vmem:[#allocation3] sm:$0xff] %vm3673, %v3626
        %3675 = vst.msk [vmem:[#allocation3 + $0x8] sm:$0xff] %vm3673, %v3628
        %3676 = vst.msk [vmem:[#allocation3 + $0x10] sm:$0xff] %vm3673, %v3630
        %3677 = vst.msk [vmem:[#allocation3 + $0x18] sm:$0xff] %vm3673, %v3632
        %3678 = vst.msk [vmem:[#allocation3 + $0x20] sm:$0xff] %vm3673, %v3634
        %3679 = vst.msk [vmem:[#allocation3 + $0x28] sm:$0xff] %vm3673, %v3636
        %3680 = vst.msk [vmem:[#allocation3 + $0x30] sm:$0xff] %vm3673, %v3638
        %3681 = vst.msk [vmem:[#allocation3 + $0x38] sm:$0xff] %vm3673, %v3640
        %3682 = vst.msk [vmem:[#allocation3 + $0x40] sm:$0xff] %vm3673, %v3642
        %3683 = vst.msk [vmem:[#allocation3 + $0x48] sm:$0xff] %vm3673, %v3644
        %3684 = vst.msk [vmem:[#allocation3 + $0x50] sm:$0xff] %vm3673, %v3646
        %3685 = vst.msk [vmem:[#allocation3 + $0x58] sm:$0xff] %vm3673, %v3648
        %3686 = vst.msk [vmem:[#allocation3 + $0x60] sm:$0xff] %vm3673, %v3650
        %3687 = vst.msk [vmem:[#allocation3 + $0x68] sm:$0xff] %vm3673, %v3652
        %3688 = vst.msk [vmem:[#allocation3 + $0x70] sm:$0xff] %vm3673, %v3654
        %3689 = vst.msk [vmem:[#allocation3 + $0x78] sm:$0xff] %vm3673, %v3656
        %v3690 = vld [vmem:[%s3512] sm:$0xf]
        %v3691 = vld [vmem:[%s3512 + $0x4] sm:$0xf]
        %v3692 = vld [vmem:[%s3512 + $0x8] sm:$0x1]
        %v3693 = vld [vmem:[%s3512 + $0xc] sm:$0xf]
        %v3694 = vld [vmem:[%s3512 + $0x10] sm:$0xf]
        %v3695 = vld [vmem:[%s3512 + $0x14] sm:$0x1]
        %v3696 = vld [vmem:[%s3512 + $0x18] sm:$0xf]
        %v3697 = vld [vmem:[%s3512 + $0x1c] sm:$0xf]
        %v3698 = vld [vmem:[%s3512 + $0x20] sm:$0x1]
        %v3699 = vld [vmem:[%s3512 + $0x24] sm:$0xf]
        %v3700 = vld [vmem:[%s3512 + $0x28] sm:$0xf]
        %v3701 = vld [vmem:[%s3512 + $0x2c] sm:$0x1]
        %v3702 = vld [vmem:[%s3512 + $0x30] sm:$0xf]
        %v3703 = vld [vmem:[%s3512 + $0x34] sm:$0xf]
        %v3704 = vld [vmem:[%s3512 + $0x38] sm:$0x1]
        %v3705 = vld [vmem:[%s3512 + $0x3c] sm:$0xf]
        %v3706 = vld [vmem:[%s3512 + $0x40] sm:$0xf]
        %v3707 = vld [vmem:[%s3512 + $0x44] sm:$0x1]
        %v3708 = vld [vmem:[%s3512 + $0x48] sm:$0xf]
        %v3709 = vld [vmem:[%s3512 + $0x4c] sm:$0xf]
        %v3710 = vld [vmem:[%s3512 + $0x50] sm:$0x1]
        %v3711 = vld [vmem:[%s3512 + $0x54] sm:$0xf]
        %v3712 = vld [vmem:[%s3512 + $0x58] sm:$0xf]
        %v3713 = vld [vmem:[%s3512 + $0x5c] sm:$0x1]
        %v3714 = vld [vmem:[%s3512 + $0x60] sm:$0xf]
        %v3715 = vld [vmem:[%s3512 + $0x64] sm:$0xf]
        %v3716 = vld [vmem:[%s3512 + $0x68] sm:$0x1]
        %v3717 = vld [vmem:[%s3512 + $0x6c] sm:$0xf]
        %v3718 = vld [vmem:[%s3512 + $0x70] sm:$0xf]
        %v3719 = vld [vmem:[%s3512 + $0x74] sm:$0x1]
        %v3720 = vld [vmem:[%s3512 + $0x78] sm:$0xf]
        %v3721 = vld [vmem:[%s3512 + $0x7c] sm:$0xf]
        %v3722 = vld [vmem:[%s3512 + $0x80] sm:$0x1]
        %v3723 = vld [vmem:[%s3512 + $0x84] sm:$0xf]
        %v3724 = vld [vmem:[%s3512 + $0x88] sm:$0xf]
        %v3725 = vld [vmem:[%s3512 + $0x8c] sm:$0x1]
        %v3726 = vld [vmem:[%s3512 + $0x90] sm:$0xf]
        %v3727 = vld [vmem:[%s3512 + $0x94] sm:$0xf]
        %v3728 = vld [vmem:[%s3512 + $0x98] sm:$0x1]
        %v3729 = vld [vmem:[%s3512 + $0x9c] sm:$0xf]
        %v3730 = vld [vmem:[%s3512 + $0xa0] sm:$0xf]
        %v3731 = vld [vmem:[%s3512 + $0xa4] sm:$0x1]
        %v3732 = vld [vmem:[%s3512 + $0xa8] sm:$0xf]
        %v3733 = vld [vmem:[%s3512 + $0xac] sm:$0xf]
        %v3734 = vld [vmem:[%s3512 + $0xb0] sm:$0x1]
        %v3735 = vld [vmem:[%s3512 + $0xb4] sm:$0xf]
        %v3736 = vld [vmem:[%s3512 + $0xb8] sm:$0xf]
        %v3737 = vld [vmem:[%s3512 + $0xbc] sm:$0x1]
        %v3739 = vshrl.u32 %v3690, 16
        %v3741 = vrot.slane %v3739, 4
        %v3742 = vshll.u32 %v3690, 16
        %v3744 = vrot.slane %v3742, 5
        %v3745 = vor.u32 %v3741, %v3744
        %v3746 = vrot.slane %v3745, 4
        %v3748 = vshll.u32 %v3691, 16
        %v3750 = vrot.slane %v3748, 5
        %v3751 = vsel %vm1647, %v3746, %v3750
        %v3752 = vshrl.u32 %v3691, 16
        %v3754 = vrot.slane %v3752, 4
        %v3755 = vor.u32 %v3754, %v3750
        %v3756 = vrot.slane %v3755, 4
        %v3758 = vshll.u32 %v3692, 16
        %v3760 = vrot.slane %v3758, 5
        %v3761 = vsel %vm1647, %v3756, %v3760
        %v3763 = vshrl.u32 %v3693, 16
        %v3765 = vrot.slane %v3763, 4
        %v3766 = vshll.u32 %v3693, 16
        %v3768 = vrot.slane %v3766, 5
        %v3769 = vor.u32 %v3765, %v3768
        %v3770 = vrot.slane %v3769, 4
        %v3772 = vshll.u32 %v3694, 16
        %v3774 = vrot.slane %v3772, 5
        %v3775 = vsel %vm1647, %v3770, %v3774
        %v3776 = vshrl.u32 %v3694, 16
        %v3778 = vrot.slane %v3776, 4
        %v3779 = vor.u32 %v3778, %v3774
        %v3780 = vrot.slane %v3779, 4
        %v3782 = vshll.u32 %v3695, 16
        %v3784 = vrot.slane %v3782, 5
        %v3785 = vsel %vm1647, %v3780, %v3784
        %v3787 = vshrl.u32 %v3696, 16
        %v3789 = vrot.slane %v3787, 4
        %v3790 = vshll.u32 %v3696, 16
        %v3792 = vrot.slane %v3790, 5
        %v3793 = vor.u32 %v3789, %v3792
        %v3794 = vrot.slane %v3793, 4
        %v3796 = vshll.u32 %v3697, 16
        %v3798 = vrot.slane %v3796, 5
        %v3799 = vsel %vm1647, %v3794, %v3798
        %v3800 = vshrl.u32 %v3697, 16
        %v3802 = vrot.slane %v3800, 4
        %v3803 = vor.u32 %v3802, %v3798
        %v3804 = vrot.slane %v3803, 4
        %v3806 = vshll.u32 %v3698, 16
        %v3808 = vrot.slane %v3806, 5
        %v3809 = vsel %vm1647, %v3804, %v3808
        %v3811 = vshrl.u32 %v3699, 16
        %v3813 = vrot.slane %v3811, 4
        %v3814 = vshll.u32 %v3699, 16
        %v3816 = vrot.slane %v3814, 5
        %v3817 = vor.u32 %v3813, %v3816
        %v3818 = vrot.slane %v3817, 4
        %v3820 = vshll.u32 %v3700, 16
        %v3822 = vrot.slane %v3820, 5
        %v3823 = vsel %vm1647, %v3818, %v3822
        %v3824 = vshrl.u32 %v3700, 16
        %v3826 = vrot.slane %v3824, 4
        %v3827 = vor.u32 %v3826, %v3822
        %v3828 = vrot.slane %v3827, 4
        %v3830 = vshll.u32 %v3701, 16
        %v3832 = vrot.slane %v3830, 5
        %v3833 = vsel %vm1647, %v3828, %v3832
        %v3835 = vshrl.u32 %v3702, 16
        %v3837 = vrot.slane %v3835, 4
        %v3838 = vshll.u32 %v3702, 16
        %v3840 = vrot.slane %v3838, 5
        %v3841 = vor.u32 %v3837, %v3840
        %v3842 = vrot.slane %v3841, 4
        %v3844 = vshll.u32 %v3703, 16
        %v3846 = vrot.slane %v3844, 5
        %v3847 = vsel %vm1647, %v3842, %v3846
        %v3848 = vshrl.u32 %v3703, 16
        %v3850 = vrot.slane %v3848, 4
        %v3851 = vor.u32 %v3850, %v3846
        %v3852 = vrot.slane %v3851, 4
        %v3854 = vshll.u32 %v3704, 16
        %v3856 = vrot.slane %v3854, 5
        %v3857 = vsel %vm1647, %v3852, %v3856
        %v3859 = vshrl.u32 %v3705, 16
        %v3861 = vrot.slane %v3859, 4
        %v3862 = vshll.u32 %v3705, 16
        %v3864 = vrot.slane %v3862, 5
        %v3865 = vor.u32 %v3861, %v3864
        %v3866 = vrot.slane %v3865, 4
        %v3868 = vshll.u32 %v3706, 16
        %v3870 = vrot.slane %v3868, 5
        %v3871 = vsel %vm1647, %v3866, %v3870
        %v3872 = vshrl.u32 %v3706, 16
        %v3874 = vrot.slane %v3872, 4
        %v3875 = vor.u32 %v3874, %v3870
        %v3876 = vrot.slane %v3875, 4
        %v3878 = vshll.u32 %v3707, 16
        %v3880 = vrot.slane %v3878, 5
        %v3881 = vsel %vm1647, %v3876, %v3880
        %v3883 = vshrl.u32 %v3708, 16
        %v3885 = vrot.slane %v3883, 4
        %v3886 = vshll.u32 %v3708, 16
        %v3888 = vrot.slane %v3886, 5
        %v3889 = vor.u32 %v3885, %v3888
        %v3890 = vrot.slane %v3889, 4
        %v3892 = vshll.u32 %v3709, 16
        %v3894 = vrot.slane %v3892, 5
        %v3895 = vsel %vm1647, %v3890, %v3894
        %v3896 = vshrl.u32 %v3709, 16
        %v3898 = vrot.slane %v3896, 4
        %v3899 = vor.u32 %v3898, %v3894
        %v3900 = vrot.slane %v3899, 4
        %v3902 = vshll.u32 %v3710, 16
        %v3904 = vrot.slane %v3902, 5
        %v3905 = vsel %vm1647, %v3900, %v3904
        %v3907 = vshrl.u32 %v3711, 16
        %v3909 = vrot.slane %v3907, 4
        %v3910 = vshll.u32 %v3711, 16
        %v3912 = vrot.slane %v3910, 5
        %v3913 = vor.u32 %v3909, %v3912
        %v3914 = vrot.slane %v3913, 4
        %v3916 = vshll.u32 %v3712, 16
        %v3918 = vrot.slane %v3916, 5
        %v3919 = vsel %vm1647, %v3914, %v3918
        %v3920 = vshrl.u32 %v3712, 16
        %v3922 = vrot.slane %v3920, 4
        %v3923 = vor.u32 %v3922, %v3918
        %v3924 = vrot.slane %v3923, 4
        %v3926 = vshll.u32 %v3713, 16
        %v3928 = vrot.slane %v3926, 5
        %v3929 = vsel %vm1647, %v3924, %v3928
        %v3931 = vshrl.u32 %v3714, 16
        %v3933 = vrot.slane %v3931, 4
        %v3934 = vshll.u32 %v3714, 16
        %v3936 = vrot.slane %v3934, 5
        %v3937 = vor.u32 %v3933, %v3936
        %v3938 = vrot.slane %v3937, 4
        %v3940 = vshll.u32 %v3715, 16
        %v3942 = vrot.slane %v3940, 5
        %v3943 = vsel %vm1647, %v3938, %v3942
        %v3944 = vshrl.u32 %v3715, 16
        %v3946 = vrot.slane %v3944, 4
        %v3947 = vor.u32 %v3946, %v3942
        %v3948 = vrot.slane %v3947, 4
        %v3950 = vshll.u32 %v3716, 16
        %v3952 = vrot.slane %v3950, 5
        %v3953 = vsel %vm1647, %v3948, %v3952
        %v3955 = vshrl.u32 %v3717, 16
        %v3957 = vrot.slane %v3955, 4
        %v3958 = vshll.u32 %v3717, 16
        %v3960 = vrot.slane %v3958, 5
        %v3961 = vor.u32 %v3957, %v3960
        %v3962 = vrot.slane %v3961, 4
        %v3964 = vshll.u32 %v3718, 16
        %v3966 = vrot.slane %v3964, 5
        %v3967 = vsel %vm1647, %v3962, %v3966
        %v3968 = vshrl.u32 %v3718, 16
        %v3970 = vrot.slane %v3968, 4
        %v3971 = vor.u32 %v3970, %v3966
        %v3972 = vrot.slane %v3971, 4
        %v3974 = vshll.u32 %v3719, 16
        %v3976 = vrot.slane %v3974, 5
        %v3977 = vsel %vm1647, %v3972, %v3976
        %v3979 = vshrl.u32 %v3720, 16
        %v3981 = vrot.slane %v3979, 4
        %v3982 = vshll.u32 %v3720, 16
        %v3984 = vrot.slane %v3982, 5
        %v3985 = vor.u32 %v3981, %v3984
        %v3986 = vrot.slane %v3985, 4
        %v3988 = vshll.u32 %v3721, 16
        %v3990 = vrot.slane %v3988, 5
        %v3991 = vsel %vm1647, %v3986, %v3990
        %v3992 = vshrl.u32 %v3721, 16
        %v3994 = vrot.slane %v3992, 4
        %v3995 = vor.u32 %v3994, %v3990
        %v3996 = vrot.slane %v3995, 4
        %v3998 = vshll.u32 %v3722, 16
        %v4000 = vrot.slane %v3998, 5
        %v4001 = vsel %vm1647, %v3996, %v4000
        %v4003 = vshrl.u32 %v3723, 16
        %v4005 = vrot.slane %v4003, 4
        %v4006 = vshll.u32 %v3723, 16
        %v4008 = vrot.slane %v4006, 5
        %v4009 = vor.u32 %v4005, %v4008
        %v4010 = vrot.slane %v4009, 4
        %v4012 = vshll.u32 %v3724, 16
        %v4014 = vrot.slane %v4012, 5
        %v4015 = vsel %vm1647, %v4010, %v4014
        %v4016 = vshrl.u32 %v3724, 16
        %v4018 = vrot.slane %v4016, 4
        %v4019 = vor.u32 %v4018, %v4014
        %v4020 = vrot.slane %v4019, 4
        %v4022 = vshll.u32 %v3725, 16
        %v4024 = vrot.slane %v4022, 5
        %v4025 = vsel %vm1647, %v4020, %v4024
        %v4027 = vshrl.u32 %v3726, 16
        %v4029 = vrot.slane %v4027, 4
        %v4030 = vshll.u32 %v3726, 16
        %v4032 = vrot.slane %v4030, 5
        %v4033 = vor.u32 %v4029, %v4032
        %v4034 = vrot.slane %v4033, 4
        %v4036 = vshll.u32 %v3727, 16
        %v4038 = vrot.slane %v4036, 5
        %v4039 = vsel %vm1647, %v4034, %v4038
        %v4040 = vshrl.u32 %v3727, 16
        %v4042 = vrot.slane %v4040, 4
        %v4043 = vor.u32 %v4042, %v4038
        %v4044 = vrot.slane %v4043, 4
        %v4046 = vshll.u32 %v3728, 16
        %v4048 = vrot.slane %v4046, 5
        %v4049 = vsel %vm1647, %v4044, %v4048
        %v4051 = vshrl.u32 %v3729, 16
        %v4053 = vrot.slane %v4051, 4
        %v4054 = vshll.u32 %v3729, 16
        %v4056 = vrot.slane %v4054, 5
        %v4057 = vor.u32 %v4053, %v4056
        %v4058 = vrot.slane %v4057, 4
        %v4060 = vshll.u32 %v3730, 16
        %v4062 = vrot.slane %v4060, 5
        %v4063 = vsel %vm1647, %v4058, %v4062
        %v4064 = vshrl.u32 %v3730, 16
        %v4066 = vrot.slane %v4064, 4
        %v4067 = vor.u32 %v4066, %v4062
        %v4068 = vrot.slane %v4067, 4
        %v4070 = vshll.u32 %v3731, 16
        %v4072 = vrot.slane %v4070, 5
        %v4073 = vsel %vm1647, %v4068, %v4072
        %v4075 = vshrl.u32 %v3732, 16
        %v4077 = vrot.slane %v4075, 4
        %v4078 = vshll.u32 %v3732, 16
        %v4080 = vrot.slane %v4078, 5
        %v4081 = vor.u32 %v4077, %v4080
        %v4082 = vrot.slane %v4081, 4
        %v4084 = vshll.u32 %v3733, 16
        %v4086 = vrot.slane %v4084, 5
        %v4087 = vsel %vm1647, %v4082, %v4086
        %v4088 = vshrl.u32 %v3733, 16
        %v4090 = vrot.slane %v4088, 4
        %v4091 = vor.u32 %v4090, %v4086
        %v4092 = vrot.slane %v4091, 4
        %v4094 = vshll.u32 %v3734, 16
        %v4096 = vrot.slane %v4094, 5
        %v4097 = vsel %vm1647, %v4092, %v4096
        %v4099 = vshrl.u32 %v3735, 16
        %v4101 = vrot.slane %v4099, 4
        %v4102 = vshll.u32 %v3735, 16
        %v4104 = vrot.slane %v4102, 5
        %v4105 = vor.u32 %v4101, %v4104
        %v4106 = vrot.slane %v4105, 4
        %v4108 = vshll.u32 %v3736, 16
        %v4110 = vrot.slane %v4108, 5
        %v4111 = vsel %vm1647, %v4106, %v4110
        %v4112 = vshrl.u32 %v3736, 16
        %v4114 = vrot.slane %v4112, 4
        %v4115 = vor.u32 %v4114, %v4110
        %v4116 = vrot.slane %v4115, 4
        %v4118 = vshll.u32 %v3737, 16
        %v4120 = vrot.slane %v4118, 5
        %v4121 = vsel %vm1647, %v4116, %v4120
        %v4122 = vunpack.c.l.b16 %v3751
        %v4123 = vunpack.c.l.b16 %v3761
        %v4124 = vunpack.c.l.b16 %v3775
        %v4125 = vunpack.c.l.b16 %v3785
        %v4126 = vunpack.c.l.b16 %v3799
        %v4127 = vunpack.c.l.b16 %v3809
        %v4128 = vunpack.c.l.b16 %v3823
        %v4129 = vunpack.c.l.b16 %v3833
        %v4130 = vunpack.c.l.b16 %v3847
        %v4131 = vunpack.c.l.b16 %v3857
        %v4132 = vunpack.c.l.b16 %v3871
        %v4133 = vunpack.c.l.b16 %v3881
        %v4134 = vunpack.c.l.b16 %v3895
        %v4135 = vunpack.c.l.b16 %v3905
        %v4136 = vunpack.c.l.b16 %v3919
        %v4137 = vunpack.c.l.b16 %v3929
        %v4138 = vunpack.c.l.b16 %v3943
        %v4139 = vunpack.c.l.b16 %v3953
        %v4140 = vunpack.c.l.b16 %v3967
        %v4141 = vunpack.c.l.b16 %v3977
        %v4142 = vunpack.c.l.b16 %v3991
        %v4143 = vunpack.c.l.b16 %v4001
        %v4144 = vunpack.c.l.b16 %v4015
        %v4145 = vunpack.c.l.b16 %v4025
        %v4146 = vunpack.c.l.b16 %v4039
        %v4147 = vunpack.c.l.b16 %v4049
        %v4148 = vunpack.c.l.b16 %v4063
        %v4149 = vunpack.c.l.b16 %v4073
        %v4150 = vunpack.c.l.b16 %v4087
        %v4151 = vunpack.c.l.b16 %v4097
        %v4152 = vunpack.c.l.b16 %v4111
        %v4153 = vunpack.c.l.b16 %v4121
        %v4154 = vpack.c.b16 %v4123, %v4122
        %v4155 = vpack.c.b16 %v4125, %v4124
        %v4156 = vpack.c.b16 %v4127, %v4126
        %v4157 = vpack.c.b16 %v4129, %v4128
        %v4158 = vpack.c.b16 %v4131, %v4130
        %v4159 = vpack.c.b16 %v4133, %v4132
        %v4160 = vpack.c.b16 %v4135, %v4134
        %v4161 = vpack.c.b16 %v4137, %v4136
        %v4162 = vpack.c.b16 %v4139, %v4138
        %v4163 = vpack.c.b16 %v4141, %v4140
        %v4164 = vpack.c.b16 %v4143, %v4142
        %v4165 = vpack.c.b16 %v4145, %v4144
        %v4166 = vpack.c.b16 %v4147, %v4146
        %v4167 = vpack.c.b16 %v4149, %v4148
        %v4168 = vpack.c.b16 %v4151, %v4150
        %v4169 = vpack.c.b16 %v4153, %v4152
        %4170 = vrot.lane.b32.xlu0 %v4154, 56
        %v4171 = vpop.permute.xlu0 %4170
        %4172 = vrot.lane.b32.xlu0 %v4155, 56
        %v4173 = vpop.permute.xlu0 %4172
        %4174 = vrot.lane.b32.xlu0 %v4156, 56
        %v4175 = vpop.permute.xlu0 %4174
        %4176 = vrot.lane.b32.xlu0 %v4157, 56
        %v4177 = vpop.permute.xlu0 %4176
        %4178 = vrot.lane.b32.xlu0 %v4158, 56
        %v4179 = vpop.permute.xlu0 %4178
        %4180 = vrot.lane.b32.xlu0 %v4159, 56
        %v4181 = vpop.permute.xlu0 %4180
        %4182 = vrot.lane.b32.xlu0 %v4160, 56
        %v4183 = vpop.permute.xlu0 %4182
        %4184 = vrot.lane.b32.xlu0 %v4161, 56
        %v4185 = vpop.permute.xlu0 %4184
        %4186 = vrot.lane.b32.xlu0 %v4162, 56
        %v4187 = vpop.permute.xlu0 %4186
        %4188 = vrot.lane.b32.xlu0 %v4163, 56
        %v4189 = vpop.permute.xlu0 %4188
        %4190 = vrot.lane.b32.xlu0 %v4164, 56
        %v4191 = vpop.permute.xlu0 %4190
        %4192 = vrot.lane.b32.xlu0 %v4165, 56
        %v4193 = vpop.permute.xlu0 %4192
        %4194 = vrot.lane.b32.xlu0 %v4166, 56
        %v4195 = vpop.permute.xlu0 %4194
        %4196 = vrot.lane.b32.xlu0 %v4167, 56
        %v4197 = vpop.permute.xlu0 %4196
        %4198 = vrot.lane.b32.xlu0 %v4168, 56
        %v4199 = vpop.permute.xlu0 %4198
        %4200 = vrot.lane.b32.xlu0 %v4169, 56
        %v4201 = vpop.permute.xlu0 %4200
        %vm4218 = vcmask 523712
        %4219 = vst.msk [vmem:[#allocation3] sm:$0xff] %vm4218, %v4171
        %4220 = vst.msk [vmem:[#allocation3 + $0x8] sm:$0xff] %vm4218, %v4173
        %4221 = vst.msk [vmem:[#allocation3 + $0x10] sm:$0xff] %vm4218, %v4175
        %4222 = vst.msk [vmem:[#allocation3 + $0x18] sm:$0xff] %vm4218, %v4177
        %4223 = vst.msk [vmem:[#allocation3 + $0x20] sm:$0xff] %vm4218, %v4179
        %4224 = vst.msk [vmem:[#allocation3 + $0x28] sm:$0xff] %vm4218, %v4181
        %4225 = vst.msk [vmem:[#allocation3 + $0x30] sm:$0xff] %vm4218, %v4183
        %4226 = vst.msk [vmem:[#allocation3 + $0x38] sm:$0xff] %vm4218, %v4185
        %4227 = vst.msk [vmem:[#allocation3 + $0x40] sm:$0xff] %vm4218, %v4187
        %4228 = vst.msk [vmem:[#allocation3 + $0x48] sm:$0xff] %vm4218, %v4189
        %4229 = vst.msk [vmem:[#allocation3 + $0x50] sm:$0xff] %vm4218, %v4191
        %4230 = vst.msk [vmem:[#allocation3 + $0x58] sm:$0xff] %vm4218, %v4193
        %4231 = vst.msk [vmem:[#allocation3 + $0x60] sm:$0xff] %vm4218, %v4195
        %4232 = vst.msk [vmem:[#allocation3 + $0x68] sm:$0xff] %vm4218, %v4197
        %4233 = vst.msk [vmem:[#allocation3 + $0x70] sm:$0xff] %vm4218, %v4199
        %4234 = vst.msk [vmem:[#allocation3 + $0x78] sm:$0xff] %vm4218, %v4201
        %v4235 = vld [vmem:[%s3512] sm:$0xe]
        %v4236 = vld [vmem:[%s3512 + $0x4] sm:$0xf]
        %v4237 = vld [vmem:[%s3512 + $0x8] sm:$0x1]
        %v4238 = vld [vmem:[%s3512 + $0xc] sm:$0xe]
        %v4239 = vld [vmem:[%s3512 + $0x10] sm:$0xf]
        %v4240 = vld [vmem:[%s3512 + $0x14] sm:$0x1]
        %v4241 = vld [vmem:[%s3512 + $0x18] sm:$0xe]
        %v4242 = vld [vmem:[%s3512 + $0x1c] sm:$0xf]
        %v4243 = vld [vmem:[%s3512 + $0x20] sm:$0x1]
        %v4244 = vld [vmem:[%s3512 + $0x24] sm:$0xe]
        %v4245 = vld [vmem:[%s3512 + $0x28] sm:$0xf]
        %v4246 = vld [vmem:[%s3512 + $0x2c] sm:$0x1]
        %v4247 = vld [vmem:[%s3512 + $0x30] sm:$0xe]
        %v4248 = vld [vmem:[%s3512 + $0x34] sm:$0xf]
        %v4249 = vld [vmem:[%s3512 + $0x38] sm:$0x1]
        %v4250 = vld [vmem:[%s3512 + $0x3c] sm:$0xe]
        %v4251 = vld [vmem:[%s3512 + $0x40] sm:$0xf]
        %v4252 = vld [vmem:[%s3512 + $0x44] sm:$0x1]
        %v4253 = vld [vmem:[%s3512 + $0x48] sm:$0xe]
        %v4254 = vld [vmem:[%s3512 + $0x4c] sm:$0xf]
        %v4255 = vld [vmem:[%s3512 + $0x50] sm:$0x1]
        %v4256 = vld [vmem:[%s3512 + $0x54] sm:$0xe]
        %v4257 = vld [vmem:[%s3512 + $0x58] sm:$0xf]
        %v4258 = vld [vmem:[%s3512 + $0x5c] sm:$0x1]
        %v4259 = vld [vmem:[%s3512 + $0x60] sm:$0xe]
        %v4260 = vld [vmem:[%s3512 + $0x64] sm:$0xf]
        %v4261 = vld [vmem:[%s3512 + $0x68] sm:$0x1]
        %v4262 = vld [vmem:[%s3512 + $0x6c] sm:$0xe]
        %v4263 = vld [vmem:[%s3512 + $0x70] sm:$0xf]
        %v4264 = vld [vmem:[%s3512 + $0x74] sm:$0x1]
        %v4265 = vld [vmem:[%s3512 + $0x78] sm:$0xe]
        %v4266 = vld [vmem:[%s3512 + $0x7c] sm:$0xf]
        %v4267 = vld [vmem:[%s3512 + $0x80] sm:$0x1]
        %v4268 = vld [vmem:[%s3512 + $0x84] sm:$0xe]
        %v4269 = vld [vmem:[%s3512 + $0x88] sm:$0xf]
        %v4270 = vld [vmem:[%s3512 + $0x8c] sm:$0x1]
        %v4271 = vld [vmem:[%s3512 + $0x90] sm:$0xe]
        %v4272 = vld [vmem:[%s3512 + $0x94] sm:$0xf]
        %v4273 = vld [vmem:[%s3512 + $0x98] sm:$0x1]
        %v4274 = vld [vmem:[%s3512 + $0x9c] sm:$0xe]
        %v4275 = vld [vmem:[%s3512 + $0xa0] sm:$0xf]
        %v4276 = vld [vmem:[%s3512 + $0xa4] sm:$0x1]
        %v4277 = vld [vmem:[%s3512 + $0xa8] sm:$0xe]
        %v4278 = vld [vmem:[%s3512 + $0xac] sm:$0xf]
        %v4279 = vld [vmem:[%s3512 + $0xb0] sm:$0x1]
        %v4280 = vld [vmem:[%s3512 + $0xb4] sm:$0xe]
        %v4281 = vld [vmem:[%s3512 + $0xb8] sm:$0xf]
        %v4282 = vld [vmem:[%s3512 + $0xbc] sm:$0x1]
        %v4331 = vrot.slane %v4235, 5
        %v4332 = vrot.slane %v4331, 4
        %v4333 = vrot.slane %v4236, 5
        %v4334 = vsel %vm2243, %v4332, %v4333
        %v4335 = vrot.slane %v4333, 4
        %v4336 = vrot.slane %v4237, 5
        %v4337 = vsel %vm2243, %v4335, %v4336
        %v4338 = vrot.slane %v4238, 5
        %v4339 = vrot.slane %v4338, 4
        %v4340 = vrot.slane %v4239, 5
        %v4341 = vsel %vm2243, %v4339, %v4340
        %v4342 = vrot.slane %v4340, 4
        %v4343 = vrot.slane %v4240, 5
        %v4344 = vsel %vm2243, %v4342, %v4343
        %v4345 = vrot.slane %v4241, 5
        %v4346 = vrot.slane %v4345, 4
        %v4347 = vrot.slane %v4242, 5
        %v4348 = vsel %vm2243, %v4346, %v4347
        %v4349 = vrot.slane %v4347, 4
        %v4350 = vrot.slane %v4243, 5
        %v4351 = vsel %vm2243, %v4349, %v4350
        %v4352 = vrot.slane %v4244, 5
        %v4353 = vrot.slane %v4352, 4
        %v4354 = vrot.slane %v4245, 5
        %v4355 = vsel %vm2243, %v4353, %v4354
        %v4356 = vrot.slane %v4354, 4
        %v4357 = vrot.slane %v4246, 5
        %v4358 = vsel %vm2243, %v4356, %v4357
        %v4359 = vrot.slane %v4247, 5
        %v4360 = vrot.slane %v4359, 4
        %v4361 = vrot.slane %v4248, 5
        %v4362 = vsel %vm2243, %v4360, %v4361
        %v4363 = vrot.slane %v4361, 4
        %v4364 = vrot.slane %v4249, 5
        %v4365 = vsel %vm2243, %v4363, %v4364
        %v4366 = vrot.slane %v4250, 5
        %v4367 = vrot.slane %v4366, 4
        %v4368 = vrot.slane %v4251, 5
        %v4369 = vsel %vm2243, %v4367, %v4368
        %v4370 = vrot.slane %v4368, 4
        %v4371 = vrot.slane %v4252, 5
        %v4372 = vsel %vm2243, %v4370, %v4371
        %v4373 = vrot.slane %v4253, 5
        %v4374 = vrot.slane %v4373, 4
        %v4375 = vrot.slane %v4254, 5
        %v4376 = vsel %vm2243, %v4374, %v4375
        %v4377 = vrot.slane %v4375, 4
        %v4378 = vrot.slane %v4255, 5
        %v4379 = vsel %vm2243, %v4377, %v4378
        %v4380 = vrot.slane %v4256, 5
        %v4381 = vrot.slane %v4380, 4
        %v4382 = vrot.slane %v4257, 5
        %v4383 = vsel %vm2243, %v4381, %v4382
        %v4384 = vrot.slane %v4382, 4
        %v4385 = vrot.slane %v4258, 5
        %v4386 = vsel %vm2243, %v4384, %v4385
        %v4387 = vrot.slane %v4259, 5
        %v4388 = vrot.slane %v4387, 4
        %v4389 = vrot.slane %v4260, 5
        %v4390 = vsel %vm2243, %v4388, %v4389
        %v4391 = vrot.slane %v4389, 4
        %v4392 = vrot.slane %v4261, 5
        %v4393 = vsel %vm2243, %v4391, %v4392
        %v4394 = vrot.slane %v4262, 5
        %v4395 = vrot.slane %v4394, 4
        %v4396 = vrot.slane %v4263, 5
        %v4397 = vsel %vm2243, %v4395, %v4396
        %v4398 = vrot.slane %v4396, 4
        %v4399 = vrot.slane %v4264, 5
        %v4400 = vsel %vm2243, %v4398, %v4399
        %v4401 = vrot.slane %v4265, 5
        %v4402 = vrot.slane %v4401, 4
        %v4403 = vrot.slane %v4266, 5
        %v4404 = vsel %vm2243, %v4402, %v4403
        %v4405 = vrot.slane %v4403, 4
        %v4406 = vrot.slane %v4267, 5
        %v4407 = vsel %vm2243, %v4405, %v4406
        %v4408 = vrot.slane %v4268, 5
        %v4409 = vrot.slane %v4408, 4
        %v4410 = vrot.slane %v4269, 5
        %v4411 = vsel %vm2243, %v4409, %v4410
        %v4412 = vrot.slane %v4410, 4
        %v4413 = vrot.slane %v4270, 5
        %v4414 = vsel %vm2243, %v4412, %v4413
        %v4415 = vrot.slane %v4271, 5
        %v4416 = vrot.slane %v4415, 4
        %v4417 = vrot.slane %v4272, 5
        %v4418 = vsel %vm2243, %v4416, %v4417
        %v4419 = vrot.slane %v4417, 4
        %v4420 = vrot.slane %v4273, 5
        %v4421 = vsel %vm2243, %v4419, %v4420
        %v4422 = vrot.slane %v4274, 5
        %v4423 = vrot.slane %v4422, 4
        %v4424 = vrot.slane %v4275, 5
        %v4425 = vsel %vm2243, %v4423, %v4424
        %v4426 = vrot.slane %v4424, 4
        %v4427 = vrot.slane %v4276, 5
        %v4428 = vsel %vm2243, %v4426, %v4427
        %v4429 = vrot.slane %v4277, 5
        %v4430 = vrot.slane %v4429, 4
        %v4431 = vrot.slane %v4278, 5
        %v4432 = vsel %vm2243, %v4430, %v4431
        %v4433 = vrot.slane %v4431, 4
        %v4434 = vrot.slane %v4279, 5
        %v4435 = vsel %vm2243, %v4433, %v4434
        %v4436 = vrot.slane %v4280, 5
        %v4437 = vrot.slane %v4436, 4
        %v4438 = vrot.slane %v4281, 5
        %v4439 = vsel %vm2243, %v4437, %v4438
        %v4440 = vrot.slane %v4438, 4
        %v4441 = vrot.slane %v4282, 5
        %v4442 = vsel %vm2243, %v4440, %v4441
        %v4443 = vunpack.c.l.b16 %v4334
        %v4444 = vunpack.c.l.b16 %v4337
        %v4445 = vunpack.c.l.b16 %v4341
        %v4446 = vunpack.c.l.b16 %v4344
        %v4447 = vunpack.c.l.b16 %v4348
        %v4448 = vunpack.c.l.b16 %v4351
        %v4449 = vunpack.c.l.b16 %v4355
        %v4450 = vunpack.c.l.b16 %v4358
        %v4451 = vunpack.c.l.b16 %v4362
        %v4452 = vunpack.c.l.b16 %v4365
        %v4453 = vunpack.c.l.b16 %v4369
        %v4454 = vunpack.c.l.b16 %v4372
        %v4455 = vunpack.c.l.b16 %v4376
        %v4456 = vunpack.c.l.b16 %v4379
        %v4457 = vunpack.c.l.b16 %v4383
        %v4458 = vunpack.c.l.b16 %v4386
        %v4459 = vunpack.c.l.b16 %v4390
        %v4460 = vunpack.c.l.b16 %v4393
        %v4461 = vunpack.c.l.b16 %v4397
        %v4462 = vunpack.c.l.b16 %v4400
        %v4463 = vunpack.c.l.b16 %v4404
        %v4464 = vunpack.c.l.b16 %v4407
        %v4465 = vunpack.c.l.b16 %v4411
        %v4466 = vunpack.c.l.b16 %v4414
        %v4467 = vunpack.c.l.b16 %v4418
        %v4468 = vunpack.c.l.b16 %v4421
        %v4469 = vunpack.c.l.b16 %v4425
        %v4470 = vunpack.c.l.b16 %v4428
        %v4471 = vunpack.c.l.b16 %v4432
        %v4472 = vunpack.c.l.b16 %v4435
        %v4473 = vunpack.c.l.b16 %v4439
        %v4474 = vunpack.c.l.b16 %v4442
        %v4475 = vpack.c.b16 %v4444, %v4443
        %v4476 = vpack.c.b16 %v4446, %v4445
        %v4477 = vpack.c.b16 %v4448, %v4447
        %v4478 = vpack.c.b16 %v4450, %v4449
        %v4479 = vpack.c.b16 %v4452, %v4451
        %v4480 = vpack.c.b16 %v4454, %v4453
        %v4481 = vpack.c.b16 %v4456, %v4455
        %v4482 = vpack.c.b16 %v4458, %v4457
        %v4483 = vpack.c.b16 %v4460, %v4459
        %v4484 = vpack.c.b16 %v4462, %v4461
        %v4485 = vpack.c.b16 %v4464, %v4463
        %v4486 = vpack.c.b16 %v4466, %v4465
        %v4487 = vpack.c.b16 %v4468, %v4467
        %v4488 = vpack.c.b16 %v4470, %v4469
        %v4489 = vpack.c.b16 %v4472, %v4471
        %v4490 = vpack.c.b16 %v4474, %v4473
        %4491 = vrot.lane.b32.xlu0 %v4475, 64
        %v4492 = vpop.permute.xlu0 %4491
        %4493 = vrot.lane.b32.xlu0 %v4476, 64
        %v4494 = vpop.permute.xlu0 %4493
        %4495 = vrot.lane.b32.xlu0 %v4477, 64
        %v4496 = vpop.permute.xlu0 %4495
        %4497 = vrot.lane.b32.xlu0 %v4478, 64
        %v4498 = vpop.permute.xlu0 %4497
        %4499 = vrot.lane.b32.xlu0 %v4479, 64
        %v4500 = vpop.permute.xlu0 %4499
        %4501 = vrot.lane.b32.xlu0 %v4480, 64
        %v4502 = vpop.permute.xlu0 %4501
        %4503 = vrot.lane.b32.xlu0 %v4481, 64
        %v4504 = vpop.permute.xlu0 %4503
        %4505 = vrot.lane.b32.xlu0 %v4482, 64
        %v4506 = vpop.permute.xlu0 %4505
        %4507 = vrot.lane.b32.xlu0 %v4483, 64
        %v4508 = vpop.permute.xlu0 %4507
        %4509 = vrot.lane.b32.xlu0 %v4484, 64
        %v4510 = vpop.permute.xlu0 %4509
        %4511 = vrot.lane.b32.xlu0 %v4485, 64
        %v4512 = vpop.permute.xlu0 %4511
        %4513 = vrot.lane.b32.xlu0 %v4486, 64
        %v4514 = vpop.permute.xlu0 %4513
        %4515 = vrot.lane.b32.xlu0 %v4487, 64
        %v4516 = vpop.permute.xlu0 %4515
        %4517 = vrot.lane.b32.xlu0 %v4488, 64
        %v4518 = vpop.permute.xlu0 %4517
        %4519 = vrot.lane.b32.xlu0 %v4489, 64
        %v4520 = vpop.permute.xlu0 %4519
        %4521 = vrot.lane.b32.xlu0 %v4490, 64
        %v4522 = vpop.permute.xlu0 %4521
        %vm4539 = vcmask 589312
        %4540 = vst.msk [vmem:[#allocation3] sm:$0xff] %vm4539, %v4492
        %4541 = vst.msk [vmem:[#allocation3 + $0x8] sm:$0xff] %vm4539, %v4494
        %4542 = vst.msk [vmem:[#allocation3 + $0x10] sm:$0xff] %vm4539, %v4496
        %4543 = vst.msk [vmem:[#allocation3 + $0x18] sm:$0xff] %vm4539, %v4498
        %4544 = vst.msk [vmem:[#allocation3 + $0x20] sm:$0xff] %vm4539, %v4500
        %4545 = vst.msk [vmem:[#allocation3 + $0x28] sm:$0xff] %vm4539, %v4502
        %4546 = vst.msk [vmem:[#allocation3 + $0x30] sm:$0xff] %vm4539, %v4504
        %4547 = vst.msk [vmem:[#allocation3 + $0x38] sm:$0xff] %vm4539, %v4506
        %4548 = vst.msk [vmem:[#allocation3 + $0x40] sm:$0xff] %vm4539, %v4508
        %4549 = vst.msk [vmem:[#allocation3 + $0x48] sm:$0xff] %vm4539, %v4510
        %4550 = vst.msk [vmem:[#allocation3 + $0x50] sm:$0xff] %vm4539, %v4512
        %4551 = vst.msk [vmem:[#allocation3 + $0x58] sm:$0xff] %vm4539, %v4514
        %4552 = vst.msk [vmem:[#allocation3 + $0x60] sm:$0xff] %vm4539, %v4516
        %4553 = vst.msk [vmem:[#allocation3 + $0x68] sm:$0xff] %vm4539, %v4518
        %4554 = vst.msk [vmem:[#allocation3 + $0x70] sm:$0xff] %vm4539, %v4520
        %4555 = vst.msk [vmem:[#allocation3 + $0x78] sm:$0xff] %vm4539, %v4522
        %v4556 = vld [vmem:[#allocation3] sm:$0xff]
        %v4557 = vld [vmem:[#allocation3 + $0x8] sm:$0xff]
        %v4558 = vld [vmem:[#allocation3 + $0x10] sm:$0xff]
        %v4559 = vld [vmem:[#allocation3 + $0x18] sm:$0xff]
        %v4560 = vld [vmem:[#allocation3 + $0x20] sm:$0xff]
        %v4561 = vld [vmem:[#allocation3 + $0x28] sm:$0xff]
        %v4562 = vld [vmem:[#allocation3 + $0x30] sm:$0xff]
        %v4563 = vld [vmem:[#allocation3 + $0x38] sm:$0xff]
        %v4564 = vld [vmem:[#allocation3 + $0x40] sm:$0xff]
        %v4565 = vld [vmem:[#allocation3 + $0x48] sm:$0xff]
        %v4566 = vld [vmem:[#allocation3 + $0x50] sm:$0xff]
        %v4567 = vld [vmem:[#allocation3 + $0x58] sm:$0xff]
        %v4568 = vld [vmem:[#allocation3 + $0x60] sm:$0xff]
        %v4569 = vld [vmem:[#allocation3 + $0x68] sm:$0xff]
        %v4570 = vld [vmem:[#allocation3 + $0x70] sm:$0xff]
        %v4571 = vld [vmem:[#allocation3 + $0x78] sm:$0xff]
        %v4572 = vld [vmem:[%s3] sm:$0xf]
        %v4573 = vld [vmem:[%s3 + $0x4] sm:$0xf]
        %v4574 = vld [vmem:[%s3 + $0x8] sm:$0xf]
        %v4575 = vld [vmem:[%s3 + $0xc] sm:$0xf]
        %v4576 = vld [vmem:[%s3 + $0x10] sm:$0xf]
        %v4577 = vld [vmem:[%s3 + $0x14] sm:$0xf]
        %v4578 = vld [vmem:[%s3 + $0x18] sm:$0xf]
        %v4579 = vld [vmem:[%s3 + $0x1c] sm:$0xf]
        %v4580 = vld [vmem:[%s3 + $0x20] sm:$0xf]
        %v4581 = vld [vmem:[%s3 + $0x24] sm:$0xf]
        %v4582 = vld [vmem:[%s3 + $0x28] sm:$0xf]
        %v4583 = vld [vmem:[%s3 + $0x2c] sm:$0xf]
        %v4584 = vld [vmem:[%s3 + $0x30] sm:$0xf]
        %v4585 = vld [vmem:[%s3 + $0x34] sm:$0xf]
        %v4586 = vld [vmem:[%s3 + $0x38] sm:$0xf]
        %v4587 = vld [vmem:[%s3 + $0x3c] sm:$0xf]
        %v4588 = vld [vmem:[%s4] sm:$0x1]
        %v4590 = vlaneseq
        %v4591 = vshrl.u32 %v4590, 7
        %v4592 = vsub.s32 0, %v4591
        %v4593 = vrot.slane %v4588, %v4592
        %v4611 = vunpack.c.l.b16 %v4572
        %v4612 = vunpack.c.l.b16 %v4573
        %v4613 = vunpack.c.l.b16 %v4574
        %v4614 = vunpack.c.l.b16 %v4575
        %v4615 = vunpack.c.l.b16 %v4576
        %v4616 = vunpack.c.l.b16 %v4577
        %v4617 = vunpack.c.l.b16 %v4578
        %v4618 = vunpack.c.l.b16 %v4579
        %v4619 = vunpack.c.l.b16 %v4580
        %v4620 = vunpack.c.l.b16 %v4581
        %v4621 = vunpack.c.l.b16 %v4582
        %v4622 = vunpack.c.l.b16 %v4583
        %v4623 = vunpack.c.l.b16 %v4584
        %v4624 = vunpack.c.l.b16 %v4585
        %v4625 = vunpack.c.l.b16 %v4586
        %v4626 = vunpack.c.l.b16 %v4587
        %v4627 = vpack.c.b16 %v4612, %v4611
        %v4628 = vpack.c.b16 %v4614, %v4613
        %v4629 = vpack.c.b16 %v4616, %v4615
        %v4630 = vpack.c.b16 %v4618, %v4617
        %v4631 = vpack.c.b16 %v4620, %v4619
        %v4632 = vpack.c.b16 %v4622, %v4621
        %v4633 = vpack.c.b16 %v4624, %v4623
        %v4634 = vpack.c.b16 %v4626, %v4625
        %4643 = vmatprep.subr.bf16.mxu0 0
        %4644 = vmatpush1.bf16.msra.mxu0 %v4627
        %4645 = vmatprep.subr.bf16.mxu0 0
        %4646 = vmatpush1.bf16.msra.mxu0 %v4628
        %4647 = vmatprep.subr.bf16.mxu0 0
        %4648 = vmatpush1.bf16.msra.mxu0 %v4629
        %4649 = vmatprep.subr.bf16.mxu0 0
        %4650 = vmatpush1.bf16.msra.mxu0 %v4630
        %4651 = vmatprep.subr.bf16.mxu0 0
        %4652 = vmatpush1.bf16.msra.mxu0 %v4631
        %4653 = vmatprep.subr.bf16.mxu0 0
        %4654 = vmatpush1.bf16.msra.mxu0 %v4632
        %4655 = vmatprep.subr.bf16.mxu0 0
        %4656 = vmatpush1.bf16.msra.mxu0 %v4633
        %4657 = vmatprep.subr.bf16.mxu0 0
        %4658 = vmatpush1.bf16.msra.mxu0 %v4634
        %4659 = vmatprep.subr.bf16.mxu0 0
        %4660 = vmatpush1.bf16.msra.mxu0 0
        %4661 = vmatprep.subr.bf16.mxu0 0
        %4662 = vmatpush1.bf16.msra.mxu0 0
        %4663 = vmatprep.subr.bf16.mxu0 0
        %4664 = vmatpush1.bf16.msra.mxu0 0
        %4665 = vmatprep.subr.bf16.mxu0 0
        %4666 = vmatpush1.bf16.msra.mxu0 0
        %4667 = vmatprep.subr.bf16.mxu0 0
        %4668 = vmatpush1.bf16.msra.mxu0 0
        %4669 = vmatprep.subr.bf16.mxu0 0
        %4670 = vmatpush1.bf16.msra.mxu0 0
        %4671 = vmatprep.subr.bf16.mxu0 0
        %4672 = vmatpush1.bf16.msra.mxu0 0
        %4673 = vmatprep.subr.bf16.mxu0 0
        %4674 = vmatpush1.bf16.msra.mxu0 0
        %4675 = vmatprep.mubr.bf16.mxu0 0
        %4676 = vmatmul.mubr.bf16.gmra.mrb[0].mxu0 %v4556
        %v4677 = vpop.f32.mrb[0].mxu0
        %v4678 = vadd.f32 %v4593, %v4677
        %v4679 = vpop.f32.mrb[0].mxu0
        %v4680 = vpop.f32.mrb[0].mxu0
        %v4681 = vadd.f32 %v4593, %v4680
        %v4682 = vpop.f32.mrb[0].mxu0
        %4683 = vmatprep.mubr.bf16.mxu0 0
        %4684 = vmatmul.mubr.bf16.gmra.mrb[0].mxu0 %v4557
        %v4685 = vpop.f32.mrb[0].mxu0
        %v4686 = vadd.f32 %v4593, %v4685
        %v4687 = vpop.f32.mrb[0].mxu0
        %v4688 = vpop.f32.mrb[0].mxu0
        %v4689 = vadd.f32 %v4593, %v4688
        %v4690 = vpop.f32.mrb[0].mxu0
        %4691 = vmatprep.mubr.bf16.mxu0 0
        %4692 = vmatmul.mubr.bf16.gmra.mrb[0].mxu0 %v4558
        %v4693 = vpop.f32.mrb[0].mxu0
        %v4694 = vadd.f32 %v4593, %v4693
        %v4695 = vpop.f32.mrb[0].mxu0
        %v4696 = vpop.f32.mrb[0].mxu0
        %v4697 = vadd.f32 %v4593, %v4696
        %v4698 = vpop.f32.mrb[0].mxu0
        %4699 = vmatprep.mubr.bf16.mxu0 0
        %4700 = vmatmul.mubr.bf16.gmra.mrb[0].mxu0 %v4559
        %v4701 = vpop.f32.mrb[0].mxu0
        %v4702 = vadd.f32 %v4593, %v4701
        %v4703 = vpop.f32.mrb[0].mxu0
        %v4704 = vpop.f32.mrb[0].mxu0
        %v4705 = vadd.f32 %v4593, %v4704
        %v4706 = vpop.f32.mrb[0].mxu0
        %4707 = vmatprep.mubr.bf16.mxu0 0
        %4708 = vmatmul.mubr.bf16.gmra.mrb[0].mxu0 %v4560
        %v4709 = vpop.f32.mrb[0].mxu0
        %v4710 = vadd.f32 %v4593, %v4709
        %v4711 = vpop.f32.mrb[0].mxu0
        %v4712 = vpop.f32.mrb[0].mxu0
        %v4713 = vadd.f32 %v4593, %v4712
        %v4714 = vpop.f32.mrb[0].mxu0
        %4715 = vmatprep.mubr.bf16.mxu0 0
        %4716 = vmatmul.mubr.bf16.gmra.mrb[0].mxu0 %v4561
        %v4717 = vpop.f32.mrb[0].mxu0
        %v4718 = vadd.f32 %v4593, %v4717
        %v4719 = vpop.f32.mrb[0].mxu0
        %v4720 = vpop.f32.mrb[0].mxu0
        %v4721 = vadd.f32 %v4593, %v4720
        %v4722 = vpop.f32.mrb[0].mxu0
        %4723 = vmatprep.mubr.bf16.mxu0 0
        %4724 = vmatmul.mubr.bf16.gmra.mrb[0].mxu0 %v4562
        %v4725 = vpop.f32.mrb[0].mxu0
        %v4726 = vadd.f32 %v4593, %v4725
        %v4727 = vpop.f32.mrb[0].mxu0
        %v4728 = vpop.f32.mrb[0].mxu0
        %v4729 = vadd.f32 %v4593, %v4728
        %v4730 = vpop.f32.mrb[0].mxu0
        %4731 = vmatprep.mubr.bf16.mxu0 0
        %4732 = vmatmul.mubr.bf16.gmra.mrb[0].mxu0 %v4563
        %v4733 = vpop.f32.mrb[0].mxu0
        %v4734 = vadd.f32 %v4593, %v4733
        %v4735 = vpop.f32.mrb[0].mxu0
        %v4736 = vpop.f32.mrb[0].mxu0
        %v4737 = vadd.f32 %v4593, %v4736
        %v4738 = vpop.f32.mrb[0].mxu0
        %4739 = vmatprep.mubr.bf16.mxu0 0
        %4740 = vmatmul.mubr.bf16.gmra.mrb[0].mxu0 %v4564
        %v4741 = vpop.f32.mrb[0].mxu0
        %v4742 = vadd.f32 %v4593, %v4741
        %v4743 = vpop.f32.mrb[0].mxu0
        %v4744 = vpop.f32.mrb[0].mxu0
        %v4745 = vadd.f32 %v4593, %v4744
        %v4746 = vpop.f32.mrb[0].mxu0
        %4747 = vmatprep.mubr.bf16.mxu0 0
        %4748 = vmatmul.mubr.bf16.gmra.mrb[0].mxu0 %v4565
        %v4749 = vpop.f32.mrb[0].mxu0
        %v4750 = vadd.f32 %v4593, %v4749
        %v4751 = vpop.f32.mrb[0].mxu0
        %v4752 = vpop.f32.mrb[0].mxu0
        %v4753 = vadd.f32 %v4593, %v4752
        %v4754 = vpop.f32.mrb[0].mxu0
        %4755 = vmatprep.mubr.bf16.mxu0 0
        %4756 = vmatmul.mubr.bf16.gmra.mrb[0].mxu0 %v4566
        %v4757 = vpop.f32.mrb[0].mxu0
        %v4758 = vadd.f32 %v4593, %v4757
        %v4759 = vpop.f32.mrb[0].mxu0
        %v4760 = vpop.f32.mrb[0].mxu0
        %v4761 = vadd.f32 %v4593, %v4760
        %v4762 = vpop.f32.mrb[0].mxu0
        %4763 = vmatprep.mubr.bf16.mxu0 0
        %4764 = vmatmul.mubr.bf16.gmra.mrb[0].mxu0 %v4567
        %v4765 = vpop.f32.mrb[0].mxu0
        %v4766 = vadd.f32 %v4593, %v4765
        %v4767 = vpop.f32.mrb[0].mxu0
        %v4768 = vpop.f32.mrb[0].mxu0
        %v4769 = vadd.f32 %v4593, %v4768
        %v4770 = vpop.f32.mrb[0].mxu0
        %4771 = vmatprep.mubr.bf16.mxu0 0
        %4772 = vmatmul.mubr.bf16.gmra.mrb[0].mxu0 %v4568
        %v4773 = vpop.f32.mrb[0].mxu0
        %v4774 = vadd.f32 %v4593, %v4773
        %v4775 = vpop.f32.mrb[0].mxu0
        %v4776 = vpop.f32.mrb[0].mxu0
        %v4777 = vadd.f32 %v4593, %v4776
        %v4778 = vpop.f32.mrb[0].mxu0
        %4779 = vmatprep.mubr.bf16.mxu0 0
        %4780 = vmatmul.mubr.bf16.gmra.mrb[0].mxu0 %v4569
        %v4781 = vpop.f32.mrb[0].mxu0
        %v4782 = vadd.f32 %v4593, %v4781
        %v4783 = vpop.f32.mrb[0].mxu0
        %v4784 = vpop.f32.mrb[0].mxu0
        %v4785 = vadd.f32 %v4593, %v4784
        %v4786 = vpop.f32.mrb[0].mxu0
        %4787 = vmatprep.mubr.bf16.mxu0 0
        %4788 = vmatmul.mubr.bf16.gmra.mrb[0].mxu0 %v4570
        %v4789 = vpop.f32.mrb[0].mxu0
        %v4790 = vadd.f32 %v4593, %v4789
        %v4791 = vpop.f32.mrb[0].mxu0
        %v4792 = vpop.f32.mrb[0].mxu0
        %v4793 = vadd.f32 %v4593, %v4792
        %v4794 = vpop.f32.mrb[0].mxu0
        %4795 = vmatprep.mubr.bf16.mxu0 0
        %4796 = vmatmul.mubr.bf16.gmra.mrb[0].mxu0 %v4571
        %v4797 = vpop.f32.mrb[0].mxu0
        %v4798 = vadd.f32 %v4593, %v4797
        %v4799 = vpop.f32.mrb[0].mxu0
        %v4800 = vpop.f32.mrb[0].mxu0
        %v4801 = vadd.f32 %v4593, %v4800
        %v4802 = vpop.f32.mrb[0].mxu0
        %4803 = vdwg.mxu0
        %v4804 = vmax.f32 %v4678, 0.0
        %v4805 = vmax.f32 %v4681, 0.0
        %v4806 = vmax.f32 %v4686, 0.0
        %v4807 = vmax.f32 %v4689, 0.0
        %v4808 = vmax.f32 %v4694, 0.0
        %v4809 = vmax.f32 %v4697, 0.0
        %v4810 = vmax.f32 %v4702, 0.0
        %v4811 = vmax.f32 %v4705, 0.0
        %v4812 = vmax.f32 %v4710, 0.0
        %v4813 = vmax.f32 %v4713, 0.0
        %v4814 = vmax.f32 %v4718, 0.0
        %v4815 = vmax.f32 %v4721, 0.0
        %v4816 = vmax.f32 %v4726, 0.0
        %v4817 = vmax.f32 %v4729, 0.0
        %v4818 = vmax.f32 %v4734, 0.0
        %v4819 = vmax.f32 %v4737, 0.0
        %v4820 = vmax.f32 %v4742, 0.0
        %v4821 = vmax.f32 %v4745, 0.0
        %v4822 = vmax.f32 %v4750, 0.0
        %v4823 = vmax.f32 %v4753, 0.0
        %v4824 = vmax.f32 %v4758, 0.0
        %v4825 = vmax.f32 %v4761, 0.0
        %v4826 = vmax.f32 %v4766, 0.0
        %v4827 = vmax.f32 %v4769, 0.0
        %v4828 = vmax.f32 %v4774, 0.0
        %v4829 = vmax.f32 %v4777, 0.0
        %v4830 = vmax.f32 %v4782, 0.0
        %v4831 = vmax.f32 %v4785, 0.0
        %v4832 = vmax.f32 %v4790, 0.0
        %v4833 = vmax.f32 %v4793, 0.0
        %v4834 = vmax.f32 %v4798, 0.0
        %v4835 = vmax.f32 %v4801, 0.0
        %vm4836 = vcmask 130048
        %4837 = vst.msk [vmem:[%s354] sm:$0xff] %vm4836, %v4804
        %4838 = vst.msk [vmem:[%s354 + $0x8] sm:$0xff] %vm4836, %v4805
        %4839 = vst.msk [vmem:[%s354 + $0x10] sm:$0xff] %vm4836, %v4806
        %4840 = vst.msk [vmem:[%s354 + $0x18] sm:$0xff] %vm4836, %v4807
        %4841 = vst.msk [vmem:[%s354 + $0x20] sm:$0xff] %vm4836, %v4808
        %4842 = vst.msk [vmem:[%s354 + $0x28] sm:$0xff] %vm4836, %v4809
        %4843 = vst.msk [vmem:[%s354 + $0x30] sm:$0xff] %vm4836, %v4810
        %4844 = vst.msk [vmem:[%s354 + $0x38] sm:$0xff] %vm4836, %v4811
        %4845 = vst.msk [vmem:[%s354 + $0x40] sm:$0xff] %vm4836, %v4812
        %4846 = vst.msk [vmem:[%s354 + $0x48] sm:$0xff] %vm4836, %v4813
        %4847 = vst.msk [vmem:[%s354 + $0x50] sm:$0xff] %vm4836, %v4814
        %4848 = vst.msk [vmem:[%s354 + $0x58] sm:$0xff] %vm4836, %v4815
        %4849 = vst.msk [vmem:[%s354 + $0x60] sm:$0xff] %vm4836, %v4816
        %4850 = vst.msk [vmem:[%s354 + $0x68] sm:$0xff] %vm4836, %v4817
        %4851 = vst.msk [vmem:[%s354 + $0x70] sm:$0xff] %vm4836, %v4818
        %4852 = vst.msk [vmem:[%s354 + $0x78] sm:$0xff] %vm4836, %v4819
        %4853 = vst.msk [vmem:[%s354 + $0x80] sm:$0xff] %vm4836, %v4820
        %4854 = vst.msk [vmem:[%s354 + $0x88] sm:$0xff] %vm4836, %v4821
        %4855 = vst.msk [vmem:[%s354 + $0x90] sm:$0xff] %vm4836, %v4822
        %4856 = vst.msk [vmem:[%s354 + $0x98] sm:$0xff] %vm4836, %v4823
        %4857 = vst.msk [vmem:[%s354 + $0xa0] sm:$0xff] %vm4836, %v4824
        %4858 = vst.msk [vmem:[%s354 + $0xa8] sm:$0xff] %vm4836, %v4825
        %4859 = vst.msk [vmem:[%s354 + $0xb0] sm:$0xff] %vm4836, %v4826
        %4860 = vst.msk [vmem:[%s354 + $0xb8] sm:$0xff] %vm4836, %v4827
        %4861 = vst.msk [vmem:[%s354 + $0xc0] sm:$0xff] %vm4836, %v4828
        %4862 = vst.msk [vmem:[%s354 + $0xc8] sm:$0xff] %vm4836, %v4829
        %4863 = vst.msk [vmem:[%s354 + $0xd0] sm:$0xff] %vm4836, %v4830
        %4864 = vst.msk [vmem:[%s354 + $0xd8] sm:$0xff] %vm4836, %v4831
        %4865 = vst.msk [vmem:[%s354 + $0xe0] sm:$0xff] %vm4836, %v4832
        %4866 = vst.msk [vmem:[%s354 + $0xe8] sm:$0xff] %vm4836, %v4833
        %4867 = vst.msk [vmem:[%s354 + $0xf0] sm:$0xff] %vm4836, %v4834
        %4868 = vst.msk [vmem:[%s354 + $0xf8] sm:$0xff] %vm4836, %v4835
        %v4869 = vpack.c.bf16 %v4805, %v4804
        %v4870 = vpack.c.bf16 %v4807, %v4806
        %v4871 = vpack.c.bf16 %v4809, %v4808
        %v4872 = vpack.c.bf16 %v4811, %v4810
        %v4873 = vpack.c.bf16 %v4813, %v4812
        %v4874 = vpack.c.bf16 %v4815, %v4814
        %v4875 = vpack.c.bf16 %v4817, %v4816
        %v4876 = vpack.c.bf16 %v4819, %v4818
        %v4877 = vpack.c.bf16 %v4821, %v4820
        %v4878 = vpack.c.bf16 %v4823, %v4822
        %v4879 = vpack.c.bf16 %v4825, %v4824
        %v4880 = vpack.c.bf16 %v4827, %v4826
        %v4881 = vpack.c.bf16 %v4829, %v4828
        %v4882 = vpack.c.bf16 %v4831, %v4830
        %v4883 = vpack.c.bf16 %v4833, %v4832
        %v4884 = vpack.c.bf16 %v4835, %v4834
        %v4885 = vld [vmem:[%s5] sm:$0xf]
        %v4886 = vld [vmem:[%s5 + $0x4] sm:$0xf]
        %v4889 = vunpack.c.l.b16 %v4885
        %v4890 = vunpack.c.l.b16 %v4886
        %v4891 = vpack.c.b16 %v4890, %v4889
        %v4894 = vsel %vm4836, %v4869, 0
        %v4897 = vsel %vm4836, %v4870, 0
        %v4900 = vsel %vm4836, %v4871, 0
        %v4903 = vsel %vm4836, %v4872, 0
        %v4906 = vsel %vm4836, %v4873, 0
        %v4909 = vsel %vm4836, %v4874, 0
        %v4912 = vsel %vm4836, %v4875, 0
        %v4915 = vsel %vm4836, %v4876, 0
        %v4918 = vsel %vm4836, %v4877, 0
        %v4921 = vsel %vm4836, %v4878, 0
        %v4924 = vsel %vm4836, %v4879, 0
        %v4927 = vsel %vm4836, %v4880, 0
        %v4930 = vsel %vm4836, %v4881, 0
        %v4933 = vsel %vm4836, %v4882, 0
        %v4936 = vsel %vm4836, %v4883, 0
        %v4939 = vsel %vm4836, %v4884, 0
        %4941 = vmatprep.subr.bf16.mxu0 0
        %4942 = vmatpush1.bf16.msra.mxu0 %v4891
        %4943 = vmatprep.subr.bf16.mxu0 0
        %4944 = vmatpush1.bf16.msra.mxu0 0
        %4945 = vmatprep.subr.bf16.mxu0 0
        %4946 = vmatpush1.bf16.msra.mxu0 0
        %4947 = vmatprep.subr.bf16.mxu0 0
        %4948 = vmatpush1.bf16.msra.mxu0 0
        %4949 = vmatprep.subr.bf16.mxu0 0
        %4950 = vmatpush1.bf16.msra.mxu0 0
        %4951 = vmatprep.subr.bf16.mxu0 0
        %4952 = vmatpush1.bf16.msra.mxu0 0
        %4953 = vmatprep.subr.bf16.mxu0 0
        %4954 = vmatpush1.bf16.msra.mxu0 0
        %4955 = vmatprep.subr.bf16.mxu0 0
        %4956 = vmatpush1.bf16.msra.mxu0 0
        %4957 = vmatprep.subr.bf16.mxu0 0
        %4958 = vmatpush1.bf16.msra.mxu0 0
        %4959 = vmatprep.subr.bf16.mxu0 0
        %4960 = vmatpush1.bf16.msra.mxu0 0
        %4961 = vmatprep.subr.bf16.mxu0 0
        %4962 = vmatpush1.bf16.msra.mxu0 0
        %4963 = vmatprep.subr.bf16.mxu0 0
        %4964 = vmatpush1.bf16.msra.mxu0 0
        %4965 = vmatprep.subr.bf16.mxu0 0
        %4966 = vmatpush1.bf16.msra.mxu0 0
        %4967 = vmatprep.subr.bf16.mxu0 0
        %4968 = vmatpush1.bf16.msra.mxu0 0
        %4969 = vmatprep.subr.bf16.mxu0 0
        %4970 = vmatpush1.bf16.msra.mxu0 0
        %4971 = vmatprep.subr.bf16.mxu0 0
        %4972 = vmatpush1.bf16.msra.mxu0 0
        %4973 = vmatprep.mubr.bf16.mxu0 0
        %4974 = vmatmul.mubr.bf16.gmra.mrb[0].mxu0 %v4894
        %v4975 = vpop.f32.mrb[0].mxu0
        %v4976 = vadd.f32 0.0, %v4975
        %v4977 = vpop.f32.mrb[0].mxu0
        %v4978 = vpop.f32.mrb[0].mxu0
        %v4979 = vadd.f32 0.0, %v4978
        %v4980 = vpop.f32.mrb[0].mxu0
        %4981 = vmatprep.mubr.bf16.mxu0 0
        %4982 = vmatmul.mubr.bf16.gmra.mrb[0].mxu0 %v4897
        %v4983 = vpop.f32.mrb[0].mxu0
        %v4984 = vadd.f32 0.0, %v4983
        %v4985 = vpop.f32.mrb[0].mxu0
        %v4986 = vpop.f32.mrb[0].mxu0
        %v4987 = vadd.f32 0.0, %v4986
        %v4988 = vpop.f32.mrb[0].mxu0
        %4989 = vmatprep.mubr.bf16.mxu0 0
        %4990 = vmatmul.mubr.bf16.gmra.mrb[0].mxu0 %v4900
        %v4991 = vpop.f32.mrb[0].mxu0
        %v4992 = vadd.f32 0.0, %v4991
        %v4993 = vpop.f32.mrb[0].mxu0
        %v4994 = vpop.f32.mrb[0].mxu0
        %v4995 = vadd.f32 0.0, %v4994
        %v4996 = vpop.f32.mrb[0].mxu0
        %4997 = vmatprep.mubr.bf16.mxu0 0
        %4998 = vmatmul.mubr.bf16.gmra.mrb[0].mxu0 %v4903
        %v4999 = vpop.f32.mrb[0].mxu0
        %v5000 = vadd.f32 0.0, %v4999
        %v5001 = vpop.f32.mrb[0].mxu0
        %v5002 = vpop.f32.mrb[0].mxu0
        %v5003 = vadd.f32 0.0, %v5002
        %v5004 = vpop.f32.mrb[0].mxu0
        %5005 = vmatprep.mubr.bf16.mxu0 0
        %5006 = vmatmul.mubr.bf16.gmra.mrb[0].mxu0 %v4906
        %v5007 = vpop.f32.mrb[0].mxu0
        %v5008 = vadd.f32 0.0, %v5007
        %v5009 = vpop.f32.mrb[0].mxu0
        %v5010 = vpop.f32.mrb[0].mxu0
        %v5011 = vadd.f32 0.0, %v5010
        %v5012 = vpop.f32.mrb[0].mxu0
        %5013 = vmatprep.mubr.bf16.mxu0 0
        %5014 = vmatmul.mubr.bf16.gmra.mrb[0].mxu0 %v4909
        %v5015 = vpop.f32.mrb[0].mxu0
        %v5016 = vadd.f32 0.0, %v5015
        %v5017 = vpop.f32.mrb[0].mxu0
        %v5018 = vpop.f32.mrb[0].mxu0
        %v5019 = vadd.f32 0.0, %v5018
        %v5020 = vpop.f32.mrb[0].mxu0
        %5021 = vmatprep.mubr.bf16.mxu0 0
        %5022 = vmatmul.mubr.bf16.gmra.mrb[0].mxu0 %v4912
        %v5023 = vpop.f32.mrb[0].mxu0
        %v5024 = vadd.f32 0.0, %v5023
        %v5025 = vpop.f32.mrb[0].mxu0
        %v5026 = vpop.f32.mrb[0].mxu0
        %v5027 = vadd.f32 0.0, %v5026
        %v5028 = vpop.f32.mrb[0].mxu0
        %5029 = vmatprep.mubr.bf16.mxu0 0
        %5030 = vmatmul.mubr.bf16.gmra.mrb[0].mxu0 %v4915
        %v5031 = vpop.f32.mrb[0].mxu0
        %v5032 = vadd.f32 0.0, %v5031
        %v5033 = vpop.f32.mrb[0].mxu0
        %v5034 = vpop.f32.mrb[0].mxu0
        %v5035 = vadd.f32 0.0, %v5034
        %v5036 = vpop.f32.mrb[0].mxu0
        %5037 = vmatprep.mubr.bf16.mxu0 0
        %5038 = vmatmul.mubr.bf16.gmra.mrb[0].mxu0 %v4918
        %v5039 = vpop.f32.mrb[0].mxu0
        %v5040 = vadd.f32 0.0, %v5039
        %v5041 = vpop.f32.mrb[0].mxu0
        %v5042 = vpop.f32.mrb[0].mxu0
        %v5043 = vadd.f32 0.0, %v5042
        %v5044 = vpop.f32.mrb[0].mxu0
        %5045 = vmatprep.mubr.bf16.mxu0 0
        %5046 = vmatmul.mubr.bf16.gmra.mrb[0].mxu0 %v4921
        %v5047 = vpop.f32.mrb[0].mxu0
        %v5048 = vadd.f32 0.0, %v5047
        %v5049 = vpop.f32.mrb[0].mxu0
        %v5050 = vpop.f32.mrb[0].mxu0
        %v5051 = vadd.f32 0.0, %v5050
        %v5052 = vpop.f32.mrb[0].mxu0
        %5053 = vmatprep.mubr.bf16.mxu0 0
        %5054 = vmatmul.mubr.bf16.gmra.mrb[0].mxu0 %v4924
        %v5055 = vpop.f32.mrb[0].mxu0
        %v5056 = vadd.f32 0.0, %v5055
        %v5057 = vpop.f32.mrb[0].mxu0
        %v5058 = vpop.f32.mrb[0].mxu0
        %v5059 = vadd.f32 0.0, %v5058
        %v5060 = vpop.f32.mrb[0].mxu0
        %5061 = vmatprep.mubr.bf16.mxu0 0
        %5062 = vmatmul.mubr.bf16.gmra.mrb[0].mxu0 %v4927
        %v5063 = vpop.f32.mrb[0].mxu0
        %v5064 = vadd.f32 0.0, %v5063
        %v5065 = vpop.f32.mrb[0].mxu0
        %v5066 = vpop.f32.mrb[0].mxu0
        %v5067 = vadd.f32 0.0, %v5066
        %v5068 = vpop.f32.mrb[0].mxu0
        %5069 = vmatprep.mubr.bf16.mxu0 0
        %5070 = vmatmul.mubr.bf16.gmra.mrb[0].mxu0 %v4930
        %v5071 = vpop.f32.mrb[0].mxu0
        %v5072 = vadd.f32 0.0, %v5071
        %v5073 = vpop.f32.mrb[0].mxu0
        %v5074 = vpop.f32.mrb[0].mxu0
        %v5075 = vadd.f32 0.0, %v5074
        %v5076 = vpop.f32.mrb[0].mxu0
        %5077 = vmatprep.mubr.bf16.mxu0 0
        %5078 = vmatmul.mubr.bf16.gmra.mrb[0].mxu0 %v4933
        %v5079 = vpop.f32.mrb[0].mxu0
        %v5080 = vadd.f32 0.0, %v5079
        %v5081 = vpop.f32.mrb[0].mxu0
        %v5082 = vpop.f32.mrb[0].mxu0
        %v5083 = vadd.f32 0.0, %v5082
        %v5084 = vpop.f32.mrb[0].mxu0
        %5085 = vmatprep.mubr.bf16.mxu0 0
        %5086 = vmatmul.mubr.bf16.gmra.mrb[0].mxu0 %v4936
        %v5087 = vpop.f32.mrb[0].mxu0
        %v5088 = vadd.f32 0.0, %v5087
        %v5089 = vpop.f32.mrb[0].mxu0
        %v5090 = vpop.f32.mrb[0].mxu0
        %v5091 = vadd.f32 0.0, %v5090
        %v5092 = vpop.f32.mrb[0].mxu0
        %5093 = vmatprep.mubr.bf16.mxu0 0
        %5094 = vmatmul.mubr.bf16.gmra.mrb[0].mxu0 %v4939
        %v5095 = vpop.f32.mrb[0].mxu0
        %v5096 = vadd.f32 0.0, %v5095
        %v5097 = vpop.f32.mrb[0].mxu0
        %v5098 = vpop.f32.mrb[0].mxu0
        %v5099 = vadd.f32 0.0, %v5098
        %v5100 = vpop.f32.mrb[0].mxu0
        %5101 = vdwg.mxu0
        %vm5102 = vcmask 80896
        %v5103 = vsel %vm5102, %v4976, 0.0
        %v5104 = vsel %vm5102, %v4979, 0.0
        %v5105 = vadd.f32 %v5103, %v5104
        %v5106 = vsel %vm5102, %v4984, 0.0
        %v5107 = vadd.f32 %v5105, %v5106
        %v5108 = vsel %vm5102, %v4987, 0.0
        %v5109 = vadd.f32 %v5107, %v5108
        %v5110 = vsel %vm5102, %v4992, 0.0
        %v5111 = vadd.f32 %v5109, %v5110
        %v5112 = vsel %vm5102, %v4995, 0.0
        %v5113 = vadd.f32 %v5111, %v5112
        %v5114 = vsel %vm5102, %v5000, 0.0
        %v5115 = vadd.f32 %v5113, %v5114
        %v5116 = vsel %vm5102, %v5003, 0.0
        %v5117 = vadd.f32 %v5115, %v5116
        %v5118 = vsel %vm5102, %v5008, 0.0
        %v5119 = vadd.f32 %v5117, %v5118
        %v5120 = vsel %vm5102, %v5011, 0.0
        %v5121 = vadd.f32 %v5119, %v5120
        %v5122 = vsel %vm5102, %v5016, 0.0
        %v5123 = vadd.f32 %v5121, %v5122
        %v5124 = vsel %vm5102, %v5019, 0.0
        %v5125 = vadd.f32 %v5123, %v5124
        %v5126 = vsel %vm5102, %v5024, 0.0
        %v5127 = vadd.f32 %v5125, %v5126
        %v5128 = vsel %vm5102, %v5027, 0.0
        %v5129 = vadd.f32 %v5127, %v5128
        %v5130 = vsel %vm5102, %v5032, 0.0
        %v5131 = vadd.f32 %v5129, %v5130
        %v5132 = vsel %vm5102, %v5035, 0.0
        %v5133 = vadd.f32 %v5131, %v5132
        %v5134 = vsel %vm5102, %v5040, 0.0
        %v5135 = vadd.f32 %v5133, %v5134
        %v5136 = vsel %vm5102, %v5043, 0.0
        %v5137 = vadd.f32 %v5135, %v5136
        %v5138 = vsel %vm5102, %v5048, 0.0
        %v5139 = vadd.f32 %v5137, %v5138
        %v5140 = vsel %vm5102, %v5051, 0.0
        %v5141 = vadd.f32 %v5139, %v5140
        %v5142 = vsel %vm5102, %v5056, 0.0
        %v5143 = vadd.f32 %v5141, %v5142
        %v5144 = vsel %vm5102, %v5059, 0.0
        %v5145 = vadd.f32 %v5143, %v5144
        %v5146 = vsel %vm5102, %v5064, 0.0
        %v5147 = vadd.f32 %v5145, %v5146
        %v5148 = vsel %vm5102, %v5067, 0.0
        %v5149 = vadd.f32 %v5147, %v5148
        %v5150 = vsel %vm5102, %v5072, 0.0
        %v5151 = vadd.f32 %v5149, %v5150
        %v5152 = vsel %vm5102, %v5075, 0.0
        %v5153 = vadd.f32 %v5151, %v5152
        %v5154 = vsel %vm5102, %v5080, 0.0
        %v5155 = vadd.f32 %v5153, %v5154
        %v5156 = vsel %vm5102, %v5083, 0.0
        %v5157 = vadd.f32 %v5155, %v5156
        %v5158 = vsel %vm5102, %v5088, 0.0
        %v5159 = vadd.f32 %v5157, %v5158
        %v5160 = vsel %vm5102, %v5091, 0.0
        %v5161 = vadd.f32 %v5159, %v5160
        %v5162 = vsel %vm5102, %v5096, 0.0
        %v5163 = vadd.f32 %v5161, %v5162
        %v5164 = vsel %vm5102, %v5099, 0.0
        %v5165 = vadd.f32 %v5163, %v5164
        %v5166 = vrot.slane %v5165, 4
        %v5167 = vadd.f32 %v5165, %v5166
        %v5168 = vrot.slane %v5167, 2
        %v5169 = vadd.f32 %v5167, %v5168
        %v5170 = vrot.slane %v5169, 1
        %v5171 = vadd.f32 %v5169, %v5170
        %v5172 = vmul.f32 %v5171, 0.00390625
        %v5173 = vld [vmem:[%s6] sm:$0x1]
        %v5174 = vadd.f32 %v5172, %v5173
        %vm5175 = vcmask 73728
        %5176 = vst.msk [vmem:[%s339] sm:$0x1] %vm5175, %v5174
        %p5177 = scmp.lt.s32.totalorder %s24, 1
        %s5178 = scalar_select %p5177, %s24, 1
        %s5179 = smul.addr %s5178, 32
        %s5180 = smul.addr %s5179, 8
        %s5181 = scalar_lea.vmem %s7, %s5180
        %p5182 = scmp.lt.s32.totalorder %s24, 1
        %s5183 = scalar_select %p5182, %s24, 1
        %s5184 = smul.addr %s5183, 32
        %s5185 = smul.addr %s5184, 8
        %s5186 = scalar_lea.vmem %s8, %s5185
        %s5187 = sand.u32 %s236, 1
        %s5188 = scalar_lea.sflag [#allocation5], %s5187
        %s5189 = sand.u32 %s236, 1
        %s5190 = scalar_lea.vmem [#allocation4], %s5189
        // Predicated region
        $region49: #{feature_extractor_forward.1} parent=47 // pred_check
          %p5191 = pneg %p194
        $region50: #{feature_extractor_forward.1} parent=47 // pred_check_branch
          %5193 = sbr.rel (%p5191) target = $region52
        $region51: #{feature_extractor_forward.1} parent=47 // pred_region
          _
        $region52: #{feature_extractor_forward.1} parent=47 // pred_fallthru
          _
        // Predicated region
        $region53: #{feature_extractor_forward.1} parent=47 // pred_check
          %p5194 = pneg %p220
        $region54: #{feature_extractor_forward.1} parent=47 // pred_check_branch
          %5196 = sbr.rel (%p5194) target = $region56
        $region55: #{feature_extractor_forward.1} parent=47 // pred_region
          _
        $region56: #{feature_extractor_forward.1} parent=47 // pred_fallthru
          _
        // Predicated region
        $region57: #{feature_extractor_forward.1} parent=47 // pred_check
          %p5197 = pneg %p246
        $region58: #{feature_extractor_forward.1} parent=47 // pred_check_branch
          %5199 = sbr.rel (%p5197) target = $region60
        $region59: #{feature_extractor_forward.1} parent=47 // pred_region
          %s5201 = ssub.s32 16, 16
          %5202 = vsyncadd %s5188, %s5201
          %s5203 = smul.addr %s24, 16
          %s5204 = scalar_lea.hbm %s9, %s5203
          %s5206 = sshll.u32 %s5190, 4
          %s5207 = int_to_ptr.vmem [resolvable:$true] %s5206
          %5209 = dma.vmem_to_hbm [thread:$0]  %s5207, 16, %s5204, %s5188
        $region60: #{feature_extractor_forward.1} parent=47 // pred_fallthru
          _
      $region48: #{feature_extractor_forward.1} parent=5 // pred_fallthru
        _
      %p5210 = scmp.le.s32.totalorder 2, %s19
      // Predicated region
      $region61: #{feature_extractor_forward.1} parent=5 // pred_check
        %p5211 = pneg %p5210
      $region62: #{feature_extractor_forward.1} parent=5 // pred_check_branch
        %5213 = sbr.rel (%p5211) target = $region64
      $region63: #{feature_extractor_forward.1} parent=5 // pred_region
        %s5214 = ssub.s32 %s19, 2
        // Predicated region
        $region65: #{feature_extractor_forward.1} parent=63 // pred_check
          %p5215 = pneg %p200
        $region66: #{feature_extractor_forward.1} parent=63 // pred_check_branch
          %5217 = sbr.rel (%p5215) target = $region68
        $region67: #{feature_extractor_forward.1} parent=63 // pred_region
          %p5218 = scmp.lt.s32.totalorder %s25, 1
          %s5219 = scalar_select %p5218, %s25, 1
          %s5220 = smul.addr %s5219, 32
          %s5221 = smul.addr %s5220, 8
          %s5222 = scalar_lea.vmem %s7, %s5221
        $region68: #{feature_extractor_forward.1} parent=63 // pred_fallthru
          _
        // Predicated region
        $region69: #{feature_extractor_forward.1} parent=63 // pred_check
          %p5223 = pneg %p226
        $region70: #{feature_extractor_forward.1} parent=63 // pred_check_branch
          %5225 = sbr.rel (%p5223) target = $region72
        $region71: #{feature_extractor_forward.1} parent=63 // pred_region
          %p5226 = scmp.lt.s32.totalorder %s25, 1
          %s5227 = scalar_select %p5226, %s25, 1
          %s5228 = smul.addr %s5227, 32
          %s5229 = smul.addr %s5228, 8
          %s5230 = scalar_lea.vmem %s8, %s5229
        $region72: #{feature_extractor_forward.1} parent=63 // pred_fallthru
          _
        // Predicated region
        $region73: #{feature_extractor_forward.1} parent=63 // pred_check
          %p5231 = pneg %p252
        $region74: #{feature_extractor_forward.1} parent=63 // pred_check_branch
          %5233 = sbr.rel (%p5231) target = $region76
        $region75: #{feature_extractor_forward.1} parent=63 // pred_region
          %s5234 = sand.u32 %s237, 1
          %s5235 = scalar_lea.sflag [#allocation5], %s5234
          %s5236 = sand.u32 %s237, 1
          %s5237 = scalar_lea.vmem [#allocation4], %s5236
          %5238 = dma.done %s5235, 16
        $region76: #{feature_extractor_forward.1} parent=63 // pred_fallthru
          _
      $region64: #{feature_extractor_forward.1} parent=5 // pred_fallthru
        _
    $region6: #{feature_extractor_forward.1} parent=1 // loop_footer
      %s23 = sadd.s32 1, %s19
    $region7: #{feature_extractor_forward.1} parent=1 // loop_footer_branch
      %18 = sbr.rel target = $region3
    $region8: #{feature_extractor_forward.1} parent=1 // loop_exit
      _
    %5239 = vsyncpa [#allocation5], 1
    %s5240 = scalar_lea.sflag [#allocation5], 1
    %5241 = vsyncpa %s5240, 1

</llo_original>
